<compile_context>
chip_gen: v5e
topology: v5e:2x2
jax: 0.10.0
libtpu: 0.0.40
codegen_flags: <defaults>
</compile_context>

<pallas_src>
import numpy as np
import jax
import jax.numpy as jnp
from jax.experimental import pallas as pl
from jax.experimental.pallas import tpu as pltpu

BB = 8  # images per grid step (block batch)


# ----------------------------------------------------------------------------
# Host-side parameter preparation (torch layout -> kernel layout, done once)
# ----------------------------------------------------------------------------
def prepare_params(params, bb=BB):
    f32 = np.float32
    w1 = np.asarray(params["conv1_w"], f32)    # [6, 3, 5, 5]
    b1 = np.asarray(params["conv1_b"], f32)    # [6]
    w2 = np.asarray(params["conv2_w"], f32)    # [16, 6, 5, 5]
    b2 = np.asarray(params["conv2_b"], f32)    # [16]
    fw1 = np.asarray(params["fc1_w"], f32)     # [120, 256]
    fb1 = np.asarray(params["fc1_b"], f32)     # [120]
    fw2 = np.asarray(params["fc2_w"], f32)     # [84, 120]
    fb2 = np.asarray(params["fc2_b"], f32)     # [84]
    fw3 = np.asarray(params["fc3_w"], f32)     # [1, 84]
    fb3 = np.asarray(params["fc3_b"], f32)     # [1]

    # conv1 band matrices: input row = [28*3] (lane = w*3 + cin),
    # output row = [24*6] (lane = w*6 + cout); one matrix per kernel row ki.
    wband1 = np.zeros((5, 28 * 3, 24 * 6), f32)
    for ki in range(5):
        for kj in range(5):
            blk = w1[:, :, ki, kj].T                       # [Cin=3, Cout=6]
            for wo in range(24):
                wband1[ki, (wo + kj) * 3:(wo + kj) * 3 + 3,
                       wo * 6:wo * 6 + 6] = blk

    # conv2 band matrices: input rows are pooled1 rows with 138 lanes, valid
    # data at lane 12*j + cin (j = pooled W); rows in between stay zero so the
    # pooling "junk" lanes contribute nothing.  Output row = [8*16].
    wband2 = np.zeros((5, 138, 8 * 16), f32)
    for ki in range(5):
        for kj in range(5):
            blk = w2[:, :, ki, kj].T                       # [Cin=6, Cout=16]
            for wo in range(8):
                wband2[ki, (wo + kj) * 12:(wo + kj) * 12 + 6,
                       wo * 16:wo * 16 + 16] = blk

    # fc1: consumes pooled2 rows i2 = 0..3, 112 lanes with valid data at lane
    # 32*j2 + cout.  The torch channel-major flatten index cout*16 + i2*4 + j2
    # is baked into the column order here; junk lanes get zero rows.
    wfc1 = np.zeros((4, 112, 120), f32)
    for i2 in range(4):
        for j2 in range(4):
            cols = np.arange(16) * 16 + i2 * 4 + j2
            wfc1[i2, 32 * j2:32 * j2 + 16, :] = fw1[:, cols].T   # [16, 120]

    # --- per-block selection matrices (depend on the block batch bb) --------
    # Stacked layout per block: image b occupies x rows 28b..28b+27.
    # conv1 output row "s" lives at 28b + ro (ro=0..23); rows with ro>=24 are
    # junk (cross-image) and are never selected below.
    n_x = bb * 28
    n_c1 = n_x - 4            # conv1 rows per block (shifted-slice length)
    n_u1 = n_c1 - 1           # after H-pair max
    # pool1 row compaction: pooled row j of image b = pair-max row 28b + 2j
    # -> compacted row 12b + j.
    s1 = np.zeros((bb * 12, n_u1), f32)
    for b in range(bb):
        for j in range(12):
            s1[12 * b + j, 28 * b + 2 * j] = 1.0

    n_p1 = bb * 12
    n_c2 = n_p1 - 4           # conv2 rows per block (valid at 12b + ro, ro<8)
    n_u2 = n_c2 - 1           # after H-pair max
    # fc1 row picks: pooled2 row i2 of image b = pair-max row 12b + 2*i2.
    sfc = np.zeros((4, bb, n_u2), f32)
    for i2 in range(4):
        for b in range(bb):
            sfc[i2, b, 12 * b + 2 * i2] = 1.0

    bf16 = jnp.bfloat16
    return {
        "wband1": jnp.asarray(wband1, bf16),                           # [5,84,144]
        "bband1": jnp.asarray(np.tile(b1, 24)[None, :], jnp.float32),  # [1,144]
        "s1":     jnp.asarray(s1, jnp.float32),                        # [96,219]
        "wband2": jnp.asarray(wband2, bf16),                           # [5,138,128]
        "bband2": jnp.asarray(np.tile(b2, 8)[None, :], jnp.float32),   # [1,128]
        "sfc":    jnp.asarray(sfc, jnp.float32),                       # [4,8,91]
        "wfc1":   jnp.asarray(wfc1, bf16),                             # [4,112,120]
        "bfc1":   jnp.asarray(fb1[None, :], jnp.float32),              # [1,120]
        "wfc2":   jnp.asarray(fw2.T, bf16),                            # [120,84]
        "bfc2":   jnp.asarray(fb2[None, :], jnp.float32),              # [1,84]
        "wfc3":   jnp.asarray(fw3, jnp.float32),                       # [1,84]
        "bfc3":   jnp.asarray(fb3[None, :], jnp.float32),              # [1,1]
    }


# ----------------------------------------------------------------------------
# Fused Pallas kernel: one block of BB images (stacked rows) -> BB sigmoids
# ----------------------------------------------------------------------------
def _cnn_fused_kernel(x_ref, wb1_ref, bb1_ref, s1_ref, wb2_ref, bb2_ref,
                      sf_ref, wf1_ref, bf1_ref, wf2_ref, bf2_ref,
                      wf3_ref, bf3_ref, o_ref):
    f32 = jnp.float32
    bf16 = jnp.bfloat16

    x = x_ref[0]                                   # [BB*28, 84] f32
    n_c1 = x.shape[0] - 4                          # conv1 rows (incl. junk rows)

    # conv1 + bias + ReLU: banded row matmuls over the whole stacked block.
    acc1 = jnp.dot(x[0:n_c1, :].astype(bf16), wb1_ref[0],
                   preferred_element_type=f32)
    for ki in range(1, 5):
        acc1 = acc1 + jnp.dot(x[ki:ki + n_c1, :].astype(bf16), wb1_ref[ki],
                              preferred_element_type=f32)
    y1 = jnp.maximum(acc1 + bb1_ref[...], 0.0)     # [n_c1, 144]

    # 2x2 max-pool #1: lane-shifted W-pair max, row-shifted H-pair max, then
    # 0/1 compaction matmul picking row 28b+2j -> 12b+j (junk rows dropped).
    u1 = jnp.maximum(y1[:, :138], y1[:, 6:])       # [n_c1, 138]
    u1 = jnp.maximum(u1[:n_c1 - 1, :], u1[1:, :])  # [n_c1-1, 138]
    p1 = jnp.dot(s1_ref[...], u1, preferred_element_type=f32)   # [BB*12, 138]

    n_p1 = p1.shape[0]
    n_c2 = n_p1 - 4

    # conv2 + bias + ReLU (valid output rows at 12b + ro, ro = 0..7).
    acc2 = jnp.dot(p1[0:n_c2, :].astype(bf16), wb2_ref[0],
                   preferred_element_type=f32)
    for ki in range(1, 5):
        acc2 = acc2 + jnp.dot(p1[ki:ki + n_c2, :].astype(bf16), wb2_ref[ki],
                              preferred_element_type=f32)
    y2 = jnp.maximum(acc2 + bb2_ref[...], 0.0)     # [n_c2, 128]

    # 2x2 max-pool #2: valid data at lane 32*j2 + cout, rows 12b + 2*i2.
    u2 = jnp.maximum(y2[:, :112], y2[:, 16:])      # [n_c2, 112]
    u2 = jnp.maximum(u2[:n_c2 - 1, :], u2[1:, :])  # [n_c2-1, 112]

    # fc1 + ReLU: 0/1 row picks + per-i2 weight (flatten order baked in wf1).
    nb = sf_ref.shape[1]
    acc3 = jnp.zeros((nb, 120), f32)
    for i2 in range(4):
        rows = jnp.dot(sf_ref[i2], u2, preferred_element_type=f32)   # [BB,112]
        acc3 = acc3 + jnp.dot(rows.astype(bf16), wf1_ref[i2],
                              preferred_element_type=f32)
    h1 = jnp.maximum(acc3 + bf1_ref[...], 0.0)     # [BB, 120]

    # fc2 + ReLU
    h2 = jnp.dot(h1.astype(bf16), wf2_ref[...], preferred_element_type=f32)
    h2 = jnp.maximum(h2 + bf2_ref[...], 0.0)       # [BB, 84]

    # fc3 + sigmoid (dot product via elementwise mul + lane reduction)
    z = jnp.sum(h2 * wf3_ref[...], axis=1, keepdims=True) + bf3_ref[...]
    o_ref[...] = 1.0 / (1.0 + jnp.exp(-z))         # [BB, 1]


# ----------------------------------------------------------------------------
# Wrapper
# ----------------------------------------------------------------------------
@jax.jit
def cnn_forward(prep, x_nchw):
    B = x_nchw.shape[0]
    bb = prep["sfc"].shape[1]
    n_blk = -(-B // bb)
    Bp = n_blk * bb

    # NCHW -> per-row layout [B, H, W*C] (channel innermost), pad the batch to
    # a multiple of bb, and stack bb images per block along the row axis.
    x_rows = jnp.transpose(x_nchw, (0, 2, 3, 1)).reshape(B, 28, 28 * 3)
    if Bp != B:
        x_rows = jnp.pad(x_rows, ((0, Bp - B), (0, 0), (0, 0)))
    x_blocks = x_rows.reshape(n_blk, bb * 28, 28 * 3)

    full2 = lambda b: (0, 0)
    full3 = lambda b: (0, 0, 0)

    out = pl.pallas_call(
        _cnn_fused_kernel,
        out_shape=jax.ShapeDtypeStruct((Bp, 1), jnp.float32),
        grid=(n_blk,),
        in_specs=[
            pl.BlockSpec((1, bb * 28, 84), lambda b: (b, 0, 0)),  # image block
            pl.BlockSpec(prep["wband1"].shape, full3),            # conv1 bands
            pl.BlockSpec(prep["bband1"].shape, full2),            # conv1 bias
            pl.BlockSpec(prep["s1"].shape, full2),                # pool1 select
            pl.BlockSpec(prep["wband2"].shape, full3),            # conv2 bands
            pl.BlockSpec(prep["bband2"].shape, full2),            # conv2 bias
            pl.BlockSpec(prep["sfc"].shape, full3),               # fc1 row picks
            pl.BlockSpec(prep["wfc1"].shape, full3),              # fc1 (permuted)
            pl.BlockSpec(prep["bfc1"].shape, full2),              # fc1 bias
            pl.BlockSpec(prep["wfc2"].shape, full2),              # fc2 weight
            pl.BlockSpec(prep["bfc2"].shape, full2),              # fc2 bias
            pl.BlockSpec(prep["wfc3"].shape, full2),              # fc3 weight row
            pl.BlockSpec(prep["bfc3"].shape, full2),              # fc3 bias
        ],
        out_specs=pl.BlockSpec((bb, 1), lambda b: (b, 0)),
        compiler_params=pltpu.CompilerParams(
            dimension_semantics=("parallel",),
            vmem_limit_bytes=32 * 1024 * 1024,
        ),
    )(x_blocks,
      prep["wband1"], prep["bband1"], prep["s1"],
      prep["wband2"], prep["bband2"],
      prep["sfc"], prep["wfc1"], prep["bfc1"],
      prep["wfc2"], prep["bfc2"],
      prep["wfc3"], prep["bfc3"])
    return out.reshape(-1)[:B]


# ----------------------------------------------------------------------------
# Deterministic parameter init (PyTorch-style uniform(+-1/sqrt(fan_in)))
# ----------------------------------------------------------------------------
def init_params(key):
    def uniform(k, shape, fan_in):
        bound = 1.0 / jnp.sqrt(fan_in)
        return jax.random.uniform(
            k, shape, dtype=jnp.float32, minval=-bound, maxval=bound)

    ks = jax.random.split(key, 10)
    return {
        "conv1_w": uniform(ks[0], (6, 3, 5, 5), 3 * 5 * 5),
        "conv1_b": uniform(ks[1], (6,), 3 * 5 * 5),
        "conv2_w": uniform(ks[2], (16, 6, 5, 5), 6 * 5 * 5),
        "conv2_b": uniform(ks[3], (16,), 6 * 5 * 5),
        "fc1_w":   uniform(ks[4], (120, 256), 256),
        "fc1_b":   uniform(ks[5], (120,), 256),
        "fc2_w":   uniform(ks[6], (84, 120), 120),
        "fc2_b":   uniform(ks[7], (84,), 120),
        "fc3_w":   uniform(ks[8], (1, 84), 84),
        "fc3_b":   uniform(ks[9], (1,), 84),
    }


# Pure-JAX (XLA) reference of the original torch module, for validation only.
def cnn_reference(params, x_nchw):
    x = jax.lax.conv_general_dilated(
        x_nchw, params["conv1_w"], (1, 1), "VALID",
        dimension_numbers=("NCHW", "OIHW", "NCHW"))
    x = jax.nn.relu(x + params["conv1_b"][None, :, None, None])
    x = jax.lax.reduce_window(x, -jnp.inf, jax.lax.max,
                              (1, 1, 2, 2), (1, 1, 2, 2), "VALID")
    x = jax.lax.conv_general_dilated(
        x, params["conv2_w"], (1, 1), "VALID",
        dimension_numbers=("NCHW", "OIHW", "NCHW"))
    x = jax.nn.relu(x + params["conv2_b"][None, :, None, None])
    x = jax.lax.reduce_window(x, -jnp.inf, jax.lax.max,
                              (1, 1, 2, 2), (1, 1, 2, 2), "VALID")
    x = x.reshape(x.shape[0], -1)                         # channel-major flatten
    x = jax.nn.relu(x @ params["fc1_w"].T + params["fc1_b"])
    x = jax.nn.relu(x @ params["fc2_w"].T + params["fc2_b"])
    x = jax.nn.sigmoid(x @ params["fc3_w"].T + params["fc3_b"])
    return x.reshape(-1)


if __name__ == "__main__":
    key = jax.random.PRNGKey(0)
    pkey, xkey = jax.random.split(key)
    params = init_params(pkey)
    prep = prepare_params(params)

    # Input consistent with the module: fc1 expects 256 = 16*4*4 -> 28x28 RGB.
    x = jax.random.normal(xkey, (2, 3, 28, 28), dtype=jnp.float32)

    out = cnn_forward(prep, x)
    out = jax.block_until_ready(out)

    assert out.shape == (2,)
    assert bool(jnp.all((out >= 0.0) & (out <= 1.0)))

    ref = cnn_reference(params, x)
    assert bool(jnp.max(jnp.abs(out - ref)) < 5e-2), (out, ref)

    print("KERNEL_OK")
</pallas_src>

<mosaic_0001>
module attributes {stable_mosaic.version = 11 : i64} {
  func.func @_cnn_fused_kernel(%arg0: i32, %arg1: memref<1x224x84xf32, #tpu.memory_space<vmem>>, %arg2: memref<5x84x144xbf16, #tpu.memory_space<vmem>>, %arg3: memref<1x144xf32, #tpu.memory_space<vmem>>, %arg4: memref<96x219xf32, #tpu.memory_space<vmem>>, %arg5: memref<5x138x128xbf16, #tpu.memory_space<vmem>>, %arg6: memref<1x128xf32, #tpu.memory_space<vmem>>, %arg7: memref<4x8x91xf32, #tpu.memory_space<vmem>>, %arg8: memref<4x112x120xbf16, #tpu.memory_space<vmem>>, %arg9: memref<1x120xf32, #tpu.memory_space<vmem>>, %arg10: memref<120x84xbf16, #tpu.memory_space<vmem>>, %arg11: memref<1x84xf32, #tpu.memory_space<vmem>>, %arg12: memref<1x84xf32, #tpu.memory_space<vmem>>, %arg13: memref<1x1xf32, #tpu.memory_space<vmem>>, %arg14: memref<8x1xf32, #tpu.memory_space<vmem>>) attributes {dimension_semantics = [#tpu.dimension_semantics<parallel>], iteration_bounds = array<i64: 1>, scalar_prefetch = 0 : i64, scratch_operands = 0 : i64, tpu.core_type = #tpu.core_type<tc>, window_params = [{transform_indices = @transform_0, window_bounds = array<i64: 1, 224, 84>}, {pipeline_mode = #tpu.pipeline_mode<synchronous>, transform_indices = @transform_1, window_bounds = array<i64: 5, 84, 144>}, {pipeline_mode = #tpu.pipeline_mode<synchronous>, transform_indices = @transform_2, window_bounds = array<i64: 1, 144>}, {pipeline_mode = #tpu.pipeline_mode<synchronous>, transform_indices = @transform_3, window_bounds = array<i64: 96, 219>}, {pipeline_mode = #tpu.pipeline_mode<synchronous>, transform_indices = @transform_4, window_bounds = array<i64: 5, 138, 128>}, {pipeline_mode = #tpu.pipeline_mode<synchronous>, transform_indices = @transform_5, window_bounds = array<i64: 1, 128>}, {pipeline_mode = #tpu.pipeline_mode<synchronous>, transform_indices = @transform_6, window_bounds = array<i64: 4, 8, 91>}, {pipeline_mode = #tpu.pipeline_mode<synchronous>, transform_indices = @transform_7, window_bounds = array<i64: 4, 112, 120>}, {pipeline_mode = #tpu.pipeline_mode<synchronous>, transform_indices = @transform_8, window_bounds = array<i64: 1, 120>}, {pipeline_mode = #tpu.pipeline_mode<synchronous>, transform_indices = @transform_9, window_bounds = array<i64: 120, 84>}, {pipeline_mode = #tpu.pipeline_mode<synchronous>, transform_indices = @transform_10, window_bounds = array<i64: 1, 84>}, {pipeline_mode = #tpu.pipeline_mode<synchronous>, transform_indices = @transform_11, window_bounds = array<i64: 1, 84>}, {pipeline_mode = #tpu.pipeline_mode<synchronous>, transform_indices = @transform_12, window_bounds = array<i64: 1, 1>}, {transform_indices = @transform_13, window_bounds = array<i64: 8, 1>}]} {
    %c0 = arith.constant 0 : index
    %c0_0 = arith.constant 0 : index
    %c0_1 = arith.constant 0 : index
    %0 = vector.load %arg1[%c0, %c0_0, %c0_1] : memref<1x224x84xf32, #tpu.memory_space<vmem>>, vector<1x224x84xf32>
    %1 = vector.shape_cast %0 : vector<1x224x84xf32> to vector<224x84xf32>
    %2 = vector.extract_strided_slice %1 {offsets = [0, 0], sizes = [220, 84], strides = [1, 1]} : vector<224x84xf32> to vector<220x84xf32>
    %3 = arith.truncf %2 : vector<220x84xf32> to vector<220x84xbf16>
    %c0_2 = arith.constant 0 : index
    %c0_3 = arith.constant 0 : index
    %c0_4 = arith.constant 0 : index
    %4 = vector.load %arg2[%c0_2, %c0_3, %c0_4] : memref<5x84x144xbf16, #tpu.memory_space<vmem>>, vector<1x84x144xbf16>
    %5 = vector.shape_cast %4 : vector<1x84x144xbf16> to vector<84x144xbf16>
    %cst = arith.constant dense<0.000000e+00> : vector<220x144xf32>
    %6 = tpu.matmul %3, %5, %cst {dimension_numbers = #tpu.dot_dimension_numbers<[1], [0], [0], [1], [0, 0, 1, 1], [], []>} : vector<220x84xbf16>, vector<84x144xbf16>, vector<220x144xf32> -> vector<220x144xf32>
    %7 = vector.extract_strided_slice %1 {offsets = [1, 0], sizes = [220, 84], strides = [1, 1]} : vector<224x84xf32> to vector<220x84xf32>
    %8 = arith.truncf %7 : vector<220x84xf32> to vector<220x84xbf16>
    %c1 = arith.constant 1 : index
    %c0_5 = arith.constant 0 : index
    %c0_6 = arith.constant 0 : index
    %9 = vector.load %arg2[%c1, %c0_5, %c0_6] : memref<5x84x144xbf16, #tpu.memory_space<vmem>>, vector<1x84x144xbf16>
    %10 = vector.shape_cast %9 : vector<1x84x144xbf16> to vector<84x144xbf16>
    %cst_7 = arith.constant dense<0.000000e+00> : vector<220x144xf32>
    %11 = tpu.matmul %8, %10, %cst_7 {dimension_numbers = #tpu.dot_dimension_numbers<[1], [0], [0], [1], [0, 0, 1, 1], [], []>} : vector<220x84xbf16>, vector<84x144xbf16>, vector<220x144xf32> -> vector<220x144xf32>
    %12 = arith.addf %6, %11 : vector<220x144xf32>
    %13 = vector.extract_strided_slice %1 {offsets = [2, 0], sizes = [220, 84], strides = [1, 1]} : vector<224x84xf32> to vector<220x84xf32>
    %14 = arith.truncf %13 : vector<220x84xf32> to vector<220x84xbf16>
    %c2 = arith.constant 2 : index
    %c0_8 = arith.constant 0 : index
    %c0_9 = arith.constant 0 : index
    %15 = vector.load %arg2[%c2, %c0_8, %c0_9] : memref<5x84x144xbf16, #tpu.memory_space<vmem>>, vector<1x84x144xbf16>
    %16 = vector.shape_cast %15 : vector<1x84x144xbf16> to vector<84x144xbf16>
    %cst_10 = arith.constant dense<0.000000e+00> : vector<220x144xf32>
    %17 = tpu.matmul %14, %16, %cst_10 {dimension_numbers = #tpu.dot_dimension_numbers<[1], [0], [0], [1], [0, 0, 1, 1], [], []>} : vector<220x84xbf16>, vector<84x144xbf16>, vector<220x144xf32> -> vector<220x144xf32>
    %18 = arith.addf %12, %17 : vector<220x144xf32>
    %19 = vector.extract_strided_slice %1 {offsets = [3, 0], sizes = [220, 84], strides = [1, 1]} : vector<224x84xf32> to vector<220x84xf32>
    %20 = arith.truncf %19 : vector<220x84xf32> to vector<220x84xbf16>
    %c3 = arith.constant 3 : index
    %c0_11 = arith.constant 0 : index
    %c0_12 = arith.constant 0 : index
    %21 = vector.load %arg2[%c3, %c0_11, %c0_12] : memref<5x84x144xbf16, #tpu.memory_space<vmem>>, vector<1x84x144xbf16>
    %22 = vector.shape_cast %21 : vector<1x84x144xbf16> to vector<84x144xbf16>
    %cst_13 = arith.constant dense<0.000000e+00> : vector<220x144xf32>
    %23 = tpu.matmul %20, %22, %cst_13 {dimension_numbers = #tpu.dot_dimension_numbers<[1], [0], [0], [1], [0, 0, 1, 1], [], []>} : vector<220x84xbf16>, vector<84x144xbf16>, vector<220x144xf32> -> vector<220x144xf32>
    %24 = arith.addf %18, %23 : vector<220x144xf32>
    %25 = vector.extract_strided_slice %1 {offsets = [4, 0], sizes = [220, 84], strides = [1, 1]} : vector<224x84xf32> to vector<220x84xf32>
    %26 = arith.truncf %25 : vector<220x84xf32> to vector<220x84xbf16>
    %c4 = arith.constant 4 : index
    %c0_14 = arith.constant 0 : index
    %c0_15 = arith.constant 0 : index
    %27 = vector.load %arg2[%c4, %c0_14, %c0_15] : memref<5x84x144xbf16, #tpu.memory_space<vmem>>, vector<1x84x144xbf16>
    %28 = vector.shape_cast %27 : vector<1x84x144xbf16> to vector<84x144xbf16>
    %cst_16 = arith.constant dense<0.000000e+00> : vector<220x144xf32>
    %29 = tpu.matmul %26, %28, %cst_16 {dimension_numbers = #tpu.dot_dimension_numbers<[1], [0], [0], [1], [0, 0, 1, 1], [], []>} : vector<220x84xbf16>, vector<84x144xbf16>, vector<220x144xf32> -> vector<220x144xf32>
    %30 = arith.addf %24, %29 : vector<220x144xf32>
    %c0_17 = arith.constant 0 : index
    %c0_18 = arith.constant 0 : index
    %31 = vector.load %arg3[%c0_17, %c0_18] : memref<1x144xf32, #tpu.memory_space<vmem>>, vector<1x144xf32>
    %32 = vector.broadcast %31 : vector<1x144xf32> to vector<220x144xf32>
    %33 = arith.addf %30, %32 : vector<220x144xf32>
    %cst_19 = arith.constant 0.000000e+00 : f32
    %34 = vector.broadcast %cst_19 : f32 to vector<220x144xf32>
    %35 = arith.maximumf %33, %34 : vector<220x144xf32>
    %36 = vector.extract_strided_slice %35 {offsets = [0, 0], sizes = [220, 138], strides = [1, 1]} : vector<220x144xf32> to vector<220x138xf32>
    %37 = vector.extract_strided_slice %35 {offsets = [0, 6], sizes = [220, 138], strides = [1, 1]} : vector<220x144xf32> to vector<220x138xf32>
    %38 = arith.maximumf %36, %37 : vector<220x138xf32>
    %39 = vector.extract_strided_slice %38 {offsets = [0, 0], sizes = [219, 138], strides = [1, 1]} : vector<220x138xf32> to vector<219x138xf32>
    %40 = vector.extract_strided_slice %38 {offsets = [1, 0], sizes = [219, 138], strides = [1, 1]} : vector<220x138xf32> to vector<219x138xf32>
    %41 = arith.maximumf %39, %40 : vector<219x138xf32>
    %c0_20 = arith.constant 0 : index
    %c0_21 = arith.constant 0 : index
    %42 = vector.load %arg4[%c0_20, %c0_21] : memref<96x219xf32, #tpu.memory_space<vmem>>, vector<96x219xf32>
    %cst_22 = arith.constant dense<0.000000e+00> : vector<96x138xf32>
    %43 = tpu.matmul %42, %41, %cst_22 {dimension_numbers = #tpu.dot_dimension_numbers<[1], [0], [0], [1], [0, 0, 1, 1], [], []>} : vector<96x219xf32>, vector<219x138xf32>, vector<96x138xf32> -> vector<96x138xf32>
    %44 = vector.extract_strided_slice %43 {offsets = [0, 0], sizes = [92, 138], strides = [1, 1]} : vector<96x138xf32> to vector<92x138xf32>
    %45 = arith.truncf %44 : vector<92x138xf32> to vector<92x138xbf16>
    %c0_23 = arith.constant 0 : index
    %c0_24 = arith.constant 0 : index
    %c0_25 = arith.constant 0 : index
    %46 = vector.load %arg5[%c0_23, %c0_24, %c0_25] : memref<5x138x128xbf16, #tpu.memory_space<vmem>>, vector<1x138x128xbf16>
    %47 = vector.shape_cast %46 : vector<1x138x128xbf16> to vector<138x128xbf16>
    %cst_26 = arith.constant dense<0.000000e+00> : vector<92x128xf32>
    %48 = tpu.matmul %45, %47, %cst_26 {dimension_numbers = #tpu.dot_dimension_numbers<[1], [0], [0], [1], [0, 0, 1, 1], [], []>} : vector<92x138xbf16>, vector<138x128xbf16>, vector<92x128xf32> -> vector<92x128xf32>
    %49 = vector.extract_strided_slice %43 {offsets = [1, 0], sizes = [92, 138], strides = [1, 1]} : vector<96x138xf32> to vector<92x138xf32>
    %50 = arith.truncf %49 : vector<92x138xf32> to vector<92x138xbf16>
    %c1_27 = arith.constant 1 : index
    %c0_28 = arith.constant 0 : index
    %c0_29 = arith.constant 0 : index
    %51 = vector.load %arg5[%c1_27, %c0_28, %c0_29] : memref<5x138x128xbf16, #tpu.memory_space<vmem>>, vector<1x138x128xbf16>
    %52 = vector.shape_cast %51 : vector<1x138x128xbf16> to vector<138x128xbf16>
    %cst_30 = arith.constant dense<0.000000e+00> : vector<92x128xf32>
    %53 = tpu.matmul %50, %52, %cst_30 {dimension_numbers = #tpu.dot_dimension_numbers<[1], [0], [0], [1], [0, 0, 1, 1], [], []>} : vector<92x138xbf16>, vector<138x128xbf16>, vector<92x128xf32> -> vector<92x128xf32>
    %54 = arith.addf %48, %53 : vector<92x128xf32>
    %55 = vector.extract_strided_slice %43 {offsets = [2, 0], sizes = [92, 138], strides = [1, 1]} : vector<96x138xf32> to vector<92x138xf32>
    %56 = arith.truncf %55 : vector<92x138xf32> to vector<92x138xbf16>
    %c2_31 = arith.constant 2 : index
    %c0_32 = arith.constant 0 : index
    %c0_33 = arith.constant 0 : index
    %57 = vector.load %arg5[%c2_31, %c0_32, %c0_33] : memref<5x138x128xbf16, #tpu.memory_space<vmem>>, vector<1x138x128xbf16>
    %58 = vector.shape_cast %57 : vector<1x138x128xbf16> to vector<138x128xbf16>
    %cst_34 = arith.constant dense<0.000000e+00> : vector<92x128xf32>
    %59 = tpu.matmul %56, %58, %cst_34 {dimension_numbers = #tpu.dot_dimension_numbers<[1], [0], [0], [1], [0, 0, 1, 1], [], []>} : vector<92x138xbf16>, vector<138x128xbf16>, vector<92x128xf32> -> vector<92x128xf32>
    %60 = arith.addf %54, %59 : vector<92x128xf32>
    %61 = vector.extract_strided_slice %43 {offsets = [3, 0], sizes = [92, 138], strides = [1, 1]} : vector<96x138xf32> to vector<92x138xf32>
    %62 = arith.truncf %61 : vector<92x138xf32> to vector<92x138xbf16>
    %c3_35 = arith.constant 3 : index
    %c0_36 = arith.constant 0 : index
    %c0_37 = arith.constant 0 : index
    %63 = vector.load %arg5[%c3_35, %c0_36, %c0_37] : memref<5x138x128xbf16, #tpu.memory_space<vmem>>, vector<1x138x128xbf16>
    %64 = vector.shape_cast %63 : vector<1x138x128xbf16> to vector<138x128xbf16>
    %cst_38 = arith.constant dense<0.000000e+00> : vector<92x128xf32>
    %65 = tpu.matmul %62, %64, %cst_38 {dimension_numbers = #tpu.dot_dimension_numbers<[1], [0], [0], [1], [0, 0, 1, 1], [], []>} : vector<92x138xbf16>, vector<138x128xbf16>, vector<92x128xf32> -> vector<92x128xf32>
    %66 = arith.addf %60, %65 : vector<92x128xf32>
    %67 = vector.extract_strided_slice %43 {offsets = [4, 0], sizes = [92, 138], strides = [1, 1]} : vector<96x138xf32> to vector<92x138xf32>
    %68 = arith.truncf %67 : vector<92x138xf32> to vector<92x138xbf16>
    %c4_39 = arith.constant 4 : index
    %c0_40 = arith.constant 0 : index
    %c0_41 = arith.constant 0 : index
    %69 = vector.load %arg5[%c4_39, %c0_40, %c0_41] : memref<5x138x128xbf16, #tpu.memory_space<vmem>>, vector<1x138x128xbf16>
    %70 = vector.shape_cast %69 : vector<1x138x128xbf16> to vector<138x128xbf16>
    %cst_42 = arith.constant dense<0.000000e+00> : vector<92x128xf32>
    %71 = tpu.matmul %68, %70, %cst_42 {dimension_numbers = #tpu.dot_dimension_numbers<[1], [0], [0], [1], [0, 0, 1, 1], [], []>} : vector<92x138xbf16>, vector<138x128xbf16>, vector<92x128xf32> -> vector<92x128xf32>
    %72 = arith.addf %66, %71 : vector<92x128xf32>
    %c0_43 = arith.constant 0 : index
    %c0_44 = arith.constant 0 : index
    %73 = vector.load %arg6[%c0_43, %c0_44] : memref<1x128xf32, #tpu.memory_space<vmem>>, vector<1x128xf32>
    %74 = vector.broadcast %73 : vector<1x128xf32> to vector<92x128xf32>
    %75 = arith.addf %72, %74 : vector<92x128xf32>
    %cst_45 = arith.constant 0.000000e+00 : f32
    %76 = vector.broadcast %cst_45 : f32 to vector<92x128xf32>
    %77 = arith.maximumf %75, %76 : vector<92x128xf32>
    %78 = vector.extract_strided_slice %77 {offsets = [0, 0], sizes = [92, 112], strides = [1, 1]} : vector<92x128xf32> to vector<92x112xf32>
    %79 = vector.extract_strided_slice %77 {offsets = [0, 16], sizes = [92, 112], strides = [1, 1]} : vector<92x128xf32> to vector<92x112xf32>
    %80 = arith.maximumf %78, %79 : vector<92x112xf32>
    %81 = vector.extract_strided_slice %80 {offsets = [0, 0], sizes = [91, 112], strides = [1, 1]} : vector<92x112xf32> to vector<91x112xf32>
    %82 = vector.extract_strided_slice %80 {offsets = [1, 0], sizes = [91, 112], strides = [1, 1]} : vector<92x112xf32> to vector<91x112xf32>
    %83 = arith.maximumf %81, %82 : vector<91x112xf32>
    %cst_46 = arith.constant 0.000000e+00 : f32
    %84 = vector.broadcast %cst_46 : f32 to vector<8x120xf32>
    %c0_47 = arith.constant 0 : index
    %c0_48 = arith.constant 0 : index
    %c0_49 = arith.constant 0 : index
    %85 = vector.load %arg7[%c0_47, %c0_48, %c0_49] : memref<4x8x91xf32, #tpu.memory_space<vmem>>, vector<1x8x91xf32>
    %86 = vector.shape_cast %85 : vector<1x8x91xf32> to vector<8x91xf32>
    %cst_50 = arith.constant dense<0.000000e+00> : vector<8x112xf32>
    %87 = tpu.matmul %86, %83, %cst_50 {dimension_numbers = #tpu.dot_dimension_numbers<[1], [0], [0], [1], [0, 0, 1, 1], [], []>} : vector<8x91xf32>, vector<91x112xf32>, vector<8x112xf32> -> vector<8x112xf32>
    %88 = arith.truncf %87 : vector<8x112xf32> to vector<8x112xbf16>
    %c0_51 = arith.constant 0 : index
    %c0_52 = arith.constant 0 : index
    %c0_53 = arith.constant 0 : index
    %89 = vector.load %arg8[%c0_51, %c0_52, %c0_53] : memref<4x112x120xbf16, #tpu.memory_space<vmem>>, vector<1x112x120xbf16>
    %90 = vector.shape_cast %89 : vector<1x112x120xbf16> to vector<112x120xbf16>
    %cst_54 = arith.constant dense<0.000000e+00> : vector<8x120xf32>
    %91 = tpu.matmul %88, %90, %cst_54 {dimension_numbers = #tpu.dot_dimension_numbers<[1], [0], [0], [1], [0, 0, 1, 1], [], []>} : vector<8x112xbf16>, vector<112x120xbf16>, vector<8x120xf32> -> vector<8x120xf32>
    %92 = arith.addf %84, %91 : vector<8x120xf32>
    %c1_55 = arith.constant 1 : index
    %c0_56 = arith.constant 0 : index
    %c0_57 = arith.constant 0 : index
    %93 = vector.load %arg7[%c1_55, %c0_56, %c0_57] : memref<4x8x91xf32, #tpu.memory_space<vmem>>, vector<1x8x91xf32>
    %94 = vector.shape_cast %93 : vector<1x8x91xf32> to vector<8x91xf32>
    %cst_58 = arith.constant dense<0.000000e+00> : vector<8x112xf32>
    %95 = tpu.matmul %94, %83, %cst_58 {dimension_numbers = #tpu.dot_dimension_numbers<[1], [0], [0], [1], [0, 0, 1, 1], [], []>} : vector<8x91xf32>, vector<91x112xf32>, vector<8x112xf32> -> vector<8x112xf32>
    %96 = arith.truncf %95 : vector<8x112xf32> to vector<8x112xbf16>
    %c1_59 = arith.constant 1 : index
    %c0_60 = arith.constant 0 : index
    %c0_61 = arith.constant 0 : index
    %97 = vector.load %arg8[%c1_59, %c0_60, %c0_61] : memref<4x112x120xbf16, #tpu.memory_space<vmem>>, vector<1x112x120xbf16>
    %98 = vector.shape_cast %97 : vector<1x112x120xbf16> to vector<112x120xbf16>
    %cst_62 = arith.constant dense<0.000000e+00> : vector<8x120xf32>
    %99 = tpu.matmul %96, %98, %cst_62 {dimension_numbers = #tpu.dot_dimension_numbers<[1], [0], [0], [1], [0, 0, 1, 1], [], []>} : vector<8x112xbf16>, vector<112x120xbf16>, vector<8x120xf32> -> vector<8x120xf32>
    %100 = arith.addf %92, %99 : vector<8x120xf32>
    %c2_63 = arith.constant 2 : index
    %c0_64 = arith.constant 0 : index
    %c0_65 = arith.constant 0 : index
    %101 = vector.load %arg7[%c2_63, %c0_64, %c0_65] : memref<4x8x91xf32, #tpu.memory_space<vmem>>, vector<1x8x91xf32>
    %102 = vector.shape_cast %101 : vector<1x8x91xf32> to vector<8x91xf32>
    %cst_66 = arith.constant dense<0.000000e+00> : vector<8x112xf32>
    %103 = tpu.matmul %102, %83, %cst_66 {dimension_numbers = #tpu.dot_dimension_numbers<[1], [0], [0], [1], [0, 0, 1, 1], [], []>} : vector<8x91xf32>, vector<91x112xf32>, vector<8x112xf32> -> vector<8x112xf32>
    %104 = arith.truncf %103 : vector<8x112xf32> to vector<8x112xbf16>
    %c2_67 = arith.constant 2 : index
    %c0_68 = arith.constant 0 : index
    %c0_69 = arith.constant 0 : index
    %105 = vector.load %arg8[%c2_67, %c0_68, %c0_69] : memref<4x112x120xbf16, #tpu.memory_space<vmem>>, vector<1x112x120xbf16>
    %106 = vector.shape_cast %105 : vector<1x112x120xbf16> to vector<112x120xbf16>
    %cst_70 = arith.constant dense<0.000000e+00> : vector<8x120xf32>
    %107 = tpu.matmul %104, %106, %cst_70 {dimension_numbers = #tpu.dot_dimension_numbers<[1], [0], [0], [1], [0, 0, 1, 1], [], []>} : vector<8x112xbf16>, vector<112x120xbf16>, vector<8x120xf32> -> vector<8x120xf32>
    %108 = arith.addf %100, %107 : vector<8x120xf32>
    %c3_71 = arith.constant 3 : index
    %c0_72 = arith.constant 0 : index
    %c0_73 = arith.constant 0 : index
    %109 = vector.load %arg7[%c3_71, %c0_72, %c0_73] : memref<4x8x91xf32, #tpu.memory_space<vmem>>, vector<1x8x91xf32>
    %110 = vector.shape_cast %109 : vector<1x8x91xf32> to vector<8x91xf32>
    %cst_74 = arith.constant dense<0.000000e+00> : vector<8x112xf32>
    %111 = tpu.matmul %110, %83, %cst_74 {dimension_numbers = #tpu.dot_dimension_numbers<[1], [0], [0], [1], [0, 0, 1, 1], [], []>} : vector<8x91xf32>, vector<91x112xf32>, vector<8x112xf32> -> vector<8x112xf32>
    %112 = arith.truncf %111 : vector<8x112xf32> to vector<8x112xbf16>
    %c3_75 = arith.constant 3 : index
    %c0_76 = arith.constant 0 : index
    %c0_77 = arith.constant 0 : index
    %113 = vector.load %arg8[%c3_75, %c0_76, %c0_77] : memref<4x112x120xbf16, #tpu.memory_space<vmem>>, vector<1x112x120xbf16>
    %114 = vector.shape_cast %113 : vector<1x112x120xbf16> to vector<112x120xbf16>
    %cst_78 = arith.constant dense<0.000000e+00> : vector<8x120xf32>
    %115 = tpu.matmul %112, %114, %cst_78 {dimension_numbers = #tpu.dot_dimension_numbers<[1], [0], [0], [1], [0, 0, 1, 1], [], []>} : vector<8x112xbf16>, vector<112x120xbf16>, vector<8x120xf32> -> vector<8x120xf32>
    %116 = arith.addf %108, %115 : vector<8x120xf32>
    %c0_79 = arith.constant 0 : index
    %c0_80 = arith.constant 0 : index
    %117 = vector.load %arg9[%c0_79, %c0_80] : memref<1x120xf32, #tpu.memory_space<vmem>>, vector<1x120xf32>
    %118 = vector.broadcast %117 : vector<1x120xf32> to vector<8x120xf32>
    %119 = arith.addf %116, %118 : vector<8x120xf32>
    %cst_81 = arith.constant 0.000000e+00 : f32
    %120 = vector.broadcast %cst_81 : f32 to vector<8x120xf32>
    %121 = arith.maximumf %119, %120 : vector<8x120xf32>
    %122 = arith.truncf %121 : vector<8x120xf32> to vector<8x120xbf16>
    %c0_82 = arith.constant 0 : index
    %c0_83 = arith.constant 0 : index
    %123 = vector.load %arg10[%c0_82, %c0_83] : memref<120x84xbf16, #tpu.memory_space<vmem>>, vector<120x84xbf16>
    %cst_84 = arith.constant dense<0.000000e+00> : vector<8x84xf32>
    %124 = tpu.matmul %122, %123, %cst_84 {dimension_numbers = #tpu.dot_dimension_numbers<[1], [0], [0], [1], [0, 0, 1, 1], [], []>} : vector<8x120xbf16>, vector<120x84xbf16>, vector<8x84xf32> -> vector<8x84xf32>
    %c0_85 = arith.constant 0 : index
    %c0_86 = arith.constant 0 : index
    %125 = vector.load %arg11[%c0_85, %c0_86] : memref<1x84xf32, #tpu.memory_space<vmem>>, vector<1x84xf32>
    %126 = vector.broadcast %125 : vector<1x84xf32> to vector<8x84xf32>
    %127 = arith.addf %124, %126 : vector<8x84xf32>
    %cst_87 = arith.constant 0.000000e+00 : f32
    %128 = vector.broadcast %cst_87 : f32 to vector<8x84xf32>
    %129 = arith.maximumf %127, %128 : vector<8x84xf32>
    %c0_88 = arith.constant 0 : index
    %c0_89 = arith.constant 0 : index
    %130 = vector.load %arg12[%c0_88, %c0_89] : memref<1x84xf32, #tpu.memory_space<vmem>>, vector<1x84xf32>
    %131 = vector.broadcast %130 : vector<1x84xf32> to vector<8x84xf32>
    %132 = arith.mulf %129, %131 : vector<8x84xf32>
    %cst_90 = arith.constant dense<0.000000e+00> : vector<8xf32>
    %133 = vector.multi_reduction <add>, %132, %cst_90 [1] : vector<8x84xf32> to vector<8xf32>
    %134 = vector.shape_cast %133 : vector<8xf32> to vector<8x1xf32>
    %c0_91 = arith.constant 0 : index
    %c0_92 = arith.constant 0 : index
    %135 = vector.load %arg13[%c0_91, %c0_92] : memref<1x1xf32, #tpu.memory_space<vmem>>, vector<1x1xf32>
    %136 = vector.broadcast %135 : vector<1x1xf32> to vector<8x1xf32>
    %137 = arith.addf %134, %136 : vector<8x1xf32>
    %cst_93 = arith.constant 0.000000e+00 : f32
    %138 = vector.broadcast %cst_93 : f32 to vector<8x1xf32>
    %139 = arith.subf %138, %137 : vector<8x1xf32>
    %140 = math.exp %139 : vector<8x1xf32>
    %cst_94 = arith.constant 1.000000e+00 : f32
    %141 = vector.broadcast %cst_94 : f32 to vector<8x1xf32>
    %142 = arith.addf %141, %140 : vector<8x1xf32>
    %cst_95 = arith.constant 1.000000e+00 : f32
    %143 = vector.broadcast %cst_95 : f32 to vector<8x1xf32>
    %144 = arith.divf %143, %142 : vector<8x1xf32>
    %c0_96 = arith.constant 0 : index
    %c0_97 = arith.constant 0 : index
    %145 = vector.load %arg14[%c0_96, %c0_97] : memref<8x1xf32, #tpu.memory_space<vmem>>, vector<8x1xf32>
    tpu.vector_store %arg14[%c0_96, %c0_97], %144 {strides = array<i32>} : memref<8x1xf32, #tpu.memory_space<vmem>>, vector<8x1xf32>,
    return
  }
  func.func @transform_0(%arg0: i32) -> (i32, i32, i32) {
    %c0_i32 = arith.constant 0 : i32
    %c0_i32_0 = arith.constant 0 : i32
    %c0_i32_1 = arith.constant 0 : i32
    return %arg0, %c0_i32, %c0_i32_0 : i32, i32, i32
  }
  func.func @transform_1(%arg0: i32) -> (i32, i32, i32) {
    %c0_i32 = arith.constant 0 : i32
    %c0_i32_0 = arith.constant 0 : i32
    %c0_i32_1 = arith.constant 0 : i32
    %c0_i32_2 = arith.constant 0 : i32
    return %c0_i32, %c0_i32_0, %c0_i32_1 : i32, i32, i32
  }
  func.func @transform_2(%arg0: i32) -> (i32, i32) {
    %c0_i32 = arith.constant 0 : i32
    %c0_i32_0 = arith.constant 0 : i32
    %c0_i32_1 = arith.constant 0 : i32
    return %c0_i32, %c0_i32_0 : i32, i32
  }
  func.func @transform_3(%arg0: i32) -> (i32, i32) {
    %c0_i32 = arith.constant 0 : i32
    %c0_i32_0 = arith.constant 0 : i32
    %c0_i32_1 = arith.constant 0 : i32
    return %c0_i32, %c0_i32_0 : i32, i32
  }
  func.func @transform_4(%arg0: i32) -> (i32, i32, i32) {
    %c0_i32 = arith.constant 0 : i32
    %c0_i32_0 = arith.constant 0 : i32
    %c0_i32_1 = arith.constant 0 : i32
    %c0_i32_2 = arith.constant 0 : i32
    return %c0_i32, %c0_i32_0, %c0_i32_1 : i32, i32, i32
  }
  func.func @transform_5(%arg0: i32) -> (i32, i32) {
    %c0_i32 = arith.constant 0 : i32
    %c0_i32_0 = arith.constant 0 : i32
    %c0_i32_1 = arith.constant 0 : i32
    return %c0_i32, %c0_i32_0 : i32, i32
  }
  func.func @transform_6(%arg0: i32) -> (i32, i32, i32) {
    %c0_i32 = arith.constant 0 : i32
    %c0_i32_0 = arith.constant 0 : i32
    %c0_i32_1 = arith.constant 0 : i32
    %c0_i32_2 = arith.constant 0 : i32
    return %c0_i32, %c0_i32_0, %c0_i32_1 : i32, i32, i32
  }
  func.func @transform_7(%arg0: i32) -> (i32, i32, i32) {
    %c0_i32 = arith.constant 0 : i32
    %c0_i32_0 = arith.constant 0 : i32
    %c0_i32_1 = arith.constant 0 : i32
    %c0_i32_2 = arith.constant 0 : i32
    return %c0_i32, %c0_i32_0, %c0_i32_1 : i32, i32, i32
  }
  func.func @transform_8(%arg0: i32) -> (i32, i32) {
    %c0_i32 = arith.constant 0 : i32
    %c0_i32_0 = arith.constant 0 : i32
    %c0_i32_1 = arith.constant 0 : i32
    return %c0_i32, %c0_i32_0 : i32, i32
  }
  func.func @transform_9(%arg0: i32) -> (i32, i32) {
    %c0_i32 = arith.constant 0 : i32
    %c0_i32_0 = arith.constant 0 : i32
    %c0_i32_1 = arith.constant 0 : i32
    return %c0_i32, %c0_i32_0 : i32, i32
  }
  func.func @transform_10(%arg0: i32) -> (i32, i32) {
    %c0_i32 = arith.constant 0 : i32
    %c0_i32_0 = arith.constant 0 : i32
    %c0_i32_1 = arith.constant 0 : i32
    return %c0_i32, %c0_i32_0 : i32, i32
  }
  func.func @transform_11(%arg0: i32) -> (i32, i32) {
    %c0_i32 = arith.constant 0 : i32
    %c0_i32_0 = arith.constant 0 : i32
    %c0_i32_1 = arith.constant 0 : i32
    return %c0_i32, %c0_i32_0 : i32, i32
  }
  func.func @transform_12(%arg0: i32) -> (i32, i32) {
    %c0_i32 = arith.constant 0 : i32
    %c0_i32_0 = arith.constant 0 : i32
    %c0_i32_1 = arith.constant 0 : i32
    return %c0_i32, %c0_i32_0 : i32, i32
  }
  func.func @transform_13(%arg0: i32) -> (i32, i32) {
    %c0_i32 = arith.constant 0 : i32
    %c0_i32_0 = arith.constant 0 : i32
    return %arg0, %c0_i32 : i32, i32
  }
}

</mosaic_0001>

<llo_original>
// kernel: cnn_forward.1
$region0: #{cnn_forward.1}
  #allocation0 [shape = 'u32[]', space=smem, size = 0x4, offset = 0x4, fixed_abs, tag = 'smem constant byte address 0x4 - core index']
  #allocation1 [shape = 'u32[72,128]{1,0:T(1,128)}', space=vmem, size = 0x9000, scoped, tag = 'internal scratch']
  #allocation2 [shape = 'f32[1,1]{1,0:T(1,128)S(1)}', space=vmem, size = 0x200, scoped, tag = 'scoped memory for cnn_forward.1']
  %s0 = inlined_call_operand.vmem [shape: f32[1,224,84], index: 0, kind: input, shape index: {}]
  %s1 = inlined_call_operand.vmem [shape: bf16[5,84,144], index: 1, kind: input, shape index: {}]
  %s2 = inlined_call_operand.vmem [shape: f32[1,144], index: 2, kind: input, shape index: {}]
  %s3 = inlined_call_operand.vmem [shape: f32[96,219], index: 3, kind: input, shape index: {}]
  %s4 = inlined_call_operand.vmem [shape: bf16[5,138,128], index: 4, kind: input, shape index: {}]
  %s5 = inlined_call_operand.vmem [shape: f32[1,128], index: 5, kind: input, shape index: {}]
  %s6 = inlined_call_operand.vmem [shape: f32[4,8,91], index: 6, kind: input, shape index: {}]
  %s7 = inlined_call_operand.vmem [shape: bf16[4,112,120], index: 7, kind: input, shape index: {}]
  %s8 = inlined_call_operand.vmem [shape: f32[1,120], index: 8, kind: input, shape index: {}]
  %s9 = inlined_call_operand.vmem [shape: bf16[120,84], index: 9, kind: input, shape index: {}]
  %s10 = inlined_call_operand.vmem [shape: f32[1,84], index: 10, kind: input, shape index: {}]
  %s11 = inlined_call_operand.vmem [shape: f32[1,84], index: 11, kind: input, shape index: {}]
  %s12 = inlined_call_operand.<no memory space> [shape: f32[1,1], index: 12, kind: input, shape index: {}]
  %s13 = inlined_call_operand.vmem [shape: f32[8,1], index: 13, kind: output, shape index: {}]
  %s14 = sld [smem:[#allocation0]]
  $region62: #{cnn_forward.1} parent=0
    _
  %s16 = ssub.s32 1, %s14
  %s17 = scalar_select 0, %s16, %s14
  %v18 = vstv %s12
  %19 = vst [vmem:[#allocation2] sm:$0x1] %v18
  // Predicated region
  $region2: #{cnn_forward.1} parent=0 // pred_check
    _
  $region3: #{cnn_forward.1} parent=0 // pred_check_branch
    %21 = sbr.rel (0) target = $region5
  $region4: #{cnn_forward.1} parent=0 // pred_region
    _
  $region5: #{cnn_forward.1} parent=0 // pred_fallthru
    _
  // Predicated region
  $region6: #{cnn_forward.1} parent=0 // pred_check
    _
  $region7: #{cnn_forward.1} parent=0 // pred_check_branch
    %23 = sbr.rel (0) target = $region9
  $region8: #{cnn_forward.1} parent=0 // pred_region
    _
  $region9: #{cnn_forward.1} parent=0 // pred_fallthru
    _
  // Predicated region
  $region10: #{cnn_forward.1} parent=0 // pred_check
    _
  $region11: #{cnn_forward.1} parent=0 // pred_check_branch
    %25 = sbr.rel (0) target = $region13
  $region12: #{cnn_forward.1} parent=0 // pred_region
    _
  $region13: #{cnn_forward.1} parent=0 // pred_fallthru
    _
  // Predicated region
  $region14: #{cnn_forward.1} parent=0 // pred_check
    _
  $region15: #{cnn_forward.1} parent=0 // pred_check_branch
    %27 = sbr.rel (0) target = $region17
  $region16: #{cnn_forward.1} parent=0 // pred_region
    _
  $region17: #{cnn_forward.1} parent=0 // pred_fallthru
    _
  // Predicated region
  $region18: #{cnn_forward.1} parent=0 // pred_check
    _
  $region19: #{cnn_forward.1} parent=0 // pred_check_branch
    %29 = sbr.rel (0) target = $region21
  $region20: #{cnn_forward.1} parent=0 // pred_region
    _
  $region21: #{cnn_forward.1} parent=0 // pred_fallthru
    _
  // Predicated region
  $region22: #{cnn_forward.1} parent=0 // pred_check
    _
  $region23: #{cnn_forward.1} parent=0 // pred_check_branch
    %31 = sbr.rel (0) target = $region25
  $region24: #{cnn_forward.1} parent=0 // pred_region
    _
  $region25: #{cnn_forward.1} parent=0 // pred_fallthru
    _
  // Predicated region
  $region26: #{cnn_forward.1} parent=0 // pred_check
    _
  $region27: #{cnn_forward.1} parent=0 // pred_check_branch
    %33 = sbr.rel (0) target = $region29
  $region28: #{cnn_forward.1} parent=0 // pred_region
    _
  $region29: #{cnn_forward.1} parent=0 // pred_fallthru
    _
  // Predicated region
  $region30: #{cnn_forward.1} parent=0 // pred_check
    _
  $region31: #{cnn_forward.1} parent=0 // pred_check_branch
    %35 = sbr.rel (0) target = $region33
  $region32: #{cnn_forward.1} parent=0 // pred_region
    _
  $region33: #{cnn_forward.1} parent=0 // pred_fallthru
    _
  // Predicated region
  $region34: #{cnn_forward.1} parent=0 // pred_check
    _
  $region35: #{cnn_forward.1} parent=0 // pred_check_branch
    %37 = sbr.rel (0) target = $region37
  $region36: #{cnn_forward.1} parent=0 // pred_region
    _
  $region37: #{cnn_forward.1} parent=0 // pred_fallthru
    _
  // Predicated region
  $region38: #{cnn_forward.1} parent=0 // pred_check
    _
  $region39: #{cnn_forward.1} parent=0 // pred_check_branch
    %39 = sbr.rel (0) target = $region41
  $region40: #{cnn_forward.1} parent=0 // pred_region
    _
  $region41: #{cnn_forward.1} parent=0 // pred_fallthru
    _
  // Predicated region
  $region42: #{cnn_forward.1} parent=0 // pred_check
    _
  $region43: #{cnn_forward.1} parent=0 // pred_check_branch
    %41 = sbr.rel (0) target = $region45
  $region44: #{cnn_forward.1} parent=0 // pred_region
    _
  $region45: #{cnn_forward.1} parent=0 // pred_fallthru
    _
  // Predicated region
  $region46: #{cnn_forward.1} parent=0 // pred_check
    _
  $region47: #{cnn_forward.1} parent=0 // pred_check_branch
    %43 = sbr.rel (0) target = $region49
  $region48: #{cnn_forward.1} parent=0 // pred_region
    _
  $region49: #{cnn_forward.1} parent=0 // pred_fallthru
    _
  // Predicated region
  $region50: #{cnn_forward.1} parent=0 // pred_check
    _
  $region51: #{cnn_forward.1} parent=0 // pred_check_branch
    %45 = sbr.rel (0) target = $region53
  $region52: #{cnn_forward.1} parent=0 // pred_region
    _
  $region53: #{cnn_forward.1} parent=0 // pred_fallthru
    _
  %v47 = vld [vmem:[%s0] sm:$0xff]
  %v48 = vld [vmem:[%s0 + $0x8] sm:$0xff]
  %v49 = vld [vmem:[%s0 + $0x10] sm:$0xff]
  %v50 = vld [vmem:[%s0 + $0x18] sm:$0xff]
  %v51 = vld [vmem:[%s0 + $0x20] sm:$0xff]
  %v52 = vld [vmem:[%s0 + $0x28] sm:$0xff]
  %v53 = vld [vmem:[%s0 + $0x30] sm:$0xff]
  %v54 = vld [vmem:[%s0 + $0x38] sm:$0xff]
  %v55 = vld [vmem:[%s0 + $0x40] sm:$0xff]
  %v56 = vld [vmem:[%s0 + $0x48] sm:$0xff]
  %v57 = vld [vmem:[%s0 + $0x50] sm:$0xff]
  %v58 = vld [vmem:[%s0 + $0x58] sm:$0xff]
  %v59 = vld [vmem:[%s0 + $0x60] sm:$0xff]
  %v60 = vld [vmem:[%s0 + $0x68] sm:$0xff]
  %v61 = vld [vmem:[%s0 + $0x70] sm:$0xff]
  %v62 = vld [vmem:[%s0 + $0x78] sm:$0xff]
  %v63 = vld [vmem:[%s0 + $0x80] sm:$0xff]
  %v64 = vld [vmem:[%s0 + $0x88] sm:$0xff]
  %v65 = vld [vmem:[%s0 + $0x90] sm:$0xff]
  %v66 = vld [vmem:[%s0 + $0x98] sm:$0xff]
  %v67 = vld [vmem:[%s0 + $0xa0] sm:$0xff]
  %v68 = vld [vmem:[%s0 + $0xa8] sm:$0xff]
  %v69 = vld [vmem:[%s0 + $0xb0] sm:$0xff]
  %v70 = vld [vmem:[%s0 + $0xb8] sm:$0xff]
  %v71 = vld [vmem:[%s0 + $0xc0] sm:$0xff]
  %v72 = vld [vmem:[%s0 + $0xc8] sm:$0xff]
  %v73 = vld [vmem:[%s0 + $0xd0] sm:$0xff]
  %v74 = vld [vmem:[%s0 + $0xd8] sm:$0xff]
  %v75 = vpack.c.bf16 %v48, %v47
  %v76 = vpack.c.bf16 %v50, %v49
  %v77 = vpack.c.bf16 %v52, %v51
  %v78 = vpack.c.bf16 %v54, %v53
  %v79 = vpack.c.bf16 %v56, %v55
  %v80 = vpack.c.bf16 %v58, %v57
  %v81 = vpack.c.bf16 %v60, %v59
  %v82 = vpack.c.bf16 %v62, %v61
  %v83 = vpack.c.bf16 %v64, %v63
  %v84 = vpack.c.bf16 %v66, %v65
  %v85 = vpack.c.bf16 %v68, %v67
  %v86 = vpack.c.bf16 %v70, %v69
  %v87 = vpack.c.bf16 %v72, %v71
  %v88 = vpack.c.bf16 %v74, %v73
  %v89 = vld [vmem:[%s1] sm:$0xff]
  %v90 = vld [vmem:[%s1 + $0x8] sm:$0xff]
  %v91 = vld [vmem:[%s1 + $0x10] sm:$0xff]
  %v92 = vld [vmem:[%s1 + $0x18] sm:$0xff]
  %v93 = vld [vmem:[%s1 + $0x20] sm:$0xff]
  %v94 = vld [vmem:[%s1 + $0x28] sm:$0xff]
  %v95 = vld [vmem:[%s1 + $0x30] sm:$0xff]
  %v96 = vld [vmem:[%s1 + $0x38] sm:$0xff]
  %v97 = vld [vmem:[%s1 + $0x40] sm:$0xff]
  %v98 = vld [vmem:[%s1 + $0x48] sm:$0xff]
  %v99 = vld [vmem:[%s1 + $0x50] sm:$0x33]
  %s100 = scalar_lea.vmem %s1, 88
  %v101 = vld [vmem:[%s100] sm:$0xff]
  %v102 = vld [vmem:[%s100 + $0x8] sm:$0xff]
  %v103 = vld [vmem:[%s100 + $0x10] sm:$0xff]
  %v104 = vld [vmem:[%s100 + $0x18] sm:$0xff]
  %v105 = vld [vmem:[%s100 + $0x20] sm:$0xff]
  %v106 = vld [vmem:[%s100 + $0x28] sm:$0xff]
  %v107 = vld [vmem:[%s100 + $0x30] sm:$0xff]
  %v108 = vld [vmem:[%s100 + $0x38] sm:$0xff]
  %v109 = vld [vmem:[%s100 + $0x40] sm:$0xff]
  %v110 = vld [vmem:[%s100 + $0x48] sm:$0xff]
  %v111 = vld [vmem:[%s100 + $0x50] sm:$0x33]
  %vm112 = vsmask.f32 7424
  %v114 = vshrl.u32 %v75, 16
  %v116 = vshll.u32 %v75, 16
  %v118 = vrot.slane %v116, 1
  %v119 = vor.u32 %v114, %v118
  %v121 = vshll.u32 %v76, 16
  %v123 = vrot.slane %v121, 1
  %v124 = vsel %vm112, %v119, %v123
  %v125 = vshrl.u32 %v76, 16
  %v127 = vor.u32 %v125, %v123
  %v129 = vshll.u32 %v77, 16
  %v131 = vrot.slane %v129, 1
  %v132 = vsel %vm112, %v127, %v131
  %v133 = vshrl.u32 %v77, 16
  %v135 = vor.u32 %v133, %v131
  %v137 = vshll.u32 %v78, 16
  %v139 = vrot.slane %v137, 1
  %v140 = vsel %vm112, %v135, %v139
  %v141 = vshrl.u32 %v78, 16
  %v143 = vor.u32 %v141, %v139
  %v145 = vshll.u32 %v79, 16
  %v147 = vrot.slane %v145, 1
  %v148 = vsel %vm112, %v143, %v147
  %v149 = vshrl.u32 %v79, 16
  %v151 = vor.u32 %v149, %v147
  %v153 = vshll.u32 %v80, 16
  %v155 = vrot.slane %v153, 1
  %v156 = vsel %vm112, %v151, %v155
  %v157 = vshrl.u32 %v80, 16
  %v159 = vor.u32 %v157, %v155
  %v161 = vshll.u32 %v81, 16
  %v163 = vrot.slane %v161, 1
  %v164 = vsel %vm112, %v159, %v163
  %v165 = vshrl.u32 %v81, 16
  %v167 = vor.u32 %v165, %v163
  %v169 = vshll.u32 %v82, 16
  %v171 = vrot.slane %v169, 1
  %v172 = vsel %vm112, %v167, %v171
  %v173 = vshrl.u32 %v82, 16
  %v175 = vor.u32 %v173, %v171
  %v177 = vshll.u32 %v83, 16
  %v179 = vrot.slane %v177, 1
  %v180 = vsel %vm112, %v175, %v179
  %v181 = vshrl.u32 %v83, 16
  %v183 = vor.u32 %v181, %v179
  %v185 = vshll.u32 %v84, 16
  %v187 = vrot.slane %v185, 1
  %v188 = vsel %vm112, %v183, %v187
  %v189 = vshrl.u32 %v84, 16
  %v191 = vor.u32 %v189, %v187
  %v193 = vshll.u32 %v85, 16
  %v195 = vrot.slane %v193, 1
  %v196 = vsel %vm112, %v191, %v195
  %v197 = vshrl.u32 %v85, 16
  %v199 = vor.u32 %v197, %v195
  %v201 = vshll.u32 %v86, 16
  %v203 = vrot.slane %v201, 1
  %v204 = vsel %vm112, %v199, %v203
  %v205 = vshrl.u32 %v86, 16
  %v207 = vor.u32 %v205, %v203
  %v209 = vshll.u32 %v87, 16
  %v211 = vrot.slane %v209, 1
  %v212 = vsel %vm112, %v207, %v211
  %v213 = vshrl.u32 %v87, 16
  %v215 = vor.u32 %v213, %v211
  %v217 = vshll.u32 %v88, 16
  %v219 = vrot.slane %v217, 1
  %v220 = vsel %vm112, %v215, %v219
  %v221 = vshrl.u32 %v88, 16
  %v223 = vor.u32 %v221, %v219
  %v235 = vunpack.c.l.b16 %v101
  %v236 = vunpack.c.h.b16 %v101
  %v237 = vunpack.c.l.b16 %v102
  %v238 = vunpack.c.h.b16 %v102
  %v239 = vunpack.c.l.b16 %v103
  %v240 = vunpack.c.h.b16 %v103
  %v241 = vunpack.c.l.b16 %v104
  %v242 = vunpack.c.h.b16 %v104
  %v243 = vunpack.c.l.b16 %v105
  %v244 = vunpack.c.h.b16 %v105
  %v245 = vunpack.c.l.b16 %v106
  %v246 = vunpack.c.h.b16 %v106
  %v247 = vunpack.c.l.b16 %v107
  %v248 = vunpack.c.h.b16 %v107
  %v249 = vunpack.c.l.b16 %v108
  %v250 = vunpack.c.h.b16 %v108
  %v251 = vunpack.c.l.b16 %v109
  %v252 = vunpack.c.h.b16 %v109
  %v253 = vunpack.c.l.b16 %v110
  %v254 = vunpack.c.h.b16 %v110
  %v255 = vunpack.c.l.b16 %v111
  %v256 = vunpack.c.h.b16 %v111
  %v257 = vpack.c.b16 %v237, %v235
  %v258 = vpack.c.b16 %v238, %v236
  %v259 = vpack.c.b16 %v241, %v239
  %v260 = vpack.c.b16 %v242, %v240
  %v261 = vpack.c.b16 %v245, %v243
  %v262 = vpack.c.b16 %v246, %v244
  %v263 = vpack.c.b16 %v249, %v247
  %v264 = vpack.c.b16 %v250, %v248
  %v265 = vpack.c.b16 %v253, %v251
  %v266 = vpack.c.b16 %v254, %v252
  %v267 = vpack.c.b16 %v255, %v255
  %v268 = vpack.c.b16 %v256, %v256
  %vm279 = vcmask 687104
  %v281 = vsel %vm279, %v124, 0
  %v284 = vsel %vm279, %v132, 0
  %v287 = vsel %vm279, %v140, 0
  %v290 = vsel %vm279, %v148, 0
  %v293 = vsel %vm279, %v156, 0
  %v296 = vsel %vm279, %v164, 0
  %v299 = vsel %vm279, %v172, 0
  %v302 = vsel %vm279, %v180, 0
  %v305 = vsel %vm279, %v188, 0
  %v308 = vsel %vm279, %v196, 0
  %v311 = vsel %vm279, %v204, 0
  %v314 = vsel %vm279, %v212, 0
  %v317 = vsel %vm279, %v220, 0
  %v320 = vsel %vm279, %v223, 0
  %vm322 = vcmask 1041408
  %v324 = vsel %vm322, %v267, 0
  %v327 = vsel %vm322, %v268, 0
  %329 = vmatpush.bf16.msra.mxu0 0
  %330 = vmatpush.bf16.msra.mxu0 0
  %331 = vmatpush.bf16.msra.mxu0 %v324
  %332 = vmatpush.bf16.msra.mxu0 %v265
  %333 = vmatpush.bf16.msra.mxu0 %v263
  %334 = vmatpush.bf16.msra.mxu0 %v261
  %335 = vmatpush.bf16.msra.mxu0 %v259
  %336 = vmatpush.bf16.msra.mxu0 %v257
  %337 = vmatmul.bf16.gmra.mxu0 %v281
  %v338 = vpop.f32.mrf.mxu0
  %v339 = vadd.f32 0.0, %v338
  %v340 = vpop.f32.mrf.mxu0
  %v341 = vadd.f32 0.0, %v340
  %342 = vmatmul.bf16.gmra.mxu0 %v284
  %v343 = vpop.f32.mrf.mxu0
  %v344 = vadd.f32 0.0, %v343
  %v345 = vpop.f32.mrf.mxu0
  %v346 = vadd.f32 0.0, %v345
  %347 = vmatmul.bf16.gmra.mxu0 %v287
  %v348 = vpop.f32.mrf.mxu0
  %v349 = vadd.f32 0.0, %v348
  %v350 = vpop.f32.mrf.mxu0
  %v351 = vadd.f32 0.0, %v350
  %352 = vmatmul.bf16.gmra.mxu0 %v290
  %v353 = vpop.f32.mrf.mxu0
  %v354 = vadd.f32 0.0, %v353
  %v355 = vpop.f32.mrf.mxu0
  %v356 = vadd.f32 0.0, %v355
  %357 = vmatmul.bf16.gmra.mxu0 %v293
  %v358 = vpop.f32.mrf.mxu0
  %v359 = vadd.f32 0.0, %v358
  %v360 = vpop.f32.mrf.mxu0
  %v361 = vadd.f32 0.0, %v360
  %362 = vmatmul.bf16.gmra.mxu0 %v296
  %v363 = vpop.f32.mrf.mxu0
  %v364 = vadd.f32 0.0, %v363
  %v365 = vpop.f32.mrf.mxu0
  %v366 = vadd.f32 0.0, %v365
  %367 = vmatmul.bf16.gmra.mxu0 %v299
  %v368 = vpop.f32.mrf.mxu0
  %v369 = vadd.f32 0.0, %v368
  %v370 = vpop.f32.mrf.mxu0
  %v371 = vadd.f32 0.0, %v370
  %372 = vmatmul.bf16.gmra.mxu0 %v302
  %v373 = vpop.f32.mrf.mxu0
  %v374 = vadd.f32 0.0, %v373
  %v375 = vpop.f32.mrf.mxu0
  %v376 = vadd.f32 0.0, %v375
  %377 = vmatmul.bf16.gmra.mxu0 %v305
  %v378 = vpop.f32.mrf.mxu0
  %v379 = vadd.f32 0.0, %v378
  %v380 = vpop.f32.mrf.mxu0
  %v381 = vadd.f32 0.0, %v380
  %382 = vmatmul.bf16.gmra.mxu0 %v308
  %v383 = vpop.f32.mrf.mxu0
  %v384 = vadd.f32 0.0, %v383
  %v385 = vpop.f32.mrf.mxu0
  %v386 = vadd.f32 0.0, %v385
  %387 = vmatmul.bf16.gmra.mxu0 %v311
  %v388 = vpop.f32.mrf.mxu0
  %v389 = vadd.f32 0.0, %v388
  %v390 = vpop.f32.mrf.mxu0
  %v391 = vadd.f32 0.0, %v390
  %392 = vmatmul.bf16.gmra.mxu0 %v314
  %v393 = vpop.f32.mrf.mxu0
  %v394 = vadd.f32 0.0, %v393
  %v395 = vpop.f32.mrf.mxu0
  %v396 = vadd.f32 0.0, %v395
  %397 = vmatmul.bf16.gmra.mxu0 %v317
  %v398 = vpop.f32.mrf.mxu0
  %v399 = vadd.f32 0.0, %v398
  %v400 = vpop.f32.mrf.mxu0
  %v401 = vadd.f32 0.0, %v400
  %402 = vmatmul.bf16.gmra.mxu0 %v320
  %v403 = vpop.f32.mrf.mxu0
  %v404 = vadd.f32 0.0, %v403
  %v405 = vpop.f32.mrf.mxu0
  %v406 = vadd.f32 0.0, %v405
  %407 = vdwg.mxu0
  %408 = vmatpush.bf16.msra.mxu0 0
  %409 = vmatpush.bf16.msra.mxu0 0
  %410 = vmatpush.bf16.msra.mxu0 %v327
  %411 = vmatpush.bf16.msra.mxu0 %v266
  %412 = vmatpush.bf16.msra.mxu0 %v264
  %413 = vmatpush.bf16.msra.mxu0 %v262
  %414 = vmatpush.bf16.msra.mxu0 %v260
  %415 = vmatpush.bf16.msra.mxu0 %v258
  %416 = vmatmul.bf16.gmra.mxu0 %v281
  %v417 = vpop.f32.mrf.mxu0
  %v418 = vadd.f32 0.0, %v417
  %v419 = vpop.f32.mrf.mxu0
  %v420 = vadd.f32 0.0, %v419
  %421 = vmatmul.bf16.gmra.mxu0 %v284
  %v422 = vpop.f32.mrf.mxu0
  %v423 = vadd.f32 0.0, %v422
  %v424 = vpop.f32.mrf.mxu0
  %v425 = vadd.f32 0.0, %v424
  %426 = vmatmul.bf16.gmra.mxu0 %v287
  %v427 = vpop.f32.mrf.mxu0
  %v428 = vadd.f32 0.0, %v427
  %v429 = vpop.f32.mrf.mxu0
  %v430 = vadd.f32 0.0, %v429
  %431 = vmatmul.bf16.gmra.mxu0 %v290
  %v432 = vpop.f32.mrf.mxu0
  %v433 = vadd.f32 0.0, %v432
  %v434 = vpop.f32.mrf.mxu0
  %v435 = vadd.f32 0.0, %v434
  %436 = vmatmul.bf16.gmra.mxu0 %v293
  %v437 = vpop.f32.mrf.mxu0
  %v438 = vadd.f32 0.0, %v437
  %v439 = vpop.f32.mrf.mxu0
  %v440 = vadd.f32 0.0, %v439
  %441 = vmatmul.bf16.gmra.mxu0 %v296
  %v442 = vpop.f32.mrf.mxu0
  %v443 = vadd.f32 0.0, %v442
  %v444 = vpop.f32.mrf.mxu0
  %v445 = vadd.f32 0.0, %v444
  %446 = vmatmul.bf16.gmra.mxu0 %v299
  %v447 = vpop.f32.mrf.mxu0
  %v448 = vadd.f32 0.0, %v447
  %v449 = vpop.f32.mrf.mxu0
  %v450 = vadd.f32 0.0, %v449
  %451 = vmatmul.bf16.gmra.mxu0 %v302
  %v452 = vpop.f32.mrf.mxu0
  %v453 = vadd.f32 0.0, %v452
  %v454 = vpop.f32.mrf.mxu0
  %v455 = vadd.f32 0.0, %v454
  %456 = vmatmul.bf16.gmra.mxu0 %v305
  %v457 = vpop.f32.mrf.mxu0
  %v458 = vadd.f32 0.0, %v457
  %v459 = vpop.f32.mrf.mxu0
  %v460 = vadd.f32 0.0, %v459
  %461 = vmatmul.bf16.gmra.mxu0 %v308
  %v462 = vpop.f32.mrf.mxu0
  %v463 = vadd.f32 0.0, %v462
  %v464 = vpop.f32.mrf.mxu0
  %v465 = vadd.f32 0.0, %v464
  %466 = vmatmul.bf16.gmra.mxu0 %v311
  %v467 = vpop.f32.mrf.mxu0
  %v468 = vadd.f32 0.0, %v467
  %v469 = vpop.f32.mrf.mxu0
  %v470 = vadd.f32 0.0, %v469
  %471 = vmatmul.bf16.gmra.mxu0 %v314
  %v472 = vpop.f32.mrf.mxu0
  %v473 = vadd.f32 0.0, %v472
  %v474 = vpop.f32.mrf.mxu0
  %v475 = vadd.f32 0.0, %v474
  %476 = vmatmul.bf16.gmra.mxu0 %v317
  %v477 = vpop.f32.mrf.mxu0
  %v478 = vadd.f32 0.0, %v477
  %v479 = vpop.f32.mrf.mxu0
  %v480 = vadd.f32 0.0, %v479
  %481 = vmatmul.bf16.gmra.mxu0 %v320
  %v482 = vpop.f32.mrf.mxu0
  %v483 = vadd.f32 0.0, %v482
  %v484 = vpop.f32.mrf.mxu0
  %v485 = vadd.f32 0.0, %v484
  %486 = vdwg.mxu0
  %v498 = vunpack.c.l.b16 %v89
  %v499 = vunpack.c.h.b16 %v89
  %v500 = vunpack.c.l.b16 %v90
  %v501 = vunpack.c.h.b16 %v90
  %v502 = vunpack.c.l.b16 %v91
  %v503 = vunpack.c.h.b16 %v91
  %v504 = vunpack.c.l.b16 %v92
  %v505 = vunpack.c.h.b16 %v92
  %v506 = vunpack.c.l.b16 %v93
  %v507 = vunpack.c.h.b16 %v93
  %v508 = vunpack.c.l.b16 %v94
  %v509 = vunpack.c.h.b16 %v94
  %v510 = vunpack.c.l.b16 %v95
  %v511 = vunpack.c.h.b16 %v95
  %v512 = vunpack.c.l.b16 %v96
  %v513 = vunpack.c.h.b16 %v96
  %v514 = vunpack.c.l.b16 %v97
  %v515 = vunpack.c.h.b16 %v97
  %v516 = vunpack.c.l.b16 %v98
  %v517 = vunpack.c.h.b16 %v98
  %v518 = vunpack.c.l.b16 %v99
  %v519 = vunpack.c.h.b16 %v99
  %v520 = vpack.c.b16 %v500, %v498
  %v521 = vpack.c.b16 %v501, %v499
  %v522 = vpack.c.b16 %v504, %v502
  %v523 = vpack.c.b16 %v505, %v503
  %v524 = vpack.c.b16 %v508, %v506
  %v525 = vpack.c.b16 %v509, %v507
  %v526 = vpack.c.b16 %v512, %v510
  %v527 = vpack.c.b16 %v513, %v511
  %v528 = vpack.c.b16 %v516, %v514
  %v529 = vpack.c.b16 %v517, %v515
  %v530 = vpack.c.b16 %v518, %v518
  %v531 = vpack.c.b16 %v519, %v519
  %v542 = vsel %vm279, %v75, 0
  %v544 = vsel %vm279, %v76, 0
  %v546 = vsel %vm279, %v77, 0
  %v548 = vsel %vm279, %v78, 0
  %v550 = vsel %vm279, %v79, 0
  %v552 = vsel %vm279, %v80, 0
  %v554 = vsel %vm279, %v81, 0
  %v556 = vsel %vm279, %v82, 0
  %v558 = vsel %vm279, %v83, 0
  %v560 = vsel %vm279, %v84, 0
  %v562 = vsel %vm279, %v85, 0
  %v564 = vsel %vm279, %v86, 0
  %v566 = vsel %vm279, %v87, 0
  %v568 = vsel %vm279, %v88, 0
  %v571 = vsel %vm322, %v530, 0
  %v574 = vsel %vm322, %v531, 0
  %576 = vmatpush.bf16.msra.mxu0 0
  %577 = vmatpush.bf16.msra.mxu0 0
  %578 = vmatpush.bf16.msra.mxu0 %v571
  %579 = vmatpush.bf16.msra.mxu0 %v528
  %580 = vmatpush.bf16.msra.mxu0 %v526
  %581 = vmatpush.bf16.msra.mxu0 %v524
  %582 = vmatpush.bf16.msra.mxu0 %v522
  %583 = vmatpush.bf16.msra.mxu0 %v520
  %584 = vmatmul.bf16.gmra.mxu0 %v542
  %v585 = vpop.f32.mrf.mxu0
  %v586 = vadd.f32 %v339, %v585
  %v587 = vpop.f32.mrf.mxu0
  %v588 = vadd.f32 %v341, %v587
  %589 = vmatmul.bf16.gmra.mxu0 %v544
  %v590 = vpop.f32.mrf.mxu0
  %v591 = vadd.f32 %v344, %v590
  %v592 = vpop.f32.mrf.mxu0
  %v593 = vadd.f32 %v346, %v592
  %594 = vmatmul.bf16.gmra.mxu0 %v546
  %v595 = vpop.f32.mrf.mxu0
  %v596 = vadd.f32 %v349, %v595
  %v597 = vpop.f32.mrf.mxu0
  %v598 = vadd.f32 %v351, %v597
  %599 = vmatmul.bf16.gmra.mxu0 %v548
  %v600 = vpop.f32.mrf.mxu0
  %v601 = vadd.f32 %v354, %v600
  %v602 = vpop.f32.mrf.mxu0
  %v603 = vadd.f32 %v356, %v602
  %604 = vmatmul.bf16.gmra.mxu0 %v550
  %v605 = vpop.f32.mrf.mxu0
  %v606 = vadd.f32 %v359, %v605
  %v607 = vpop.f32.mrf.mxu0
  %v608 = vadd.f32 %v361, %v607
  %609 = vmatmul.bf16.gmra.mxu0 %v552
  %v610 = vpop.f32.mrf.mxu0
  %v611 = vadd.f32 %v364, %v610
  %v612 = vpop.f32.mrf.mxu0
  %v613 = vadd.f32 %v366, %v612
  %614 = vmatmul.bf16.gmra.mxu0 %v554
  %v615 = vpop.f32.mrf.mxu0
  %v616 = vadd.f32 %v369, %v615
  %v617 = vpop.f32.mrf.mxu0
  %v618 = vadd.f32 %v371, %v617
  %619 = vmatmul.bf16.gmra.mxu0 %v556
  %v620 = vpop.f32.mrf.mxu0
  %v621 = vadd.f32 %v374, %v620
  %v622 = vpop.f32.mrf.mxu0
  %v623 = vadd.f32 %v376, %v622
  %624 = vmatmul.bf16.gmra.mxu0 %v558
  %v625 = vpop.f32.mrf.mxu0
  %v626 = vadd.f32 %v379, %v625
  %v627 = vpop.f32.mrf.mxu0
  %v628 = vadd.f32 %v381, %v627
  %629 = vmatmul.bf16.gmra.mxu0 %v560
  %v630 = vpop.f32.mrf.mxu0
  %v631 = vadd.f32 %v384, %v630
  %v632 = vpop.f32.mrf.mxu0
  %v633 = vadd.f32 %v386, %v632
  %634 = vmatmul.bf16.gmra.mxu0 %v562
  %v635 = vpop.f32.mrf.mxu0
  %v636 = vadd.f32 %v389, %v635
  %v637 = vpop.f32.mrf.mxu0
  %v638 = vadd.f32 %v391, %v637
  %639 = vmatmul.bf16.gmra.mxu0 %v564
  %v640 = vpop.f32.mrf.mxu0
  %v641 = vadd.f32 %v394, %v640
  %v642 = vpop.f32.mrf.mxu0
  %v643 = vadd.f32 %v396, %v642
  %644 = vmatmul.bf16.gmra.mxu0 %v566
  %v645 = vpop.f32.mrf.mxu0
  %v646 = vadd.f32 %v399, %v645
  %v647 = vpop.f32.mrf.mxu0
  %v648 = vadd.f32 %v401, %v647
  %649 = vmatmul.bf16.gmra.mxu0 %v568
  %v650 = vpop.f32.mrf.mxu0
  %v651 = vadd.f32 %v404, %v650
  %v652 = vpop.f32.mrf.mxu0
  %v653 = vadd.f32 %v406, %v652
  %654 = vdwg.mxu0
  %655 = vmatpush.bf16.msra.mxu0 0
  %656 = vmatpush.bf16.msra.mxu0 0
  %657 = vmatpush.bf16.msra.mxu0 %v574
  %658 = vmatpush.bf16.msra.mxu0 %v529
  %659 = vmatpush.bf16.msra.mxu0 %v527
  %660 = vmatpush.bf16.msra.mxu0 %v525
  %661 = vmatpush.bf16.msra.mxu0 %v523
  %662 = vmatpush.bf16.msra.mxu0 %v521
  %663 = vmatmul.bf16.gmra.mxu0 %v542
  %v664 = vpop.f32.mrf.mxu0
  %v665 = vadd.f32 %v418, %v664
  %v666 = vpop.f32.mrf.mxu0
  %v667 = vadd.f32 %v420, %v666
  %668 = vmatmul.bf16.gmra.mxu0 %v544
  %v669 = vpop.f32.mrf.mxu0
  %v670 = vadd.f32 %v423, %v669
  %v671 = vpop.f32.mrf.mxu0
  %v672 = vadd.f32 %v425, %v671
  %673 = vmatmul.bf16.gmra.mxu0 %v546
  %v674 = vpop.f32.mrf.mxu0
  %v675 = vadd.f32 %v428, %v674
  %v676 = vpop.f32.mrf.mxu0
  %v677 = vadd.f32 %v430, %v676
  %678 = vmatmul.bf16.gmra.mxu0 %v548
  %v679 = vpop.f32.mrf.mxu0
  %v680 = vadd.f32 %v433, %v679
  %v681 = vpop.f32.mrf.mxu0
  %v682 = vadd.f32 %v435, %v681
  %683 = vmatmul.bf16.gmra.mxu0 %v550
  %v684 = vpop.f32.mrf.mxu0
  %v685 = vadd.f32 %v438, %v684
  %v686 = vpop.f32.mrf.mxu0
  %v687 = vadd.f32 %v440, %v686
  %688 = vmatmul.bf16.gmra.mxu0 %v552
  %v689 = vpop.f32.mrf.mxu0
  %v690 = vadd.f32 %v443, %v689
  %v691 = vpop.f32.mrf.mxu0
  %v692 = vadd.f32 %v445, %v691
  %693 = vmatmul.bf16.gmra.mxu0 %v554
  %v694 = vpop.f32.mrf.mxu0
  %v695 = vadd.f32 %v448, %v694
  %v696 = vpop.f32.mrf.mxu0
  %v697 = vadd.f32 %v450, %v696
  %698 = vmatmul.bf16.gmra.mxu0 %v556
  %v699 = vpop.f32.mrf.mxu0
  %v700 = vadd.f32 %v453, %v699
  %v701 = vpop.f32.mrf.mxu0
  %v702 = vadd.f32 %v455, %v701
  %703 = vmatmul.bf16.gmra.mxu0 %v558
  %v704 = vpop.f32.mrf.mxu0
  %v705 = vadd.f32 %v458, %v704
  %v706 = vpop.f32.mrf.mxu0
  %v707 = vadd.f32 %v460, %v706
  %708 = vmatmul.bf16.gmra.mxu0 %v560
  %v709 = vpop.f32.mrf.mxu0
  %v710 = vadd.f32 %v463, %v709
  %v711 = vpop.f32.mrf.mxu0
  %v712 = vadd.f32 %v465, %v711
  %713 = vmatmul.bf16.gmra.mxu0 %v562
  %v714 = vpop.f32.mrf.mxu0
  %v715 = vadd.f32 %v468, %v714
  %v716 = vpop.f32.mrf.mxu0
  %v717 = vadd.f32 %v470, %v716
  %718 = vmatmul.bf16.gmra.mxu0 %v564
  %v719 = vpop.f32.mrf.mxu0
  %v720 = vadd.f32 %v473, %v719
  %v721 = vpop.f32.mrf.mxu0
  %v722 = vadd.f32 %v475, %v721
  %723 = vmatmul.bf16.gmra.mxu0 %v566
  %v724 = vpop.f32.mrf.mxu0
  %v725 = vadd.f32 %v478, %v724
  %v726 = vpop.f32.mrf.mxu0
  %v727 = vadd.f32 %v480, %v726
  %728 = vmatmul.bf16.gmra.mxu0 %v568
  %v729 = vpop.f32.mrf.mxu0
  %v730 = vadd.f32 %v483, %v729
  %v731 = vpop.f32.mrf.mxu0
  %v732 = vadd.f32 %v485, %v731
  %733 = vdwg.mxu0
  %s734 = scalar_lea.vmem %s1, 176
  %v735 = vld [vmem:[%s734] sm:$0xff]
  %v736 = vld [vmem:[%s734 + $0x8] sm:$0xff]
  %v737 = vld [vmem:[%s734 + $0x10] sm:$0xff]
  %v738 = vld [vmem:[%s734 + $0x18] sm:$0xff]
  %v739 = vld [vmem:[%s734 + $0x20] sm:$0xff]
  %v740 = vld [vmem:[%s734 + $0x28] sm:$0xff]
  %v741 = vld [vmem:[%s734 + $0x30] sm:$0xff]
  %v742 = vld [vmem:[%s734 + $0x38] sm:$0xff]
  %v743 = vld [vmem:[%s734 + $0x40] sm:$0xff]
  %v744 = vld [vmem:[%s734 + $0x48] sm:$0xff]
  %v745 = vld [vmem:[%s734 + $0x50] sm:$0x33]
  %vm760 = vcmask 1046528
  %v761 = vrot.slane %v75, 1
  %v762 = vrot.slane %v76, 1
  %v763 = vsel %vm760, %v761, %v762
  %v764 = vrot.slane %v77, 1
  %v765 = vsel %vm760, %v762, %v764
  %v766 = vrot.slane %v78, 1
  %v767 = vsel %vm760, %v764, %v766
  %v768 = vrot.slane %v79, 1
  %v769 = vsel %vm760, %v766, %v768
  %v770 = vrot.slane %v80, 1
  %v771 = vsel %vm760, %v768, %v770
  %v772 = vrot.slane %v81, 1
  %v773 = vsel %vm760, %v770, %v772
  %v774 = vrot.slane %v82, 1
  %v775 = vsel %vm760, %v772, %v774
  %v776 = vrot.slane %v83, 1
  %v777 = vsel %vm760, %v774, %v776
  %v778 = vrot.slane %v84, 1
  %v779 = vsel %vm760, %v776, %v778
  %v780 = vrot.slane %v85, 1
  %v781 = vsel %vm760, %v778, %v780
  %v782 = vrot.slane %v86, 1
  %v783 = vsel %vm760, %v780, %v782
  %v784 = vrot.slane %v87, 1
  %v785 = vsel %vm760, %v782, %v784
  %v786 = vrot.slane %v88, 1
  %v787 = vsel %vm760, %v784, %v786
  %v799 = vunpack.c.l.b16 %v735
  %v800 = vunpack.c.h.b16 %v735
  %v801 = vunpack.c.l.b16 %v736
  %v802 = vunpack.c.h.b16 %v736
  %v803 = vunpack.c.l.b16 %v737
  %v804 = vunpack.c.h.b16 %v737
  %v805 = vunpack.c.l.b16 %v738
  %v806 = vunpack.c.h.b16 %v738
  %v807 = vunpack.c.l.b16 %v739
  %v808 = vunpack.c.h.b16 %v739
  %v809 = vunpack.c.l.b16 %v740
  %v810 = vunpack.c.h.b16 %v740
  %v811 = vunpack.c.l.b16 %v741
  %v812 = vunpack.c.h.b16 %v741
  %v813 = vunpack.c.l.b16 %v742
  %v814 = vunpack.c.h.b16 %v742
  %v815 = vunpack.c.l.b16 %v743
  %v816 = vunpack.c.h.b16 %v743
  %v817 = vunpack.c.l.b16 %v744
  %v818 = vunpack.c.h.b16 %v744
  %v819 = vunpack.c.l.b16 %v745
  %v820 = vunpack.c.h.b16 %v745
  %v821 = vpack.c.b16 %v801, %v799
  %v822 = vpack.c.b16 %v802, %v800
  %v823 = vpack.c.b16 %v805, %v803
  %v824 = vpack.c.b16 %v806, %v804
  %v825 = vpack.c.b16 %v809, %v807
  %v826 = vpack.c.b16 %v810, %v808
  %v827 = vpack.c.b16 %v813, %v811
  %v828 = vpack.c.b16 %v814, %v812
  %v829 = vpack.c.b16 %v817, %v815
  %v830 = vpack.c.b16 %v818, %v816
  %v831 = vpack.c.b16 %v819, %v819
  %v832 = vpack.c.b16 %v820, %v820
  %v844 = vsel %vm279, %v763, 0
  %v847 = vsel %vm279, %v765, 0
  %v850 = vsel %vm279, %v767, 0
  %v853 = vsel %vm279, %v769, 0
  %v856 = vsel %vm279, %v771, 0
  %v859 = vsel %vm279, %v773, 0
  %v862 = vsel %vm279, %v775, 0
  %v865 = vsel %vm279, %v777, 0
  %v868 = vsel %vm279, %v779, 0
  %v871 = vsel %vm279, %v781, 0
  %v874 = vsel %vm279, %v783, 0
  %v877 = vsel %vm279, %v785, 0
  %v880 = vsel %vm279, %v787, 0
  %v883 = vsel %vm279, %v786, 0
  %v886 = vsel %vm322, %v831, 0
  %v889 = vsel %vm322, %v832, 0
  %891 = vmatpush.bf16.msra.mxu0 0
  %892 = vmatpush.bf16.msra.mxu0 0
  %893 = vmatpush.bf16.msra.mxu0 %v886
  %894 = vmatpush.bf16.msra.mxu0 %v829
  %895 = vmatpush.bf16.msra.mxu0 %v827
  %896 = vmatpush.bf16.msra.mxu0 %v825
  %897 = vmatpush.bf16.msra.mxu0 %v823
  %898 = vmatpush.bf16.msra.mxu0 %v821
  %899 = vmatmul.bf16.gmra.mxu0 %v844
  %v900 = vpop.f32.mrf.mxu0
  %v901 = vadd.f32 0.0, %v900
  %v902 = vpop.f32.mrf.mxu0
  %v903 = vadd.f32 0.0, %v902
  %904 = vmatmul.bf16.gmra.mxu0 %v847
  %v905 = vpop.f32.mrf.mxu0
  %v906 = vadd.f32 0.0, %v905
  %v907 = vpop.f32.mrf.mxu0
  %v908 = vadd.f32 0.0, %v907
  %909 = vmatmul.bf16.gmra.mxu0 %v850
  %v910 = vpop.f32.mrf.mxu0
  %v911 = vadd.f32 0.0, %v910
  %v912 = vpop.f32.mrf.mxu0
  %v913 = vadd.f32 0.0, %v912
  %914 = vmatmul.bf16.gmra.mxu0 %v853
  %v915 = vpop.f32.mrf.mxu0
  %v916 = vadd.f32 0.0, %v915
  %v917 = vpop.f32.mrf.mxu0
  %v918 = vadd.f32 0.0, %v917
  %919 = vmatmul.bf16.gmra.mxu0 %v856
  %v920 = vpop.f32.mrf.mxu0
  %v921 = vadd.f32 0.0, %v920
  %v922 = vpop.f32.mrf.mxu0
  %v923 = vadd.f32 0.0, %v922
  %924 = vmatmul.bf16.gmra.mxu0 %v859
  %v925 = vpop.f32.mrf.mxu0
  %v926 = vadd.f32 0.0, %v925
  %v927 = vpop.f32.mrf.mxu0
  %v928 = vadd.f32 0.0, %v927
  %929 = vmatmul.bf16.gmra.mxu0 %v862
  %v930 = vpop.f32.mrf.mxu0
  %v931 = vadd.f32 0.0, %v930
  %v932 = vpop.f32.mrf.mxu0
  %v933 = vadd.f32 0.0, %v932
  %934 = vmatmul.bf16.gmra.mxu0 %v865
  %v935 = vpop.f32.mrf.mxu0
  %v936 = vadd.f32 0.0, %v935
  %v937 = vpop.f32.mrf.mxu0
  %v938 = vadd.f32 0.0, %v937
  %939 = vmatmul.bf16.gmra.mxu0 %v868
  %v940 = vpop.f32.mrf.mxu0
  %v941 = vadd.f32 0.0, %v940
  %v942 = vpop.f32.mrf.mxu0
  %v943 = vadd.f32 0.0, %v942
  %944 = vmatmul.bf16.gmra.mxu0 %v871
  %v945 = vpop.f32.mrf.mxu0
  %v946 = vadd.f32 0.0, %v945
  %v947 = vpop.f32.mrf.mxu0
  %v948 = vadd.f32 0.0, %v947
  %949 = vmatmul.bf16.gmra.mxu0 %v874
  %v950 = vpop.f32.mrf.mxu0
  %v951 = vadd.f32 0.0, %v950
  %v952 = vpop.f32.mrf.mxu0
  %v953 = vadd.f32 0.0, %v952
  %954 = vmatmul.bf16.gmra.mxu0 %v877
  %v955 = vpop.f32.mrf.mxu0
  %v956 = vadd.f32 0.0, %v955
  %v957 = vpop.f32.mrf.mxu0
  %v958 = vadd.f32 0.0, %v957
  %959 = vmatmul.bf16.gmra.mxu0 %v880
  %v960 = vpop.f32.mrf.mxu0
  %v961 = vadd.f32 0.0, %v960
  %v962 = vpop.f32.mrf.mxu0
  %v963 = vadd.f32 0.0, %v962
  %964 = vmatmul.bf16.gmra.mxu0 %v883
  %v965 = vpop.f32.mrf.mxu0
  %v966 = vadd.f32 0.0, %v965
  %v967 = vpop.f32.mrf.mxu0
  %v968 = vadd.f32 0.0, %v967
  %969 = vdwg.mxu0
  %970 = vmatpush.bf16.msra.mxu0 0
  %971 = vmatpush.bf16.msra.mxu0 0
  %972 = vmatpush.bf16.msra.mxu0 %v889
  %973 = vmatpush.bf16.msra.mxu0 %v830
  %974 = vmatpush.bf16.msra.mxu0 %v828
  %975 = vmatpush.bf16.msra.mxu0 %v826
  %976 = vmatpush.bf16.msra.mxu0 %v824
  %977 = vmatpush.bf16.msra.mxu0 %v822
  %978 = vmatmul.bf16.gmra.mxu0 %v844
  %v979 = vpop.f32.mrf.mxu0
  %v980 = vadd.f32 0.0, %v979
  %v981 = vpop.f32.mrf.mxu0
  %v982 = vadd.f32 0.0, %v981
  %983 = vmatmul.bf16.gmra.mxu0 %v847
  %v984 = vpop.f32.mrf.mxu0
  %v985 = vadd.f32 0.0, %v984
  %v986 = vpop.f32.mrf.mxu0
  %v987 = vadd.f32 0.0, %v986
  %988 = vmatmul.bf16.gmra.mxu0 %v850
  %v989 = vpop.f32.mrf.mxu0
  %v990 = vadd.f32 0.0, %v989
  %v991 = vpop.f32.mrf.mxu0
  %v992 = vadd.f32 0.0, %v991
  %993 = vmatmul.bf16.gmra.mxu0 %v853
  %v994 = vpop.f32.mrf.mxu0
  %v995 = vadd.f32 0.0, %v994
  %v996 = vpop.f32.mrf.mxu0
  %v997 = vadd.f32 0.0, %v996
  %998 = vmatmul.bf16.gmra.mxu0 %v856
  %v999 = vpop.f32.mrf.mxu0
  %v1000 = vadd.f32 0.0, %v999
  %v1001 = vpop.f32.mrf.mxu0
  %v1002 = vadd.f32 0.0, %v1001
  %1003 = vmatmul.bf16.gmra.mxu0 %v859
  %v1004 = vpop.f32.mrf.mxu0
  %v1005 = vadd.f32 0.0, %v1004
  %v1006 = vpop.f32.mrf.mxu0
  %v1007 = vadd.f32 0.0, %v1006
  %1008 = vmatmul.bf16.gmra.mxu0 %v862
  %v1009 = vpop.f32.mrf.mxu0
  %v1010 = vadd.f32 0.0, %v1009
  %v1011 = vpop.f32.mrf.mxu0
  %v1012 = vadd.f32 0.0, %v1011
  %1013 = vmatmul.bf16.gmra.mxu0 %v865
  %v1014 = vpop.f32.mrf.mxu0
  %v1015 = vadd.f32 0.0, %v1014
  %v1016 = vpop.f32.mrf.mxu0
  %v1017 = vadd.f32 0.0, %v1016
  %1018 = vmatmul.bf16.gmra.mxu0 %v868
  %v1019 = vpop.f32.mrf.mxu0
  %v1020 = vadd.f32 0.0, %v1019
  %v1021 = vpop.f32.mrf.mxu0
  %v1022 = vadd.f32 0.0, %v1021
  %1023 = vmatmul.bf16.gmra.mxu0 %v871
  %v1024 = vpop.f32.mrf.mxu0
  %v1025 = vadd.f32 0.0, %v1024
  %v1026 = vpop.f32.mrf.mxu0
  %v1027 = vadd.f32 0.0, %v1026
  %1028 = vmatmul.bf16.gmra.mxu0 %v874
  %v1029 = vpop.f32.mrf.mxu0
  %v1030 = vadd.f32 0.0, %v1029
  %v1031 = vpop.f32.mrf.mxu0
  %v1032 = vadd.f32 0.0, %v1031
  %1033 = vmatmul.bf16.gmra.mxu0 %v877
  %v1034 = vpop.f32.mrf.mxu0
  %v1035 = vadd.f32 0.0, %v1034
  %v1036 = vpop.f32.mrf.mxu0
  %v1037 = vadd.f32 0.0, %v1036
  %1038 = vmatmul.bf16.gmra.mxu0 %v880
  %v1039 = vpop.f32.mrf.mxu0
  %v1040 = vadd.f32 0.0, %v1039
  %v1041 = vpop.f32.mrf.mxu0
  %v1042 = vadd.f32 0.0, %v1041
  %1043 = vmatmul.bf16.gmra.mxu0 %v883
  %v1044 = vpop.f32.mrf.mxu0
  %v1045 = vadd.f32 0.0, %v1044
  %v1046 = vpop.f32.mrf.mxu0
  %v1047 = vadd.f32 0.0, %v1046
  %1048 = vdwg.mxu0
  %v1049 = vadd.f32 %v586, %v901
  %v1050 = vadd.f32 %v665, %v980
  %v1051 = vadd.f32 %v588, %v903
  %v1052 = vadd.f32 %v667, %v982
  %v1053 = vadd.f32 %v591, %v906
  %v1054 = vadd.f32 %v670, %v985
  %v1055 = vadd.f32 %v593, %v908
  %v1056 = vadd.f32 %v672, %v987
  %v1057 = vadd.f32 %v596, %v911
  %v1058 = vadd.f32 %v675, %v990
  %v1059 = vadd.f32 %v598, %v913
  %v1060 = vadd.f32 %v677, %v992
  %v1061 = vadd.f32 %v601, %v916
  %v1062 = vadd.f32 %v680, %v995
  %v1063 = vadd.f32 %v603, %v918
  %v1064 = vadd.f32 %v682, %v997
  %v1065 = vadd.f32 %v606, %v921
  %v1066 = vadd.f32 %v685, %v1000
  %v1067 = vadd.f32 %v608, %v923
  %v1068 = vadd.f32 %v687, %v1002
  %v1069 = vadd.f32 %v611, %v926
  %v1070 = vadd.f32 %v690, %v1005
  %v1071 = vadd.f32 %v613, %v928
  %v1072 = vadd.f32 %v692, %v1007
  %v1073 = vadd.f32 %v616, %v931
  %v1074 = vadd.f32 %v695, %v1010
  %v1075 = vadd.f32 %v618, %v933
  %v1076 = vadd.f32 %v697, %v1012
  %v1077 = vadd.f32 %v621, %v936
  %v1078 = vadd.f32 %v700, %v1015
  %v1079 = vadd.f32 %v623, %v938
  %v1080 = vadd.f32 %v702, %v1017
  %v1081 = vadd.f32 %v626, %v941
  %v1082 = vadd.f32 %v705, %v1020
  %v1083 = vadd.f32 %v628, %v943
  %v1084 = vadd.f32 %v707, %v1022
  %v1085 = vadd.f32 %v631, %v946
  %v1086 = vadd.f32 %v710, %v1025
  %v1087 = vadd.f32 %v633, %v948
  %v1088 = vadd.f32 %v712, %v1027
  %v1089 = vadd.f32 %v636, %v951
  %v1090 = vadd.f32 %v715, %v1030
  %v1091 = vadd.f32 %v638, %v953
  %v1092 = vadd.f32 %v717, %v1032
  %v1093 = vadd.f32 %v641, %v956
  %v1094 = vadd.f32 %v720, %v1035
  %v1095 = vadd.f32 %v643, %v958
  %v1096 = vadd.f32 %v722, %v1037
  %v1097 = vadd.f32 %v646, %v961
  %v1098 = vadd.f32 %v725, %v1040
  %v1099 = vadd.f32 %v648, %v963
  %v1100 = vadd.f32 %v727, %v1042
  %v1101 = vadd.f32 %v651, %v966
  %v1102 = vadd.f32 %v730, %v1045
  %v1103 = vadd.f32 %v653, %v968
  %v1104 = vadd.f32 %v732, %v1047
  %s1105 = scalar_lea.vmem %s1, 264
  %v1106 = vld [vmem:[%s1105] sm:$0xff]
  %v1107 = vld [vmem:[%s1105 + $0x8] sm:$0xff]
  %v1108 = vld [vmem:[%s1105 + $0x10] sm:$0xff]
  %v1109 = vld [vmem:[%s1105 + $0x18] sm:$0xff]
  %v1110 = vld [vmem:[%s1105 + $0x20] sm:$0xff]
  %v1111 = vld [vmem:[%s1105 + $0x28] sm:$0xff]
  %v1112 = vld [vmem:[%s1105 + $0x30] sm:$0xff]
  %v1113 = vld [vmem:[%s1105 + $0x38] sm:$0xff]
  %v1114 = vld [vmem:[%s1105 + $0x40] sm:$0xff]
  %v1115 = vld [vmem:[%s1105 + $0x48] sm:$0xff]
  %v1116 = vld [vmem:[%s1105 + $0x50] sm:$0x33]
  %vm1117 = vsmask.f32 6400
  %v1118 = vrot.slane %v114, 1
  %v1119 = vrot.slane %v116, 2
  %v1120 = vor.u32 %v1118, %v1119
  %v1121 = vrot.slane %v125, 1
  %v1122 = vrot.slane %v121, 2
  %v1123 = vor.u32 %v1121, %v1122
  %v1124 = vsel %vm1117, %v1120, %v1123
  %v1125 = vrot.slane %v133, 1
  %v1126 = vrot.slane %v129, 2
  %v1127 = vor.u32 %v1125, %v1126
  %v1128 = vsel %vm1117, %v1123, %v1127
  %v1129 = vrot.slane %v141, 1
  %v1130 = vrot.slane %v137, 2
  %v1131 = vor.u32 %v1129, %v1130
  %v1132 = vsel %vm1117, %v1127, %v1131
  %v1133 = vrot.slane %v149, 1
  %v1134 = vrot.slane %v145, 2
  %v1135 = vor.u32 %v1133, %v1134
  %v1136 = vsel %vm1117, %v1131, %v1135
  %v1137 = vrot.slane %v157, 1
  %v1138 = vrot.slane %v153, 2
  %v1139 = vor.u32 %v1137, %v1138
  %v1140 = vsel %vm1117, %v1135, %v1139
  %v1141 = vrot.slane %v165, 1
  %v1142 = vrot.slane %v161, 2
  %v1143 = vor.u32 %v1141, %v1142
  %v1144 = vsel %vm1117, %v1139, %v1143
  %v1145 = vrot.slane %v173, 1
  %v1146 = vrot.slane %v169, 2
  %v1147 = vor.u32 %v1145, %v1146
  %v1148 = vsel %vm1117, %v1143, %v1147
  %v1149 = vrot.slane %v181, 1
  %v1150 = vrot.slane %v177, 2
  %v1151 = vor.u32 %v1149, %v1150
  %v1152 = vsel %vm1117, %v1147, %v1151
  %v1153 = vrot.slane %v189, 1
  %v1154 = vrot.slane %v185, 2
  %v1155 = vor.u32 %v1153, %v1154
  %v1156 = vsel %vm1117, %v1151, %v1155
  %v1157 = vrot.slane %v197, 1
  %v1158 = vrot.slane %v193, 2
  %v1159 = vor.u32 %v1157, %v1158
  %v1160 = vsel %vm1117, %v1155, %v1159
  %v1161 = vrot.slane %v205, 1
  %v1162 = vrot.slane %v201, 2
  %v1163 = vor.u32 %v1161, %v1162
  %v1164 = vsel %vm1117, %v1159, %v1163
  %v1165 = vrot.slane %v213, 1
  %v1166 = vrot.slane %v209, 2
  %v1167 = vor.u32 %v1165, %v1166
  %v1168 = vsel %vm1117, %v1163, %v1167
  %v1169 = vrot.slane %v221, 1
  %v1170 = vrot.slane %v217, 2
  %v1171 = vor.u32 %v1169, %v1170
  %v1172 = vsel %vm1117, %v1167, %v1171
  %v1184 = vunpack.c.l.b16 %v1106
  %v1185 = vunpack.c.h.b16 %v1106
  %v1186 = vunpack.c.l.b16 %v1107
  %v1187 = vunpack.c.h.b16 %v1107
  %v1188 = vunpack.c.l.b16 %v1108
  %v1189 = vunpack.c.h.b16 %v1108
  %v1190 = vunpack.c.l.b16 %v1109
  %v1191 = vunpack.c.h.b16 %v1109
  %v1192 = vunpack.c.l.b16 %v1110
  %v1193 = vunpack.c.h.b16 %v1110
  %v1194 = vunpack.c.l.b16 %v1111
  %v1195 = vunpack.c.h.b16 %v1111
  %v1196 = vunpack.c.l.b16 %v1112
  %v1197 = vunpack.c.h.b16 %v1112
  %v1198 = vunpack.c.l.b16 %v1113
  %v1199 = vunpack.c.h.b16 %v1113
  %v1200 = vunpack.c.l.b16 %v1114
  %v1201 = vunpack.c.h.b16 %v1114
  %v1202 = vunpack.c.l.b16 %v1115
  %v1203 = vunpack.c.h.b16 %v1115
  %v1204 = vunpack.c.l.b16 %v1116
  %v1205 = vunpack.c.h.b16 %v1116
  %v1206 = vpack.c.b16 %v1186, %v1184
  %v1207 = vpack.c.b16 %v1187, %v1185
  %v1208 = vpack.c.b16 %v1190, %v1188
  %v1209 = vpack.c.b16 %v1191, %v1189
  %v1210 = vpack.c.b16 %v1194, %v1192
  %v1211 = vpack.c.b16 %v1195, %v1193
  %v1212 = vpack.c.b16 %v1198, %v1196
  %v1213 = vpack.c.b16 %v1199, %v1197
  %v1214 = vpack.c.b16 %v1202, %v1200
  %v1215 = vpack.c.b16 %v1203, %v1201
  %v1216 = vpack.c.b16 %v1204, %v1204
  %v1217 = vpack.c.b16 %v1205, %v1205
  %v1229 = vsel %vm279, %v1124, 0
  %v1232 = vsel %vm279, %v1128, 0
  %v1235 = vsel %vm279, %v1132, 0
  %v1238 = vsel %vm279, %v1136, 0
  %v1241 = vsel %vm279, %v1140, 0
  %v1244 = vsel %vm279, %v1144, 0
  %v1247 = vsel %vm279, %v1148, 0
  %v1250 = vsel %vm279, %v1152, 0
  %v1253 = vsel %vm279, %v1156, 0
  %v1256 = vsel %vm279, %v1160, 0
  %v1259 = vsel %vm279, %v1164, 0
  %v1262 = vsel %vm279, %v1168, 0
  %v1265 = vsel %vm279, %v1172, 0
  %v1268 = vsel %vm279, %v1171, 0
  %v1271 = vsel %vm322, %v1216, 0
  %v1274 = vsel %vm322, %v1217, 0
  %1276 = vmatpush.bf16.msra.mxu0 0
  %1277 = vmatpush.bf16.msra.mxu0 0
  %1278 = vmatpush.bf16.msra.mxu0 %v1271
  %1279 = vmatpush.bf16.msra.mxu0 %v1214
  %1280 = vmatpush.bf16.msra.mxu0 %v1212
  %1281 = vmatpush.bf16.msra.mxu0 %v1210
  %1282 = vmatpush.bf16.msra.mxu0 %v1208
  %1283 = vmatpush.bf16.msra.mxu0 %v1206
  %1284 = vmatmul.bf16.gmra.mxu0 %v1229
  %v1285 = vpop.f32.mrf.mxu0
  %v1286 = vadd.f32 0.0, %v1285
  %v1287 = vpop.f32.mrf.mxu0
  %v1288 = vadd.f32 0.0, %v1287
  %1289 = vmatmul.bf16.gmra.mxu0 %v1232
  %v1290 = vpop.f32.mrf.mxu0
  %v1291 = vadd.f32 0.0, %v1290
  %v1292 = vpop.f32.mrf.mxu0
  %v1293 = vadd.f32 0.0, %v1292
  %1294 = vmatmul.bf16.gmra.mxu0 %v1235
  %v1295 = vpop.f32.mrf.mxu0
  %v1296 = vadd.f32 0.0, %v1295
  %v1297 = vpop.f32.mrf.mxu0
  %v1298 = vadd.f32 0.0, %v1297
  %1299 = vmatmul.bf16.gmra.mxu0 %v1238
  %v1300 = vpop.f32.mrf.mxu0
  %v1301 = vadd.f32 0.0, %v1300
  %v1302 = vpop.f32.mrf.mxu0
  %v1303 = vadd.f32 0.0, %v1302
  %1304 = vmatmul.bf16.gmra.mxu0 %v1241
  %v1305 = vpop.f32.mrf.mxu0
  %v1306 = vadd.f32 0.0, %v1305
  %v1307 = vpop.f32.mrf.mxu0
  %v1308 = vadd.f32 0.0, %v1307
  %1309 = vmatmul.bf16.gmra.mxu0 %v1244
  %v1310 = vpop.f32.mrf.mxu0
  %v1311 = vadd.f32 0.0, %v1310
  %v1312 = vpop.f32.mrf.mxu0
  %v1313 = vadd.f32 0.0, %v1312
  %1314 = vmatmul.bf16.gmra.mxu0 %v1247
  %v1315 = vpop.f32.mrf.mxu0
  %v1316 = vadd.f32 0.0, %v1315
  %v1317 = vpop.f32.mrf.mxu0
  %v1318 = vadd.f32 0.0, %v1317
  %1319 = vmatmul.bf16.gmra.mxu0 %v1250
  %v1320 = vpop.f32.mrf.mxu0
  %v1321 = vadd.f32 0.0, %v1320
  %v1322 = vpop.f32.mrf.mxu0
  %v1323 = vadd.f32 0.0, %v1322
  %1324 = vmatmul.bf16.gmra.mxu0 %v1253
  %v1325 = vpop.f32.mrf.mxu0
  %v1326 = vadd.f32 0.0, %v1325
  %v1327 = vpop.f32.mrf.mxu0
  %v1328 = vadd.f32 0.0, %v1327
  %1329 = vmatmul.bf16.gmra.mxu0 %v1256
  %v1330 = vpop.f32.mrf.mxu0
  %v1331 = vadd.f32 0.0, %v1330
  %v1332 = vpop.f32.mrf.mxu0
  %v1333 = vadd.f32 0.0, %v1332
  %1334 = vmatmul.bf16.gmra.mxu0 %v1259
  %v1335 = vpop.f32.mrf.mxu0
  %v1336 = vadd.f32 0.0, %v1335
  %v1337 = vpop.f32.mrf.mxu0
  %v1338 = vadd.f32 0.0, %v1337
  %1339 = vmatmul.bf16.gmra.mxu0 %v1262
  %v1340 = vpop.f32.mrf.mxu0
  %v1341 = vadd.f32 0.0, %v1340
  %v1342 = vpop.f32.mrf.mxu0
  %v1343 = vadd.f32 0.0, %v1342
  %1344 = vmatmul.bf16.gmra.mxu0 %v1265
  %v1345 = vpop.f32.mrf.mxu0
  %v1346 = vadd.f32 0.0, %v1345
  %v1347 = vpop.f32.mrf.mxu0
  %v1348 = vadd.f32 0.0, %v1347
  %1349 = vmatmul.bf16.gmra.mxu0 %v1268
  %v1350 = vpop.f32.mrf.mxu0
  %v1351 = vadd.f32 0.0, %v1350
  %v1352 = vpop.f32.mrf.mxu0
  %v1353 = vadd.f32 0.0, %v1352
  %1354 = vdwg.mxu0
  %1355 = vmatpush.bf16.msra.mxu0 0
  %1356 = vmatpush.bf16.msra.mxu0 0
  %1357 = vmatpush.bf16.msra.mxu0 %v1274
  %1358 = vmatpush.bf16.msra.mxu0 %v1215
  %1359 = vmatpush.bf16.msra.mxu0 %v1213
  %1360 = vmatpush.bf16.msra.mxu0 %v1211
  %1361 = vmatpush.bf16.msra.mxu0 %v1209
  %1362 = vmatpush.bf16.msra.mxu0 %v1207
  %1363 = vmatmul.bf16.gmra.mxu0 %v1229
  %v1364 = vpop.f32.mrf.mxu0
  %v1365 = vadd.f32 0.0, %v1364
  %v1366 = vpop.f32.mrf.mxu0
  %v1367 = vadd.f32 0.0, %v1366
  %1368 = vmatmul.bf16.gmra.mxu0 %v1232
  %v1369 = vpop.f32.mrf.mxu0
  %v1370 = vadd.f32 0.0, %v1369
  %v1371 = vpop.f32.mrf.mxu0
  %v1372 = vadd.f32 0.0, %v1371
  %1373 = vmatmul.bf16.gmra.mxu0 %v1235
  %v1374 = vpop.f32.mrf.mxu0
  %v1375 = vadd.f32 0.0, %v1374
  %v1376 = vpop.f32.mrf.mxu0
  %v1377 = vadd.f32 0.0, %v1376
  %1378 = vmatmul.bf16.gmra.mxu0 %v1238
  %v1379 = vpop.f32.mrf.mxu0
  %v1380 = vadd.f32 0.0, %v1379
  %v1381 = vpop.f32.mrf.mxu0
  %v1382 = vadd.f32 0.0, %v1381
  %1383 = vmatmul.bf16.gmra.mxu0 %v1241
  %v1384 = vpop.f32.mrf.mxu0
  %v1385 = vadd.f32 0.0, %v1384
  %v1386 = vpop.f32.mrf.mxu0
  %v1387 = vadd.f32 0.0, %v1386
  %1388 = vmatmul.bf16.gmra.mxu0 %v1244
  %v1389 = vpop.f32.mrf.mxu0
  %v1390 = vadd.f32 0.0, %v1389
  %v1391 = vpop.f32.mrf.mxu0
  %v1392 = vadd.f32 0.0, %v1391
  %1393 = vmatmul.bf16.gmra.mxu0 %v1247
  %v1394 = vpop.f32.mrf.mxu0
  %v1395 = vadd.f32 0.0, %v1394
  %v1396 = vpop.f32.mrf.mxu0
  %v1397 = vadd.f32 0.0, %v1396
  %1398 = vmatmul.bf16.gmra.mxu0 %v1250
  %v1399 = vpop.f32.mrf.mxu0
  %v1400 = vadd.f32 0.0, %v1399
  %v1401 = vpop.f32.mrf.mxu0
  %v1402 = vadd.f32 0.0, %v1401
  %1403 = vmatmul.bf16.gmra.mxu0 %v1253
  %v1404 = vpop.f32.mrf.mxu0
  %v1405 = vadd.f32 0.0, %v1404
  %v1406 = vpop.f32.mrf.mxu0
  %v1407 = vadd.f32 0.0, %v1406
  %1408 = vmatmul.bf16.gmra.mxu0 %v1256
  %v1409 = vpop.f32.mrf.mxu0
  %v1410 = vadd.f32 0.0, %v1409
  %v1411 = vpop.f32.mrf.mxu0
  %v1412 = vadd.f32 0.0, %v1411
  %1413 = vmatmul.bf16.gmra.mxu0 %v1259
  %v1414 = vpop.f32.mrf.mxu0
  %v1415 = vadd.f32 0.0, %v1414
  %v1416 = vpop.f32.mrf.mxu0
  %v1417 = vadd.f32 0.0, %v1416
  %1418 = vmatmul.bf16.gmra.mxu0 %v1262
  %v1419 = vpop.f32.mrf.mxu0
  %v1420 = vadd.f32 0.0, %v1419
  %v1421 = vpop.f32.mrf.mxu0
  %v1422 = vadd.f32 0.0, %v1421
  %1423 = vmatmul.bf16.gmra.mxu0 %v1265
  %v1424 = vpop.f32.mrf.mxu0
  %v1425 = vadd.f32 0.0, %v1424
  %v1426 = vpop.f32.mrf.mxu0
  %v1427 = vadd.f32 0.0, %v1426
  %1428 = vmatmul.bf16.gmra.mxu0 %v1268
  %v1429 = vpop.f32.mrf.mxu0
  %v1430 = vadd.f32 0.0, %v1429
  %v1431 = vpop.f32.mrf.mxu0
  %v1432 = vadd.f32 0.0, %v1431
  %1433 = vdwg.mxu0
  %v1434 = vadd.f32 %v1049, %v1286
  %v1435 = vadd.f32 %v1050, %v1365
  %v1436 = vadd.f32 %v1051, %v1288
  %v1437 = vadd.f32 %v1052, %v1367
  %v1438 = vadd.f32 %v1053, %v1291
  %v1439 = vadd.f32 %v1054, %v1370
  %v1440 = vadd.f32 %v1055, %v1293
  %v1441 = vadd.f32 %v1056, %v1372
  %v1442 = vadd.f32 %v1057, %v1296
  %v1443 = vadd.f32 %v1058, %v1375
  %v1444 = vadd.f32 %v1059, %v1298
  %v1445 = vadd.f32 %v1060, %v1377
  %v1446 = vadd.f32 %v1061, %v1301
  %v1447 = vadd.f32 %v1062, %v1380
  %v1448 = vadd.f32 %v1063, %v1303
  %v1449 = vadd.f32 %v1064, %v1382
  %v1450 = vadd.f32 %v1065, %v1306
  %v1451 = vadd.f32 %v1066, %v1385
  %v1452 = vadd.f32 %v1067, %v1308
  %v1453 = vadd.f32 %v1068, %v1387
  %v1454 = vadd.f32 %v1069, %v1311
  %v1455 = vadd.f32 %v1070, %v1390
  %v1456 = vadd.f32 %v1071, %v1313
  %v1457 = vadd.f32 %v1072, %v1392
  %v1458 = vadd.f32 %v1073, %v1316
  %v1459 = vadd.f32 %v1074, %v1395
  %v1460 = vadd.f32 %v1075, %v1318
  %v1461 = vadd.f32 %v1076, %v1397
  %v1462 = vadd.f32 %v1077, %v1321
  %v1463 = vadd.f32 %v1078, %v1400
  %v1464 = vadd.f32 %v1079, %v1323
  %v1465 = vadd.f32 %v1080, %v1402
  %v1466 = vadd.f32 %v1081, %v1326
  %v1467 = vadd.f32 %v1082, %v1405
  %v1468 = vadd.f32 %v1083, %v1328
  %v1469 = vadd.f32 %v1084, %v1407
  %v1470 = vadd.f32 %v1085, %v1331
  %v1471 = vadd.f32 %v1086, %v1410
  %v1472 = vadd.f32 %v1087, %v1333
  %v1473 = vadd.f32 %v1088, %v1412
  %v1474 = vadd.f32 %v1089, %v1336
  %v1475 = vadd.f32 %v1090, %v1415
  %v1476 = vadd.f32 %v1091, %v1338
  %v1477 = vadd.f32 %v1092, %v1417
  %v1478 = vadd.f32 %v1093, %v1341
  %v1479 = vadd.f32 %v1094, %v1420
  %v1480 = vadd.f32 %v1095, %v1343
  %v1481 = vadd.f32 %v1096, %v1422
  %v1482 = vadd.f32 %v1097, %v1346
  %v1483 = vadd.f32 %v1098, %v1425
  %v1484 = vadd.f32 %v1099, %v1348
  %v1485 = vadd.f32 %v1100, %v1427
  %v1486 = vadd.f32 %v1101, %v1351
  %v1487 = vadd.f32 %v1102, %v1430
  %v1488 = vadd.f32 %v1103, %v1353
  %v1489 = vadd.f32 %v1104, %v1432
  %s1490 = scalar_lea.vmem %s1, 352
  %v1491 = vld [vmem:[%s1490] sm:$0xff]
  %v1492 = vld [vmem:[%s1490 + $0x8] sm:$0xff]
  %v1493 = vld [vmem:[%s1490 + $0x10] sm:$0xff]
  %v1494 = vld [vmem:[%s1490 + $0x18] sm:$0xff]
  %v1495 = vld [vmem:[%s1490 + $0x20] sm:$0xff]
  %v1496 = vld [vmem:[%s1490 + $0x28] sm:$0xff]
  %v1497 = vld [vmem:[%s1490 + $0x30] sm:$0xff]
  %v1498 = vld [vmem:[%s1490 + $0x38] sm:$0xff]
  %v1499 = vld [vmem:[%s1490 + $0x40] sm:$0xff]
  %v1500 = vld [vmem:[%s1490 + $0x48] sm:$0xff]
  %v1501 = vld [vmem:[%s1490 + $0x50] sm:$0x33]
  %vm1502 = vcmask 1045504
  %v1503 = vrot.slane %v75, 2
  %v1504 = vrot.slane %v76, 2
  %v1505 = vsel %vm1502, %v1503, %v1504
  %v1506 = vrot.slane %v77, 2
  %v1507 = vsel %vm1502, %v1504, %v1506
  %v1508 = vrot.slane %v78, 2
  %v1509 = vsel %vm1502, %v1506, %v1508
  %v1510 = vrot.slane %v79, 2
  %v1511 = vsel %vm1502, %v1508, %v1510
  %v1512 = vrot.slane %v80, 2
  %v1513 = vsel %vm1502, %v1510, %v1512
  %v1514 = vrot.slane %v81, 2
  %v1515 = vsel %vm1502, %v1512, %v1514
  %v1516 = vrot.slane %v82, 2
  %v1517 = vsel %vm1502, %v1514, %v1516
  %v1518 = vrot.slane %v83, 2
  %v1519 = vsel %vm1502, %v1516, %v1518
  %v1520 = vrot.slane %v84, 2
  %v1521 = vsel %vm1502, %v1518, %v1520
  %v1522 = vrot.slane %v85, 2
  %v1523 = vsel %vm1502, %v1520, %v1522
  %v1524 = vrot.slane %v86, 2
  %v1525 = vsel %vm1502, %v1522, %v1524
  %v1526 = vrot.slane %v87, 2
  %v1527 = vsel %vm1502, %v1524, %v1526
  %v1528 = vrot.slane %v88, 2
  %v1529 = vsel %vm1502, %v1526, %v1528
  %v1541 = vunpack.c.l.b16 %v1491
  %v1542 = vunpack.c.h.b16 %v1491
  %v1543 = vunpack.c.l.b16 %v1492
  %v1544 = vunpack.c.h.b16 %v1492
  %v1545 = vunpack.c.l.b16 %v1493
  %v1546 = vunpack.c.h.b16 %v1493
  %v1547 = vunpack.c.l.b16 %v1494
  %v1548 = vunpack.c.h.b16 %v1494
  %v1549 = vunpack.c.l.b16 %v1495
  %v1550 = vunpack.c.h.b16 %v1495
  %v1551 = vunpack.c.l.b16 %v1496
  %v1552 = vunpack.c.h.b16 %v1496
  %v1553 = vunpack.c.l.b16 %v1497
  %v1554 = vunpack.c.h.b16 %v1497
  %v1555 = vunpack.c.l.b16 %v1498
  %v1556 = vunpack.c.h.b16 %v1498
  %v1557 = vunpack.c.l.b16 %v1499
  %v1558 = vunpack.c.h.b16 %v1499
  %v1559 = vunpack.c.l.b16 %v1500
  %v1560 = vunpack.c.h.b16 %v1500
  %v1561 = vunpack.c.l.b16 %v1501
  %v1562 = vunpack.c.h.b16 %v1501
  %v1563 = vpack.c.b16 %v1543, %v1541
  %v1564 = vpack.c.b16 %v1544, %v1542
  %v1565 = vpack.c.b16 %v1547, %v1545
  %v1566 = vpack.c.b16 %v1548, %v1546
  %v1567 = vpack.c.b16 %v1551, %v1549
  %v1568 = vpack.c.b16 %v1552, %v1550
  %v1569 = vpack.c.b16 %v1555, %v1553
  %v1570 = vpack.c.b16 %v1556, %v1554
  %v1571 = vpack.c.b16 %v1559, %v1557
  %v1572 = vpack.c.b16 %v1560, %v1558
  %v1573 = vpack.c.b16 %v1561, %v1561
  %v1574 = vpack.c.b16 %v1562, %v1562
  %v1586 = vsel %vm279, %v1505, 0
  %v1589 = vsel %vm279, %v1507, 0
  %v1592 = vsel %vm279, %v1509, 0
  %v1595 = vsel %vm279, %v1511, 0
  %v1598 = vsel %vm279, %v1513, 0
  %v1601 = vsel %vm279, %v1515, 0
  %v1604 = vsel %vm279, %v1517, 0
  %v1607 = vsel %vm279, %v1519, 0
  %v1610 = vsel %vm279, %v1521, 0
  %v1613 = vsel %vm279, %v1523, 0
  %v1616 = vsel %vm279, %v1525, 0
  %v1619 = vsel %vm279, %v1527, 0
  %v1622 = vsel %vm279, %v1529, 0
  %v1625 = vsel %vm279, %v1528, 0
  %v1628 = vsel %vm322, %v1573, 0
  %v1631 = vsel %vm322, %v1574, 0
  %1633 = vmatpush.bf16.msra.mxu0 0
  %1634 = vmatpush.bf16.msra.mxu0 0
  %1635 = vmatpush.bf16.msra.mxu0 %v1628
  %1636 = vmatpush.bf16.msra.mxu0 %v1571
  %1637 = vmatpush.bf16.msra.mxu0 %v1569
  %1638 = vmatpush.bf16.msra.mxu0 %v1567
  %1639 = vmatpush.bf16.msra.mxu0 %v1565
  %1640 = vmatpush.bf16.msra.mxu0 %v1563
  %1641 = vmatmul.bf16.gmra.mxu0 %v1586
  %v1642 = vpop.f32.mrf.mxu0
  %v1643 = vadd.f32 0.0, %v1642
  %v1644 = vpop.f32.mrf.mxu0
  %v1645 = vadd.f32 0.0, %v1644
  %1646 = vmatmul.bf16.gmra.mxu0 %v1589
  %v1647 = vpop.f32.mrf.mxu0
  %v1648 = vadd.f32 0.0, %v1647
  %v1649 = vpop.f32.mrf.mxu0
  %v1650 = vadd.f32 0.0, %v1649
  %1651 = vmatmul.bf16.gmra.mxu0 %v1592
  %v1652 = vpop.f32.mrf.mxu0
  %v1653 = vadd.f32 0.0, %v1652
  %v1654 = vpop.f32.mrf.mxu0
  %v1655 = vadd.f32 0.0, %v1654
  %1656 = vmatmul.bf16.gmra.mxu0 %v1595
  %v1657 = vpop.f32.mrf.mxu0
  %v1658 = vadd.f32 0.0, %v1657
  %v1659 = vpop.f32.mrf.mxu0
  %v1660 = vadd.f32 0.0, %v1659
  %1661 = vmatmul.bf16.gmra.mxu0 %v1598
  %v1662 = vpop.f32.mrf.mxu0
  %v1663 = vadd.f32 0.0, %v1662
  %v1664 = vpop.f32.mrf.mxu0
  %v1665 = vadd.f32 0.0, %v1664
  %1666 = vmatmul.bf16.gmra.mxu0 %v1601
  %v1667 = vpop.f32.mrf.mxu0
  %v1668 = vadd.f32 0.0, %v1667
  %v1669 = vpop.f32.mrf.mxu0
  %v1670 = vadd.f32 0.0, %v1669
  %1671 = vmatmul.bf16.gmra.mxu0 %v1604
  %v1672 = vpop.f32.mrf.mxu0
  %v1673 = vadd.f32 0.0, %v1672
  %v1674 = vpop.f32.mrf.mxu0
  %v1675 = vadd.f32 0.0, %v1674
  %1676 = vmatmul.bf16.gmra.mxu0 %v1607
  %v1677 = vpop.f32.mrf.mxu0
  %v1678 = vadd.f32 0.0, %v1677
  %v1679 = vpop.f32.mrf.mxu0
  %v1680 = vadd.f32 0.0, %v1679
  %1681 = vmatmul.bf16.gmra.mxu0 %v1610
  %v1682 = vpop.f32.mrf.mxu0
  %v1683 = vadd.f32 0.0, %v1682
  %v1684 = vpop.f32.mrf.mxu0
  %v1685 = vadd.f32 0.0, %v1684
  %1686 = vmatmul.bf16.gmra.mxu0 %v1613
  %v1687 = vpop.f32.mrf.mxu0
  %v1688 = vadd.f32 0.0, %v1687
  %v1689 = vpop.f32.mrf.mxu0
  %v1690 = vadd.f32 0.0, %v1689
  %1691 = vmatmul.bf16.gmra.mxu0 %v1616
  %v1692 = vpop.f32.mrf.mxu0
  %v1693 = vadd.f32 0.0, %v1692
  %v1694 = vpop.f32.mrf.mxu0
  %v1695 = vadd.f32 0.0, %v1694
  %1696 = vmatmul.bf16.gmra.mxu0 %v1619
  %v1697 = vpop.f32.mrf.mxu0
  %v1698 = vadd.f32 0.0, %v1697
  %v1699 = vpop.f32.mrf.mxu0
  %v1700 = vadd.f32 0.0, %v1699
  %1701 = vmatmul.bf16.gmra.mxu0 %v1622
  %v1702 = vpop.f32.mrf.mxu0
  %v1703 = vadd.f32 0.0, %v1702
  %v1704 = vpop.f32.mrf.mxu0
  %v1705 = vadd.f32 0.0, %v1704
  %1706 = vmatmul.bf16.gmra.mxu0 %v1625
  %v1707 = vpop.f32.mrf.mxu0
  %v1708 = vadd.f32 0.0, %v1707
  %v1709 = vpop.f32.mrf.mxu0
  %v1710 = vadd.f32 0.0, %v1709
  %1711 = vdwg.mxu0
  %1712 = vmatpush.bf16.msra.mxu0 0
  %1713 = vmatpush.bf16.msra.mxu0 0
  %1714 = vmatpush.bf16.msra.mxu0 %v1631
  %1715 = vmatpush.bf16.msra.mxu0 %v1572
  %1716 = vmatpush.bf16.msra.mxu0 %v1570
  %1717 = vmatpush.bf16.msra.mxu0 %v1568
  %1718 = vmatpush.bf16.msra.mxu0 %v1566
  %1719 = vmatpush.bf16.msra.mxu0 %v1564
  %1720 = vmatmul.bf16.gmra.mxu0 %v1586
  %v1721 = vpop.f32.mrf.mxu0
  %v1722 = vadd.f32 0.0, %v1721
  %v1723 = vpop.f32.mrf.mxu0
  %v1724 = vadd.f32 0.0, %v1723
  %1725 = vmatmul.bf16.gmra.mxu0 %v1589
  %v1726 = vpop.f32.mrf.mxu0
  %v1727 = vadd.f32 0.0, %v1726
  %v1728 = vpop.f32.mrf.mxu0
  %v1729 = vadd.f32 0.0, %v1728
  %1730 = vmatmul.bf16.gmra.mxu0 %v1592
  %v1731 = vpop.f32.mrf.mxu0
  %v1732 = vadd.f32 0.0, %v1731
  %v1733 = vpop.f32.mrf.mxu0
  %v1734 = vadd.f32 0.0, %v1733
  %1735 = vmatmul.bf16.gmra.mxu0 %v1595
  %v1736 = vpop.f32.mrf.mxu0
  %v1737 = vadd.f32 0.0, %v1736
  %v1738 = vpop.f32.mrf.mxu0
  %v1739 = vadd.f32 0.0, %v1738
  %1740 = vmatmul.bf16.gmra.mxu0 %v1598
  %v1741 = vpop.f32.mrf.mxu0
  %v1742 = vadd.f32 0.0, %v1741
  %v1743 = vpop.f32.mrf.mxu0
  %v1744 = vadd.f32 0.0, %v1743
  %1745 = vmatmul.bf16.gmra.mxu0 %v1601
  %v1746 = vpop.f32.mrf.mxu0
  %v1747 = vadd.f32 0.0, %v1746
  %v1748 = vpop.f32.mrf.mxu0
  %v1749 = vadd.f32 0.0, %v1748
  %1750 = vmatmul.bf16.gmra.mxu0 %v1604
  %v1751 = vpop.f32.mrf.mxu0
  %v1752 = vadd.f32 0.0, %v1751
  %v1753 = vpop.f32.mrf.mxu0
  %v1754 = vadd.f32 0.0, %v1753
  %1755 = vmatmul.bf16.gmra.mxu0 %v1607
  %v1756 = vpop.f32.mrf.mxu0
  %v1757 = vadd.f32 0.0, %v1756
  %v1758 = vpop.f32.mrf.mxu0
  %v1759 = vadd.f32 0.0, %v1758
  %1760 = vmatmul.bf16.gmra.mxu0 %v1610
  %v1761 = vpop.f32.mrf.mxu0
  %v1762 = vadd.f32 0.0, %v1761
  %v1763 = vpop.f32.mrf.mxu0
  %v1764 = vadd.f32 0.0, %v1763
  %1765 = vmatmul.bf16.gmra.mxu0 %v1613
  %v1766 = vpop.f32.mrf.mxu0
  %v1767 = vadd.f32 0.0, %v1766
  %v1768 = vpop.f32.mrf.mxu0
  %v1769 = vadd.f32 0.0, %v1768
  %1770 = vmatmul.bf16.gmra.mxu0 %v1616
  %v1771 = vpop.f32.mrf.mxu0
  %v1772 = vadd.f32 0.0, %v1771
  %v1773 = vpop.f32.mrf.mxu0
  %v1774 = vadd.f32 0.0, %v1773
  %1775 = vmatmul.bf16.gmra.mxu0 %v1619
  %v1776 = vpop.f32.mrf.mxu0
  %v1777 = vadd.f32 0.0, %v1776
  %v1778 = vpop.f32.mrf.mxu0
  %v1779 = vadd.f32 0.0, %v1778
  %1780 = vmatmul.bf16.gmra.mxu0 %v1622
  %v1781 = vpop.f32.mrf.mxu0
  %v1782 = vadd.f32 0.0, %v1781
  %v1783 = vpop.f32.mrf.mxu0
  %v1784 = vadd.f32 0.0, %v1783
  %1785 = vmatmul.bf16.gmra.mxu0 %v1625
  %v1786 = vpop.f32.mrf.mxu0
  %v1787 = vadd.f32 0.0, %v1786
  %v1788 = vpop.f32.mrf.mxu0
  %v1789 = vadd.f32 0.0, %v1788
  %1790 = vdwg.mxu0
  %v1791 = vadd.f32 %v1434, %v1643
  %v1792 = vadd.f32 %v1435, %v1722
  %v1793 = vadd.f32 %v1436, %v1645
  %v1794 = vadd.f32 %v1437, %v1724
  %v1795 = vadd.f32 %v1438, %v1648
  %v1796 = vadd.f32 %v1439, %v1727
  %v1797 = vadd.f32 %v1440, %v1650
  %v1798 = vadd.f32 %v1441, %v1729
  %v1799 = vadd.f32 %v1442, %v1653
  %v1800 = vadd.f32 %v1443, %v1732
  %v1801 = vadd.f32 %v1444, %v1655
  %v1802 = vadd.f32 %v1445, %v1734
  %v1803 = vadd.f32 %v1446, %v1658
  %v1804 = vadd.f32 %v1447, %v1737
  %v1805 = vadd.f32 %v1448, %v1660
  %v1806 = vadd.f32 %v1449, %v1739
  %v1807 = vadd.f32 %v1450, %v1663
  %v1808 = vadd.f32 %v1451, %v1742
  %v1809 = vadd.f32 %v1452, %v1665
  %v1810 = vadd.f32 %v1453, %v1744
  %v1811 = vadd.f32 %v1454, %v1668
  %v1812 = vadd.f32 %v1455, %v1747
  %v1813 = vadd.f32 %v1456, %v1670
  %v1814 = vadd.f32 %v1457, %v1749
  %v1815 = vadd.f32 %v1458, %v1673
  %v1816 = vadd.f32 %v1459, %v1752
  %v1817 = vadd.f32 %v1460, %v1675
  %v1818 = vadd.f32 %v1461, %v1754
  %v1819 = vadd.f32 %v1462, %v1678
  %v1820 = vadd.f32 %v1463, %v1757
  %v1821 = vadd.f32 %v1464, %v1680
  %v1822 = vadd.f32 %v1465, %v1759
  %v1823 = vadd.f32 %v1466, %v1683
  %v1824 = vadd.f32 %v1467, %v1762
  %v1825 = vadd.f32 %v1468, %v1685
  %v1826 = vadd.f32 %v1469, %v1764
  %v1827 = vadd.f32 %v1470, %v1688
  %v1828 = vadd.f32 %v1471, %v1767
  %v1829 = vadd.f32 %v1472, %v1690
  %v1830 = vadd.f32 %v1473, %v1769
  %v1831 = vadd.f32 %v1474, %v1693
  %v1832 = vadd.f32 %v1475, %v1772
  %v1833 = vadd.f32 %v1476, %v1695
  %v1834 = vadd.f32 %v1477, %v1774
  %v1835 = vadd.f32 %v1478, %v1698
  %v1836 = vadd.f32 %v1479, %v1777
  %v1837 = vadd.f32 %v1480, %v1700
  %v1838 = vadd.f32 %v1481, %v1779
  %v1839 = vadd.f32 %v1482, %v1703
  %v1840 = vadd.f32 %v1483, %v1782
  %v1841 = vadd.f32 %v1484, %v1705
  %v1842 = vadd.f32 %v1485, %v1784
  %v1843 = vadd.f32 %v1486, %v1708
  %v1844 = vadd.f32 %v1487, %v1787
  %v1845 = vadd.f32 %v1488, %v1710
  %v1846 = vadd.f32 %v1489, %v1789
  %v1847 = vld [vmem:[%s2] sm:$0x3]
  %v1849 = vperm.slane %v1847, 0
  %v1850 = vperm.slane %v1847, 1
  %v1853 = vadd.f32 %v1791, %v1849
  %v1854 = vadd.f32 %v1792, %v1850
  %v1855 = vadd.f32 %v1793, %v1849
  %v1856 = vadd.f32 %v1794, %v1850
  %v1857 = vadd.f32 %v1795, %v1849
  %v1858 = vadd.f32 %v1796, %v1850
  %v1859 = vadd.f32 %v1797, %v1849
  %v1860 = vadd.f32 %v1798, %v1850
  %v1861 = vadd.f32 %v1799, %v1849
  %v1862 = vadd.f32 %v1800, %v1850
  %v1863 = vadd.f32 %v1801, %v1849
  %v1864 = vadd.f32 %v1802, %v1850
  %v1865 = vadd.f32 %v1803, %v1849
  %v1866 = vadd.f32 %v1804, %v1850
  %v1867 = vadd.f32 %v1805, %v1849
  %v1868 = vadd.f32 %v1806, %v1850
  %v1869 = vadd.f32 %v1807, %v1849
  %v1870 = vadd.f32 %v1808, %v1850
  %v1871 = vadd.f32 %v1809, %v1849
  %v1872 = vadd.f32 %v1810, %v1850
  %v1873 = vadd.f32 %v1811, %v1849
  %v1874 = vadd.f32 %v1812, %v1850
  %v1875 = vadd.f32 %v1813, %v1849
  %v1876 = vadd.f32 %v1814, %v1850
  %v1877 = vadd.f32 %v1815, %v1849
  %v1878 = vadd.f32 %v1816, %v1850
  %v1879 = vadd.f32 %v1817, %v1849
  %v1880 = vadd.f32 %v1818, %v1850
  %v1881 = vadd.f32 %v1819, %v1849
  %v1882 = vadd.f32 %v1820, %v1850
  %v1883 = vadd.f32 %v1821, %v1849
  %v1884 = vadd.f32 %v1822, %v1850
  %v1885 = vadd.f32 %v1823, %v1849
  %v1886 = vadd.f32 %v1824, %v1850
  %v1887 = vadd.f32 %v1825, %v1849
  %v1888 = vadd.f32 %v1826, %v1850
  %v1889 = vadd.f32 %v1827, %v1849
  %v1890 = vadd.f32 %v1828, %v1850
  %v1891 = vadd.f32 %v1829, %v1849
  %v1892 = vadd.f32 %v1830, %v1850
  %v1893 = vadd.f32 %v1831, %v1849
  %v1894 = vadd.f32 %v1832, %v1850
  %v1895 = vadd.f32 %v1833, %v1849
  %v1896 = vadd.f32 %v1834, %v1850
  %v1897 = vadd.f32 %v1835, %v1849
  %v1898 = vadd.f32 %v1836, %v1850
  %v1899 = vadd.f32 %v1837, %v1849
  %v1900 = vadd.f32 %v1838, %v1850
  %v1901 = vadd.f32 %v1839, %v1849
  %v1902 = vadd.f32 %v1840, %v1850
  %v1903 = vadd.f32 %v1841, %v1849
  %v1904 = vadd.f32 %v1842, %v1850
  %v1905 = vadd.f32 %v1843, %v1849
  %v1906 = vadd.f32 %v1844, %v1850
  %v1907 = vadd.f32 %v1845, %v1849
  %v1908 = vadd.f32 %v1846, %v1850
  %v1909 = vmax.f32 %v1853, 0.0
  %v1910 = vmax.f32 %v1854, 0.0
  %v1911 = vmax.f32 %v1855, 0.0
  %v1912 = vmax.f32 %v1856, 0.0
  %v1913 = vmax.f32 %v1857, 0.0
  %v1914 = vmax.f32 %v1858, 0.0
  %v1915 = vmax.f32 %v1859, 0.0
  %v1916 = vmax.f32 %v1860, 0.0
  %v1917 = vmax.f32 %v1861, 0.0
  %v1918 = vmax.f32 %v1862, 0.0
  %v1919 = vmax.f32 %v1863, 0.0
  %v1920 = vmax.f32 %v1864, 0.0
  %v1921 = vmax.f32 %v1865, 0.0
  %v1922 = vmax.f32 %v1866, 0.0
  %v1923 = vmax.f32 %v1867, 0.0
  %v1924 = vmax.f32 %v1868, 0.0
  %v1925 = vmax.f32 %v1869, 0.0
  %v1926 = vmax.f32 %v1870, 0.0
  %v1927 = vmax.f32 %v1871, 0.0
  %v1928 = vmax.f32 %v1872, 0.0
  %v1929 = vmax.f32 %v1873, 0.0
  %v1930 = vmax.f32 %v1874, 0.0
  %v1931 = vmax.f32 %v1875, 0.0
  %v1932 = vmax.f32 %v1876, 0.0
  %v1933 = vmax.f32 %v1877, 0.0
  %v1934 = vmax.f32 %v1878, 0.0
  %v1935 = vmax.f32 %v1879, 0.0
  %v1936 = vmax.f32 %v1880, 0.0
  %v1937 = vmax.f32 %v1881, 0.0
  %v1938 = vmax.f32 %v1882, 0.0
  %v1939 = vmax.f32 %v1883, 0.0
  %v1940 = vmax.f32 %v1884, 0.0
  %v1941 = vmax.f32 %v1885, 0.0
  %v1942 = vmax.f32 %v1886, 0.0
  %v1943 = vmax.f32 %v1887, 0.0
  %v1944 = vmax.f32 %v1888, 0.0
  %v1945 = vmax.f32 %v1889, 0.0
  %v1946 = vmax.f32 %v1890, 0.0
  %v1947 = vmax.f32 %v1891, 0.0
  %v1948 = vmax.f32 %v1892, 0.0
  %v1949 = vmax.f32 %v1893, 0.0
  %v1950 = vmax.f32 %v1894, 0.0
  %v1951 = vmax.f32 %v1895, 0.0
  %v1952 = vmax.f32 %v1896, 0.0
  %v1953 = vmax.f32 %v1897, 0.0
  %v1954 = vmax.f32 %v1898, 0.0
  %v1955 = vmax.f32 %v1899, 0.0
  %v1956 = vmax.f32 %v1900, 0.0
  %v1957 = vmax.f32 %v1901, 0.0
  %v1958 = vmax.f32 %v1902, 0.0
  %v1959 = vmax.f32 %v1903, 0.0
  %v1960 = vmax.f32 %v1904, 0.0
  %v1961 = vmax.f32 %v1905, 0.0
  %v1962 = vmax.f32 %v1906, 0.0
  %v1963 = vmax.f32 %v1907, 0.0
  %v1964 = vmax.f32 %v1908, 0.0
  %2021 = vrot.lane.b32.xlu0 %v1909, 122
  %v2022 = vpop.permute.xlu0 %2021
  %2023 = vrot.lane.b32.xlu0 %v1910, 122
  %v2024 = vpop.permute.xlu0 %2023
  %2025 = vrot.lane.b32.xlu0 %v1911, 122
  %v2026 = vpop.permute.xlu0 %2025
  %2027 = vrot.lane.b32.xlu0 %v1912, 122
  %v2028 = vpop.permute.xlu0 %2027
  %2029 = vrot.lane.b32.xlu0 %v1913, 122
  %v2030 = vpop.permute.xlu0 %2029
  %2031 = vrot.lane.b32.xlu0 %v1914, 122
  %v2032 = vpop.permute.xlu0 %2031
  %2033 = vrot.lane.b32.xlu0 %v1915, 122
  %v2034 = vpop.permute.xlu0 %2033
  %2035 = vrot.lane.b32.xlu0 %v1916, 122
  %v2036 = vpop.permute.xlu0 %2035
  %2037 = vrot.lane.b32.xlu0 %v1917, 122
  %v2038 = vpop.permute.xlu0 %2037
  %2039 = vrot.lane.b32.xlu0 %v1918, 122
  %v2040 = vpop.permute.xlu0 %2039
  %2041 = vrot.lane.b32.xlu0 %v1919, 122
  %v2042 = vpop.permute.xlu0 %2041
  %2043 = vrot.lane.b32.xlu0 %v1920, 122
  %v2044 = vpop.permute.xlu0 %2043
  %2045 = vrot.lane.b32.xlu0 %v1921, 122
  %v2046 = vpop.permute.xlu0 %2045
  %2047 = vrot.lane.b32.xlu0 %v1922, 122
  %v2048 = vpop.permute.xlu0 %2047
  %2049 = vrot.lane.b32.xlu0 %v1923, 122
  %v2050 = vpop.permute.xlu0 %2049
  %2051 = vrot.lane.b32.xlu0 %v1924, 122
  %v2052 = vpop.permute.xlu0 %2051
  %2053 = vrot.lane.b32.xlu0 %v1925, 122
  %v2054 = vpop.permute.xlu0 %2053
  %2055 = vrot.lane.b32.xlu0 %v1926, 122
  %v2056 = vpop.permute.xlu0 %2055
  %2057 = vrot.lane.b32.xlu0 %v1927, 122
  %v2058 = vpop.permute.xlu0 %2057
  %2059 = vrot.lane.b32.xlu0 %v1928, 122
  %v2060 = vpop.permute.xlu0 %2059
  %2061 = vrot.lane.b32.xlu0 %v1929, 122
  %v2062 = vpop.permute.xlu0 %2061
  %2063 = vrot.lane.b32.xlu0 %v1930, 122
  %v2064 = vpop.permute.xlu0 %2063
  %2065 = vrot.lane.b32.xlu0 %v1931, 122
  %v2066 = vpop.permute.xlu0 %2065
  %2067 = vrot.lane.b32.xlu0 %v1932, 122
  %v2068 = vpop.permute.xlu0 %2067
  %2069 = vrot.lane.b32.xlu0 %v1933, 122
  %v2070 = vpop.permute.xlu0 %2069
  %2071 = vrot.lane.b32.xlu0 %v1934, 122
  %v2072 = vpop.permute.xlu0 %2071
  %2073 = vrot.lane.b32.xlu0 %v1935, 122
  %v2074 = vpop.permute.xlu0 %2073
  %2075 = vrot.lane.b32.xlu0 %v1936, 122
  %v2076 = vpop.permute.xlu0 %2075
  %2077 = vrot.lane.b32.xlu0 %v1937, 122
  %v2078 = vpop.permute.xlu0 %2077
  %2079 = vrot.lane.b32.xlu0 %v1938, 122
  %v2080 = vpop.permute.xlu0 %2079
  %2081 = vrot.lane.b32.xlu0 %v1939, 122
  %v2082 = vpop.permute.xlu0 %2081
  %2083 = vrot.lane.b32.xlu0 %v1940, 122
  %v2084 = vpop.permute.xlu0 %2083
  %2085 = vrot.lane.b32.xlu0 %v1941, 122
  %v2086 = vpop.permute.xlu0 %2085
  %2087 = vrot.lane.b32.xlu0 %v1942, 122
  %v2088 = vpop.permute.xlu0 %2087
  %2089 = vrot.lane.b32.xlu0 %v1943, 122
  %v2090 = vpop.permute.xlu0 %2089
  %2091 = vrot.lane.b32.xlu0 %v1944, 122
  %v2092 = vpop.permute.xlu0 %2091
  %2093 = vrot.lane.b32.xlu0 %v1945, 122
  %v2094 = vpop.permute.xlu0 %2093
  %2095 = vrot.lane.b32.xlu0 %v1946, 122
  %v2096 = vpop.permute.xlu0 %2095
  %2097 = vrot.lane.b32.xlu0 %v1947, 122
  %v2098 = vpop.permute.xlu0 %2097
  %2099 = vrot.lane.b32.xlu0 %v1948, 122
  %v2100 = vpop.permute.xlu0 %2099
  %2101 = vrot.lane.b32.xlu0 %v1949, 122
  %v2102 = vpop.permute.xlu0 %2101
  %2103 = vrot.lane.b32.xlu0 %v1950, 122
  %v2104 = vpop.permute.xlu0 %2103
  %2105 = vrot.lane.b32.xlu0 %v1951, 122
  %v2106 = vpop.permute.xlu0 %2105
  %2107 = vrot.lane.b32.xlu0 %v1952, 122
  %v2108 = vpop.permute.xlu0 %2107
  %2109 = vrot.lane.b32.xlu0 %v1953, 122
  %v2110 = vpop.permute.xlu0 %2109
  %2111 = vrot.lane.b32.xlu0 %v1954, 122
  %v2112 = vpop.permute.xlu0 %2111
  %2113 = vrot.lane.b32.xlu0 %v1955, 122
  %v2114 = vpop.permute.xlu0 %2113
  %2115 = vrot.lane.b32.xlu0 %v1956, 122
  %v2116 = vpop.permute.xlu0 %2115
  %2117 = vrot.lane.b32.xlu0 %v1957, 122
  %v2118 = vpop.permute.xlu0 %2117
  %2119 = vrot.lane.b32.xlu0 %v1958, 122
  %v2120 = vpop.permute.xlu0 %2119
  %2121 = vrot.lane.b32.xlu0 %v1959, 122
  %v2122 = vpop.permute.xlu0 %2121
  %2123 = vrot.lane.b32.xlu0 %v1960, 122
  %v2124 = vpop.permute.xlu0 %2123
  %2125 = vrot.lane.b32.xlu0 %v1961, 122
  %v2126 = vpop.permute.xlu0 %2125
  %2127 = vrot.lane.b32.xlu0 %v1962, 122
  %v2128 = vpop.permute.xlu0 %2127
  %2129 = vrot.lane.b32.xlu0 %v1963, 122
  %v2130 = vpop.permute.xlu0 %2129
  %2131 = vrot.lane.b32.xlu0 %v1964, 122
  %v2132 = vpop.permute.xlu0 %2131
  %vm2133 = vcmask 998400
  %v2134 = vsel %vm2133, %v2022, %v2024
  %v2135 = vsel %vm2133, %v2026, %v2028
  %v2136 = vsel %vm2133, %v2030, %v2032
  %v2137 = vsel %vm2133, %v2034, %v2036
  %v2138 = vsel %vm2133, %v2038, %v2040
  %v2139 = vsel %vm2133, %v2042, %v2044
  %v2140 = vsel %vm2133, %v2046, %v2048
  %v2141 = vsel %vm2133, %v2050, %v2052
  %v2142 = vsel %vm2133, %v2054, %v2056
  %v2143 = vsel %vm2133, %v2058, %v2060
  %v2144 = vsel %vm2133, %v2062, %v2064
  %v2145 = vsel %vm2133, %v2066, %v2068
  %v2146 = vsel %vm2133, %v2070, %v2072
  %v2147 = vsel %vm2133, %v2074, %v2076
  %v2148 = vsel %vm2133, %v2078, %v2080
  %v2149 = vsel %vm2133, %v2082, %v2084
  %v2150 = vsel %vm2133, %v2086, %v2088
  %v2151 = vsel %vm2133, %v2090, %v2092
  %v2152 = vsel %vm2133, %v2094, %v2096
  %v2153 = vsel %vm2133, %v2098, %v2100
  %v2154 = vsel %vm2133, %v2102, %v2104
  %v2155 = vsel %vm2133, %v2106, %v2108
  %v2156 = vsel %vm2133, %v2110, %v2112
  %v2157 = vsel %vm2133, %v2114, %v2116
  %v2158 = vsel %vm2133, %v2118, %v2120
  %v2159 = vsel %vm2133, %v2122, %v2124
  %v2160 = vsel %vm2133, %v2126, %v2128
  %v2161 = vsel %vm2133, %v2130, %v2132
  %v2218 = vmax.f32 %v1909, %v2134
  %v2219 = vmax.f32 %v1910, %v2024
  %v2220 = vmax.f32 %v1911, %v2135
  %v2221 = vmax.f32 %v1912, %v2028
  %v2222 = vmax.f32 %v1913, %v2136
  %v2223 = vmax.f32 %v1914, %v2032
  %v2224 = vmax.f32 %v1915, %v2137
  %v2225 = vmax.f32 %v1916, %v2036
  %v2226 = vmax.f32 %v1917, %v2138
  %v2227 = vmax.f32 %v1918, %v2040
  %v2228 = vmax.f32 %v1919, %v2139
  %v2229 = vmax.f32 %v1920, %v2044
  %v2230 = vmax.f32 %v1921, %v2140
  %v2231 = vmax.f32 %v1922, %v2048
  %v2232 = vmax.f32 %v1923, %v2141
  %v2233 = vmax.f32 %v1924, %v2052
  %v2234 = vmax.f32 %v1925, %v2142
  %v2235 = vmax.f32 %v1926, %v2056
  %v2236 = vmax.f32 %v1927, %v2143
  %v2237 = vmax.f32 %v1928, %v2060
  %v2238 = vmax.f32 %v1929, %v2144
  %v2239 = vmax.f32 %v1930, %v2064
  %v2240 = vmax.f32 %v1931, %v2145
  %v2241 = vmax.f32 %v1932, %v2068
  %v2242 = vmax.f32 %v1933, %v2146
  %v2243 = vmax.f32 %v1934, %v2072
  %v2244 = vmax.f32 %v1935, %v2147
  %v2245 = vmax.f32 %v1936, %v2076
  %v2246 = vmax.f32 %v1937, %v2148
  %v2247 = vmax.f32 %v1938, %v2080
  %v2248 = vmax.f32 %v1939, %v2149
  %v2249 = vmax.f32 %v1940, %v2084
  %v2250 = vmax.f32 %v1941, %v2150
  %v2251 = vmax.f32 %v1942, %v2088
  %v2252 = vmax.f32 %v1943, %v2151
  %v2253 = vmax.f32 %v1944, %v2092
  %v2254 = vmax.f32 %v1945, %v2152
  %v2255 = vmax.f32 %v1946, %v2096
  %v2256 = vmax.f32 %v1947, %v2153
  %v2257 = vmax.f32 %v1948, %v2100
  %v2258 = vmax.f32 %v1949, %v2154
  %v2259 = vmax.f32 %v1950, %v2104
  %v2260 = vmax.f32 %v1951, %v2155
  %v2261 = vmax.f32 %v1952, %v2108
  %v2262 = vmax.f32 %v1953, %v2156
  %v2263 = vmax.f32 %v1954, %v2112
  %v2264 = vmax.f32 %v1955, %v2157
  %v2265 = vmax.f32 %v1956, %v2116
  %v2266 = vmax.f32 %v1957, %v2158
  %v2267 = vmax.f32 %v1958, %v2120
  %v2268 = vmax.f32 %v1959, %v2159
  %v2269 = vmax.f32 %v1960, %v2124
  %v2270 = vmax.f32 %v1961, %v2160
  %v2271 = vmax.f32 %v1962, %v2128
  %v2272 = vmax.f32 %v1963, %v2161
  %v2273 = vmax.f32 %v1964, %v2132
  %vm2330 = vcmask 1046528
  %v2331 = vrot.slane %v2218, 1
  %v2332 = vrot.slane %v2220, 1
  %v2333 = vsel %vm2330, %v2331, %v2332
  %v2334 = vrot.slane %v2219, 1
  %v2335 = vrot.slane %v2221, 1
  %v2336 = vsel %vm2330, %v2334, %v2335
  %v2337 = vrot.slane %v2222, 1
  %v2338 = vsel %vm2330, %v2332, %v2337
  %v2339 = vrot.slane %v2223, 1
  %v2340 = vsel %vm2330, %v2335, %v2339
  %v2341 = vrot.slane %v2224, 1
  %v2342 = vsel %vm2330, %v2337, %v2341
  %v2343 = vrot.slane %v2225, 1
  %v2344 = vsel %vm2330, %v2339, %v2343
  %v2345 = vrot.slane %v2226, 1
  %v2346 = vsel %vm2330, %v2341, %v2345
  %v2347 = vrot.slane %v2227, 1
  %v2348 = vsel %vm2330, %v2343, %v2347
  %v2349 = vrot.slane %v2228, 1
  %v2350 = vsel %vm2330, %v2345, %v2349
  %v2351 = vrot.slane %v2229, 1
  %v2352 = vsel %vm2330, %v2347, %v2351
  %v2353 = vrot.slane %v2230, 1
  %v2354 = vsel %vm2330, %v2349, %v2353
  %v2355 = vrot.slane %v2231, 1
  %v2356 = vsel %vm2330, %v2351, %v2355
  %v2357 = vrot.slane %v2232, 1
  %v2358 = vsel %vm2330, %v2353, %v2357
  %v2359 = vrot.slane %v2233, 1
  %v2360 = vsel %vm2330, %v2355, %v2359
  %v2361 = vrot.slane %v2234, 1
  %v2362 = vsel %vm2330, %v2357, %v2361
  %v2363 = vrot.slane %v2235, 1
  %v2364 = vsel %vm2330, %v2359, %v2363
  %v2365 = vrot.slane %v2236, 1
  %v2366 = vsel %vm2330, %v2361, %v2365
  %v2367 = vrot.slane %v2237, 1
  %v2368 = vsel %vm2330, %v2363, %v2367
  %v2369 = vrot.slane %v2238, 1
  %v2370 = vsel %vm2330, %v2365, %v2369
  %v2371 = vrot.slane %v2239, 1
  %v2372 = vsel %vm2330, %v2367, %v2371
  %v2373 = vrot.slane %v2240, 1
  %v2374 = vsel %vm2330, %v2369, %v2373
  %v2375 = vrot.slane %v2241, 1
  %v2376 = vsel %vm2330, %v2371, %v2375
  %v2377 = vrot.slane %v2242, 1
  %v2378 = vsel %vm2330, %v2373, %v2377
  %v2379 = vrot.slane %v2243, 1
  %v2380 = vsel %vm2330, %v2375, %v2379
  %v2381 = vrot.slane %v2244, 1
  %v2382 = vsel %vm2330, %v2377, %v2381
  %v2383 = vrot.slane %v2245, 1
  %v2384 = vsel %vm2330, %v2379, %v2383
  %v2385 = vrot.slane %v2246, 1
  %v2386 = vsel %vm2330, %v2381, %v2385
  %v2387 = vrot.slane %v2247, 1
  %v2388 = vsel %vm2330, %v2383, %v2387
  %v2389 = vrot.slane %v2248, 1
  %v2390 = vsel %vm2330, %v2385, %v2389
  %v2391 = vrot.slane %v2249, 1
  %v2392 = vsel %vm2330, %v2387, %v2391
  %v2393 = vrot.slane %v2250, 1
  %v2394 = vsel %vm2330, %v2389, %v2393
  %v2395 = vrot.slane %v2251, 1
  %v2396 = vsel %vm2330, %v2391, %v2395
  %v2397 = vrot.slane %v2252, 1
  %v2398 = vsel %vm2330, %v2393, %v2397
  %v2399 = vrot.slane %v2253, 1
  %v2400 = vsel %vm2330, %v2395, %v2399
  %v2401 = vrot.slane %v2254, 1
  %v2402 = vsel %vm2330, %v2397, %v2401
  %v2403 = vrot.slane %v2255, 1
  %v2404 = vsel %vm2330, %v2399, %v2403
  %v2405 = vrot.slane %v2256, 1
  %v2406 = vsel %vm2330, %v2401, %v2405
  %v2407 = vrot.slane %v2257, 1
  %v2408 = vsel %vm2330, %v2403, %v2407
  %v2409 = vrot.slane %v2258, 1
  %v2410 = vsel %vm2330, %v2405, %v2409
  %v2411 = vrot.slane %v2259, 1
  %v2412 = vsel %vm2330, %v2407, %v2411
  %v2413 = vrot.slane %v2260, 1
  %v2414 = vsel %vm2330, %v2409, %v2413
  %v2415 = vrot.slane %v2261, 1
  %v2416 = vsel %vm2330, %v2411, %v2415
  %v2417 = vrot.slane %v2262, 1
  %v2418 = vsel %vm2330, %v2413, %v2417
  %v2419 = vrot.slane %v2263, 1
  %v2420 = vsel %vm2330, %v2415, %v2419
  %v2421 = vrot.slane %v2264, 1
  %v2422 = vsel %vm2330, %v2417, %v2421
  %v2423 = vrot.slane %v2265, 1
  %v2424 = vsel %vm2330, %v2419, %v2423
  %v2425 = vrot.slane %v2266, 1
  %v2426 = vsel %vm2330, %v2421, %v2425
  %v2427 = vrot.slane %v2267, 1
  %v2428 = vsel %vm2330, %v2423, %v2427
  %v2429 = vrot.slane %v2268, 1
  %v2430 = vsel %vm2330, %v2425, %v2429
  %v2431 = vrot.slane %v2269, 1
  %v2432 = vsel %vm2330, %v2427, %v2431
  %v2433 = vrot.slane %v2270, 1
  %v2434 = vsel %vm2330, %v2429, %v2433
  %v2435 = vrot.slane %v2271, 1
  %v2436 = vsel %vm2330, %v2431, %v2435
  %v2437 = vrot.slane %v2272, 1
  %v2438 = vsel %vm2330, %v2433, %v2437
  %v2439 = vrot.slane %v2273, 1
  %v2440 = vsel %vm2330, %v2435, %v2439
  %v2497 = vmax.f32 %v2218, %v2333
  %v2498 = vmax.f32 %v2219, %v2336
  %v2499 = vmax.f32 %v2220, %v2338
  %v2500 = vmax.f32 %v2221, %v2340
  %v2501 = vmax.f32 %v2222, %v2342
  %v2502 = vmax.f32 %v2223, %v2344
  %v2503 = vmax.f32 %v2224, %v2346
  %v2504 = vmax.f32 %v2225, %v2348
  %v2505 = vmax.f32 %v2226, %v2350
  %v2506 = vmax.f32 %v2227, %v2352
  %v2507 = vmax.f32 %v2228, %v2354
  %v2508 = vmax.f32 %v2229, %v2356
  %v2509 = vmax.f32 %v2230, %v2358
  %v2510 = vmax.f32 %v2231, %v2360
  %v2511 = vmax.f32 %v2232, %v2362
  %v2512 = vmax.f32 %v2233, %v2364
  %v2513 = vmax.f32 %v2234, %v2366
  %v2514 = vmax.f32 %v2235, %v2368
  %v2515 = vmax.f32 %v2236, %v2370
  %v2516 = vmax.f32 %v2237, %v2372
  %v2517 = vmax.f32 %v2238, %v2374
  %v2518 = vmax.f32 %v2239, %v2376
  %v2519 = vmax.f32 %v2240, %v2378
  %v2520 = vmax.f32 %v2241, %v2380
  %v2521 = vmax.f32 %v2242, %v2382
  %v2522 = vmax.f32 %v2243, %v2384
  %v2523 = vmax.f32 %v2244, %v2386
  %v2524 = vmax.f32 %v2245, %v2388
  %v2525 = vmax.f32 %v2246, %v2390
  %v2526 = vmax.f32 %v2247, %v2392
  %v2527 = vmax.f32 %v2248, %v2394
  %v2528 = vmax.f32 %v2249, %v2396
  %v2529 = vmax.f32 %v2250, %v2398
  %v2530 = vmax.f32 %v2251, %v2400
  %v2531 = vmax.f32 %v2252, %v2402
  %v2532 = vmax.f32 %v2253, %v2404
  %v2533 = vmax.f32 %v2254, %v2406
  %v2534 = vmax.f32 %v2255, %v2408
  %v2535 = vmax.f32 %v2256, %v2410
  %v2536 = vmax.f32 %v2257, %v2412
  %v2537 = vmax.f32 %v2258, %v2414
  %v2538 = vmax.f32 %v2259, %v2416
  %v2539 = vmax.f32 %v2260, %v2418
  %v2540 = vmax.f32 %v2261, %v2420
  %v2541 = vmax.f32 %v2262, %v2422
  %v2542 = vmax.f32 %v2263, %v2424
  %v2543 = vmax.f32 %v2264, %v2426
  %v2544 = vmax.f32 %v2265, %v2428
  %v2545 = vmax.f32 %v2266, %v2430
  %v2546 = vmax.f32 %v2267, %v2432
  %v2547 = vmax.f32 %v2268, %v2434
  %v2548 = vmax.f32 %v2269, %v2436
  %v2549 = vmax.f32 %v2270, %v2438
  %v2550 = vmax.f32 %v2271, %v2440
  %v2551 = vmax.f32 %v2272, %v2437
  %v2552 = vmax.f32 %v2273, %v2439
  %v2553 = vld [vmem:[%s3] sm:$0xff]
  %v2554 = vld [vmem:[%s3 + $0x8] sm:$0xff]
  %v2555 = vld [vmem:[%s3 + $0x10] sm:$0xff]
  %v2556 = vld [vmem:[%s3 + $0x18] sm:$0xff]
  %v2557 = vld [vmem:[%s3 + $0x20] sm:$0xff]
  %v2558 = vld [vmem:[%s3 + $0x28] sm:$0xff]
  %v2559 = vld [vmem:[%s3 + $0x30] sm:$0xff]
  %v2560 = vld [vmem:[%s3 + $0x38] sm:$0xff]
  %v2561 = vld [vmem:[%s3 + $0x40] sm:$0xff]
  %v2562 = vld [vmem:[%s3 + $0x48] sm:$0xff]
  %v2563 = vld [vmem:[%s3 + $0x50] sm:$0xff]
  %v2564 = vld [vmem:[%s3 + $0x58] sm:$0xff]
  %v2565 = vld [vmem:[%s3 + $0x60] sm:$0xff]
  %v2566 = vld [vmem:[%s3 + $0x68] sm:$0xff]
  %v2567 = vld [vmem:[%s3 + $0x70] sm:$0xff]
  %v2568 = vld [vmem:[%s3 + $0x78] sm:$0xff]
  %v2569 = vld [vmem:[%s3 + $0x80] sm:$0xff]
  %v2570 = vld [vmem:[%s3 + $0x88] sm:$0xff]
  %v2571 = vld [vmem:[%s3 + $0x90] sm:$0xff]
  %v2572 = vld [vmem:[%s3 + $0x98] sm:$0xff]
  %v2573 = vld [vmem:[%s3 + $0xa0] sm:$0xff]
  %v2574 = vld [vmem:[%s3 + $0xa8] sm:$0xff]
  %v2575 = vld [vmem:[%s3 + $0xb0] sm:$0xff]
  %v2576 = vld [vmem:[%s3 + $0xb8] sm:$0xff]
  %vm2577 = vcmask 744448
  %v2579 = vsel %vm2577, %v2554, 0
  %v2582 = vsel %vm2577, %v2556, 0
  %v2585 = vsel %vm2577, %v2558, 0
  %v2588 = vsel %vm2577, %v2560, 0
  %v2591 = vsel %vm2577, %v2562, 0
  %v2594 = vsel %vm2577, %v2564, 0
  %v2597 = vsel %vm2577, %v2566, 0
  %v2600 = vsel %vm2577, %v2568, 0
  %v2603 = vsel %vm2577, %v2570, 0
  %v2606 = vsel %vm2577, %v2572, 0
  %v2609 = vsel %vm2577, %v2574, 0
  %v2612 = vsel %vm2577, %v2576, 0
  %vm2614 = vcmask 1042432
  %v2616 = vsel %vm2614, %v2551, 0
  %v2619 = vsel %vm2614, %v2552, 0
  %2621 = vmatpush.msra.mxu0 %v2527
  %2622 = vmatpush.msra.mxu0 %v2525
  %2623 = vmatpush.msra.mxu0 %v2523
  %2624 = vmatpush.msra.mxu0 %v2521
  %2625 = vmatpush.msra.mxu0 %v2519
  %2626 = vmatpush.msra.mxu0 %v2517
  %2627 = vmatpush.msra.mxu0 %v2515
  %2628 = vmatpush.msra.mxu0 %v2513
  %2629 = vmatpush.msra.mxu0 %v2511
  %2630 = vmatpush.msra.mxu0 %v2509
  %2631 = vmatpush.msra.mxu0 %v2507
  %2632 = vmatpush.msra.mxu0 %v2505
  %2633 = vmatpush.msra.mxu0 %v2503
  %2634 = vmatpush.msra.mxu0 %v2501
  %2635 = vmatpush.msra.mxu0 %v2499
  %2636 = vmatpush.msra.mxu0 %v2497
  %2637 = vmatmul.f32.gmra.mxu0 %v2553
  %v2638 = vpop.f32.mrf.mxu0
  %v2639 = vadd.f32 0.0, %v2638
  %2640 = vmatmul.f32.gmra.mxu0 %v2555
  %v2641 = vpop.f32.mrf.mxu0
  %v2642 = vadd.f32 0.0, %v2641
  %2643 = vmatmul.f32.gmra.mxu0 %v2557
  %v2644 = vpop.f32.mrf.mxu0
  %v2645 = vadd.f32 0.0, %v2644
  %2646 = vmatmul.f32.gmra.mxu0 %v2559
  %v2647 = vpop.f32.mrf.mxu0
  %v2648 = vadd.f32 0.0, %v2647
  %2649 = vmatmul.f32.gmra.mxu0 %v2561
  %v2650 = vpop.f32.mrf.mxu0
  %v2651 = vadd.f32 0.0, %v2650
  %2652 = vmatmul.f32.gmra.mxu0 %v2563
  %v2653 = vpop.f32.mrf.mxu0
  %v2654 = vadd.f32 0.0, %v2653
  %2655 = vmatmul.f32.gmra.mxu0 %v2565
  %v2656 = vpop.f32.mrf.mxu0
  %v2657 = vadd.f32 0.0, %v2656
  %2658 = vmatmul.f32.gmra.mxu0 %v2567
  %v2659 = vpop.f32.mrf.mxu0
  %v2660 = vadd.f32 0.0, %v2659
  %2661 = vmatmul.f32.gmra.mxu0 %v2569
  %v2662 = vpop.f32.mrf.mxu0
  %v2663 = vadd.f32 0.0, %v2662
  %2664 = vmatmul.f32.gmra.mxu0 %v2571
  %v2665 = vpop.f32.mrf.mxu0
  %v2666 = vadd.f32 0.0, %v2665
  %2667 = vmatmul.f32.gmra.mxu0 %v2573
  %v2668 = vpop.f32.mrf.mxu0
  %v2669 = vadd.f32 0.0, %v2668
  %2670 = vmatmul.f32.gmra.mxu0 %v2575
  %v2671 = vpop.f32.mrf.mxu0
  %v2672 = vadd.f32 0.0, %v2671
  %2673 = vdwg.mxu0
  %2674 = vmatpush.msra.mxu0 0.0
  %2675 = vmatpush.msra.mxu0 0.0
  %2676 = vmatpush.msra.mxu0 0.0
  %2677 = vmatpush.msra.mxu0 0.0
  %2678 = vmatpush.msra.mxu0 %v2616
  %2679 = vmatpush.msra.mxu0 %v2549
  %2680 = vmatpush.msra.mxu0 %v2547
  %2681 = vmatpush.msra.mxu0 %v2545
  %2682 = vmatpush.msra.mxu0 %v2543
  %2683 = vmatpush.msra.mxu0 %v2541
  %2684 = vmatpush.msra.mxu0 %v2539
  %2685 = vmatpush.msra.mxu0 %v2537
  %2686 = vmatpush.msra.mxu0 %v2535
  %2687 = vmatpush.msra.mxu0 %v2533
  %2688 = vmatpush.msra.mxu0 %v2531
  %2689 = vmatpush.msra.mxu0 %v2529
  %2690 = vmatmul.f32.gmra.mxu0 %v2579
  %v2691 = vpop.f32.mrf.mxu0
  %v2692 = vadd.f32 %v2639, %v2691
  %2693 = vmatmul.f32.gmra.mxu0 %v2582
  %v2694 = vpop.f32.mrf.mxu0
  %v2695 = vadd.f32 %v2642, %v2694
  %2696 = vmatmul.f32.gmra.mxu0 %v2585
  %v2697 = vpop.f32.mrf.mxu0
  %v2698 = vadd.f32 %v2645, %v2697
  %2699 = vmatmul.f32.gmra.mxu0 %v2588
  %v2700 = vpop.f32.mrf.mxu0
  %v2701 = vadd.f32 %v2648, %v2700
  %2702 = vmatmul.f32.gmra.mxu0 %v2591
  %v2703 = vpop.f32.mrf.mxu0
  %v2704 = vadd.f32 %v2651, %v2703
  %2705 = vmatmul.f32.gmra.mxu0 %v2594
  %v2706 = vpop.f32.mrf.mxu0
  %v2707 = vadd.f32 %v2654, %v2706
  %2708 = vmatmul.f32.gmra.mxu0 %v2597
  %v2709 = vpop.f32.mrf.mxu0
  %v2710 = vadd.f32 %v2657, %v2709
  %2711 = vmatmul.f32.gmra.mxu0 %v2600
  %v2712 = vpop.f32.mrf.mxu0
  %v2713 = vadd.f32 %v2660, %v2712
  %2714 = vmatmul.f32.gmra.mxu0 %v2603
  %v2715 = vpop.f32.mrf.mxu0
  %v2716 = vadd.f32 %v2663, %v2715
  %2717 = vmatmul.f32.gmra.mxu0 %v2606
  %v2718 = vpop.f32.mrf.mxu0
  %v2719 = vadd.f32 %v2666, %v2718
  %2720 = vmatmul.f32.gmra.mxu0 %v2609
  %v2721 = vpop.f32.mrf.mxu0
  %v2722 = vadd.f32 %v2669, %v2721
  %2723 = vmatmul.f32.gmra.mxu0 %v2612
  %v2724 = vpop.f32.mrf.mxu0
  %v2725 = vadd.f32 %v2672, %v2724
  %2726 = vdwg.mxu0
  %2727 = vmatpush.msra.mxu0 %v2528
  %2728 = vmatpush.msra.mxu0 %v2526
  %2729 = vmatpush.msra.mxu0 %v2524
  %2730 = vmatpush.msra.mxu0 %v2522
  %2731 = vmatpush.msra.mxu0 %v2520
  %2732 = vmatpush.msra.mxu0 %v2518
  %2733 = vmatpush.msra.mxu0 %v2516
  %2734 = vmatpush.msra.mxu0 %v2514
  %2735 = vmatpush.msra.mxu0 %v2512
  %2736 = vmatpush.msra.mxu0 %v2510
  %2737 = vmatpush.msra.mxu0 %v2508
  %2738 = vmatpush.msra.mxu0 %v2506
  %2739 = vmatpush.msra.mxu0 %v2504
  %2740 = vmatpush.msra.mxu0 %v2502
  %2741 = vmatpush.msra.mxu0 %v2500
  %2742 = vmatpush.msra.mxu0 %v2498
  %2743 = vmatmul.f32.gmra.mxu0 %v2553
  %v2744 = vpop.f32.mrf.mxu0
  %v2745 = vadd.f32 0.0, %v2744
  %2746 = vmatmul.f32.gmra.mxu0 %v2555
  %v2747 = vpop.f32.mrf.mxu0
  %v2748 = vadd.f32 0.0, %v2747
  %2749 = vmatmul.f32.gmra.mxu0 %v2557
  %v2750 = vpop.f32.mrf.mxu0
  %v2751 = vadd.f32 0.0, %v2750
  %2752 = vmatmul.f32.gmra.mxu0 %v2559
  %v2753 = vpop.f32.mrf.mxu0
  %v2754 = vadd.f32 0.0, %v2753
  %2755 = vmatmul.f32.gmra.mxu0 %v2561
  %v2756 = vpop.f32.mrf.mxu0
  %v2757 = vadd.f32 0.0, %v2756
  %2758 = vmatmul.f32.gmra.mxu0 %v2563
  %v2759 = vpop.f32.mrf.mxu0
  %v2760 = vadd.f32 0.0, %v2759
  %2761 = vmatmul.f32.gmra.mxu0 %v2565
  %v2762 = vpop.f32.mrf.mxu0
  %v2763 = vadd.f32 0.0, %v2762
  %2764 = vmatmul.f32.gmra.mxu0 %v2567
  %v2765 = vpop.f32.mrf.mxu0
  %v2766 = vadd.f32 0.0, %v2765
  %2767 = vmatmul.f32.gmra.mxu0 %v2569
  %v2768 = vpop.f32.mrf.mxu0
  %v2769 = vadd.f32 0.0, %v2768
  %2770 = vmatmul.f32.gmra.mxu0 %v2571
  %v2771 = vpop.f32.mrf.mxu0
  %v2772 = vadd.f32 0.0, %v2771
  %2773 = vmatmul.f32.gmra.mxu0 %v2573
  %v2774 = vpop.f32.mrf.mxu0
  %v2775 = vadd.f32 0.0, %v2774
  %2776 = vmatmul.f32.gmra.mxu0 %v2575
  %v2777 = vpop.f32.mrf.mxu0
  %v2778 = vadd.f32 0.0, %v2777
  %2779 = vdwg.mxu0
  %2780 = vmatpush.msra.mxu0 0.0
  %2781 = vmatpush.msra.mxu0 0.0
  %2782 = vmatpush.msra.mxu0 0.0
  %2783 = vmatpush.msra.mxu0 0.0
  %2784 = vmatpush.msra.mxu0 %v2619
  %2785 = vmatpush.msra.mxu0 %v2550
  %2786 = vmatpush.msra.mxu0 %v2548
  %2787 = vmatpush.msra.mxu0 %v2546
  %2788 = vmatpush.msra.mxu0 %v2544
  %2789 = vmatpush.msra.mxu0 %v2542
  %2790 = vmatpush.msra.mxu0 %v2540
  %2791 = vmatpush.msra.mxu0 %v2538
  %2792 = vmatpush.msra.mxu0 %v2536
  %2793 = vmatpush.msra.mxu0 %v2534
  %2794 = vmatpush.msra.mxu0 %v2532
  %2795 = vmatpush.msra.mxu0 %v2530
  %2796 = vmatmul.f32.gmra.mxu0 %v2579
  %v2797 = vpop.f32.mrf.mxu0
  %v2798 = vadd.f32 %v2745, %v2797
  %2799 = vmatmul.f32.gmra.mxu0 %v2582
  %v2800 = vpop.f32.mrf.mxu0
  %v2801 = vadd.f32 %v2748, %v2800
  %2802 = vmatmul.f32.gmra.mxu0 %v2585
  %v2803 = vpop.f32.mrf.mxu0
  %v2804 = vadd.f32 %v2751, %v2803
  %2805 = vmatmul.f32.gmra.mxu0 %v2588
  %v2806 = vpop.f32.mrf.mxu0
  %v2807 = vadd.f32 %v2754, %v2806
  %2808 = vmatmul.f32.gmra.mxu0 %v2591
  %v2809 = vpop.f32.mrf.mxu0
  %v2810 = vadd.f32 %v2757, %v2809
  %2811 = vmatmul.f32.gmra.mxu0 %v2594
  %v2812 = vpop.f32.mrf.mxu0
  %v2813 = vadd.f32 %v2760, %v2812
  %2814 = vmatmul.f32.gmra.mxu0 %v2597
  %v2815 = vpop.f32.mrf.mxu0
  %v2816 = vadd.f32 %v2763, %v2815
  %2817 = vmatmul.f32.gmra.mxu0 %v2600
  %v2818 = vpop.f32.mrf.mxu0
  %v2819 = vadd.f32 %v2766, %v2818
  %2820 = vmatmul.f32.gmra.mxu0 %v2603
  %v2821 = vpop.f32.mrf.mxu0
  %v2822 = vadd.f32 %v2769, %v2821
  %2823 = vmatmul.f32.gmra.mxu0 %v2606
  %v2824 = vpop.f32.mrf.mxu0
  %v2825 = vadd.f32 %v2772, %v2824
  %2826 = vmatmul.f32.gmra.mxu0 %v2609
  %v2827 = vpop.f32.mrf.mxu0
  %v2828 = vadd.f32 %v2775, %v2827
  %2829 = vmatmul.f32.gmra.mxu0 %v2612
  %v2830 = vpop.f32.mrf.mxu0
  %v2831 = vadd.f32 %v2778, %v2830
  %2832 = vdwg.mxu0
  %v2833 = vpack.c.bf16 %v2695, %v2692
  %v2834 = vpack.c.bf16 %v2801, %v2798
  %v2835 = vpack.c.bf16 %v2701, %v2698
  %v2836 = vpack.c.bf16 %v2807, %v2804
  %v2837 = vpack.c.bf16 %v2707, %v2704
  %v2838 = vpack.c.bf16 %v2813, %v2810
  %v2839 = vpack.c.bf16 %v2713, %v2710
  %v2840 = vpack.c.bf16 %v2819, %v2816
  %v2841 = vpack.c.bf16 %v2719, %v2716
  %v2842 = vpack.c.bf16 %v2825, %v2822
  %v2843 = vpack.c.bf16 %v2725, %v2722
  %v2844 = vpack.c.bf16 %v2831, %v2828
  %v2845 = vld [vmem:[%s4] sm:$0xf]
  %v2846 = vld [vmem:[%s4 + $0x4] sm:$0xf]
  %v2847 = vld [vmem:[%s4 + $0x8] sm:$0xf]
  %v2848 = vld [vmem:[%s4 + $0xc] sm:$0xf]
  %v2849 = vld [vmem:[%s4 + $0x10] sm:$0xf]
  %v2850 = vld [vmem:[%s4 + $0x14] sm:$0xf]
  %v2851 = vld [vmem:[%s4 + $0x18] sm:$0xf]
  %v2852 = vld [vmem:[%s4 + $0x1c] sm:$0xf]
  %v2853 = vld [vmem:[%s4 + $0x20] sm:$0xf]
  %v2854 = vld [vmem:[%s4 + $0x24] sm:$0xf]
  %v2855 = vld [vmem:[%s4 + $0x28] sm:$0xf]
  %v2856 = vld [vmem:[%s4 + $0x2c] sm:$0xf]
  %v2857 = vld [vmem:[%s4 + $0x30] sm:$0xf]
  %v2858 = vld [vmem:[%s4 + $0x34] sm:$0xf]
  %v2859 = vld [vmem:[%s4 + $0x38] sm:$0xf]
  %v2860 = vld [vmem:[%s4 + $0x3c] sm:$0xf]
  %v2861 = vld [vmem:[%s4 + $0x40] sm:$0xf]
  %v2862 = vld [vmem:[%s4 + $0x44] sm:$0x1]
  %s2863 = scalar_lea.vmem %s4, 72
  %v2864 = vld [vmem:[%s2863] sm:$0xf]
  %v2865 = vld [vmem:[%s2863 + $0x4] sm:$0xf]
  %v2866 = vld [vmem:[%s2863 + $0x8] sm:$0xf]
  %v2867 = vld [vmem:[%s2863 + $0xc] sm:$0xf]
  %v2868 = vld [vmem:[%s2863 + $0x10] sm:$0xf]
  %v2869 = vld [vmem:[%s2863 + $0x14] sm:$0xf]
  %v2870 = vld [vmem:[%s2863 + $0x18] sm:$0xf]
  %v2871 = vld [vmem:[%s2863 + $0x1c] sm:$0xf]
  %v2872 = vld [vmem:[%s2863 + $0x20] sm:$0xf]
  %v2873 = vld [vmem:[%s2863 + $0x24] sm:$0xf]
  %v2874 = vld [vmem:[%s2863 + $0x28] sm:$0xf]
  %v2875 = vld [vmem:[%s2863 + $0x2c] sm:$0xf]
  %v2876 = vld [vmem:[%s2863 + $0x30] sm:$0xf]
  %v2877 = vld [vmem:[%s2863 + $0x34] sm:$0xf]
  %v2878 = vld [vmem:[%s2863 + $0x38] sm:$0xf]
  %v2879 = vld [vmem:[%s2863 + $0x3c] sm:$0xf]
  %v2880 = vld [vmem:[%s2863 + $0x40] sm:$0xf]
  %v2881 = vld [vmem:[%s2863 + $0x44] sm:$0x1]
  %v2883 = vshrl.u32 %v2833, 16
  %v2885 = vshll.u32 %v2833, 16
  %v2887 = vrot.slane %v2885, 1
  %v2888 = vor.u32 %v2883, %v2887
  %v2890 = vshll.u32 %v2835, 16
  %v2892 = vrot.slane %v2890, 1
  %v2893 = vsel %vm112, %v2888, %v2892
  %v2895 = vshrl.u32 %v2834, 16
  %v2897 = vshll.u32 %v2834, 16
  %v2899 = vrot.slane %v2897, 1
  %v2900 = vor.u32 %v2895, %v2899
  %v2902 = vshll.u32 %v2836, 16
  %v2904 = vrot.slane %v2902, 1
  %v2905 = vsel %vm112, %v2900, %v2904
  %v2906 = vshrl.u32 %v2835, 16
  %v2908 = vor.u32 %v2906, %v2892
  %v2910 = vshll.u32 %v2837, 16
  %v2912 = vrot.slane %v2910, 1
  %v2913 = vsel %vm112, %v2908, %v2912
  %v2914 = vshrl.u32 %v2836, 16
  %v2916 = vor.u32 %v2914, %v2904
  %v2918 = vshll.u32 %v2838, 16
  %v2920 = vrot.slane %v2918, 1
  %v2921 = vsel %vm112, %v2916, %v2920
  %v2922 = vshrl.u32 %v2837, 16
  %v2924 = vor.u32 %v2922, %v2912
  %v2926 = vshll.u32 %v2839, 16
  %v2928 = vrot.slane %v2926, 1
  %v2929 = vsel %vm112, %v2924, %v2928
  %v2930 = vshrl.u32 %v2838, 16
  %v2932 = vor.u32 %v2930, %v2920
  %v2934 = vshll.u32 %v2840, 16
  %v2936 = vrot.slane %v2934, 1
  %v2937 = vsel %vm112, %v2932, %v2936
  %v2938 = vshrl.u32 %v2839, 16
  %v2940 = vor.u32 %v2938, %v2928
  %v2942 = vshll.u32 %v2841, 16
  %v2944 = vrot.slane %v2942, 1
  %v2945 = vsel %vm112, %v2940, %v2944
  %v2946 = vshrl.u32 %v2840, 16
  %v2948 = vor.u32 %v2946, %v2936
  %v2950 = vshll.u32 %v2842, 16
  %v2952 = vrot.slane %v2950, 1
  %v2953 = vsel %vm112, %v2948, %v2952
  %v2954 = vshrl.u32 %v2841, 16
  %v2956 = vor.u32 %v2954, %v2944
  %v2958 = vshll.u32 %v2843, 16
  %v2960 = vrot.slane %v2958, 1
  %v2961 = vsel %vm112, %v2956, %v2960
  %v2962 = vshrl.u32 %v2842, 16
  %v2964 = vor.u32 %v2962, %v2952
  %v2966 = vshll.u32 %v2844, 16
  %v2968 = vrot.slane %v2966, 1
  %v2969 = vsel %vm112, %v2964, %v2968
  %v2970 = vshrl.u32 %v2843, 16
  %v2972 = vor.u32 %v2970, %v2960
  %v2973 = vshrl.u32 %v2844, 16
  %v2975 = vor.u32 %v2973, %v2968
  %v3000 = vunpack.c.l.b16 %v2864
  %v3001 = vunpack.c.l.b16 %v2865
  %v3002 = vunpack.c.l.b16 %v2866
  %v3003 = vunpack.c.l.b16 %v2867
  %v3004 = vunpack.c.l.b16 %v2868
  %v3005 = vunpack.c.l.b16 %v2869
  %v3006 = vunpack.c.l.b16 %v2870
  %v3007 = vunpack.c.l.b16 %v2871
  %v3008 = vunpack.c.l.b16 %v2872
  %v3009 = vunpack.c.l.b16 %v2873
  %v3010 = vunpack.c.l.b16 %v2874
  %v3011 = vunpack.c.l.b16 %v2875
  %v3012 = vunpack.c.l.b16 %v2876
  %v3013 = vunpack.c.l.b16 %v2877
  %v3014 = vunpack.c.l.b16 %v2878
  %v3015 = vunpack.c.l.b16 %v2879
  %v3016 = vunpack.c.l.b16 %v2880
  %v3017 = vunpack.c.l.b16 %v2881
  %v3018 = vpack.c.b16 %v3001, %v3000
  %v3019 = vpack.c.b16 %v3003, %v3002
  %v3020 = vpack.c.b16 %v3005, %v3004
  %v3021 = vpack.c.b16 %v3007, %v3006
  %v3022 = vpack.c.b16 %v3009, %v3008
  %v3023 = vpack.c.b16 %v3011, %v3010
  %v3024 = vpack.c.b16 %v3013, %v3012
  %v3025 = vpack.c.b16 %v3015, %v3014
  %v3026 = vpack.c.b16 %v3017, %v3016
  %vm3035 = vcmask 80896
  %v3037 = vsel %vm3035, %v2905, 0
  %v3040 = vsel %vm3035, %v2921, 0
  %v3043 = vsel %vm3035, %v2937, 0
  %v3046 = vsel %vm3035, %v2953, 0
  %v3049 = vsel %vm3035, %v2969, 0
  %v3052 = vsel %vm3035, %v2975, 0
  %vm3054 = vcmask 1044480
  %v3056 = vsel %vm3054, %v3026, 0
  %3058 = vmatpush.bf16.msra.mxu0 %v3025
  %3059 = vmatpush.bf16.msra.mxu0 %v3024
  %3060 = vmatpush.bf16.msra.mxu0 %v3023
  %3061 = vmatpush.bf16.msra.mxu0 %v3022
  %3062 = vmatpush.bf16.msra.mxu0 %v3021
  %3063 = vmatpush.bf16.msra.mxu0 %v3020
  %3064 = vmatpush.bf16.msra.mxu0 %v3019
  %3065 = vmatpush.bf16.msra.mxu0 %v3018
  %3066 = vmatmul.bf16.gmra.mxu0 %v2893
  %v3067 = vpop.f32.mrf.mxu0
  %v3068 = vadd.f32 0.0, %v3067
  %v3069 = vpop.f32.mrf.mxu0
  %v3070 = vadd.f32 0.0, %v3069
  %3071 = vmatmul.bf16.gmra.mxu0 %v2913
  %v3072 = vpop.f32.mrf.mxu0
  %v3073 = vadd.f32 0.0, %v3072
  %v3074 = vpop.f32.mrf.mxu0
  %v3075 = vadd.f32 0.0, %v3074
  %3076 = vmatmul.bf16.gmra.mxu0 %v2929
  %v3077 = vpop.f32.mrf.mxu0
  %v3078 = vadd.f32 0.0, %v3077
  %v3079 = vpop.f32.mrf.mxu0
  %v3080 = vadd.f32 0.0, %v3079
  %3081 = vmatmul.bf16.gmra.mxu0 %v2945
  %v3082 = vpop.f32.mrf.mxu0
  %v3083 = vadd.f32 0.0, %v3082
  %v3084 = vpop.f32.mrf.mxu0
  %v3085 = vadd.f32 0.0, %v3084
  %3086 = vmatmul.bf16.gmra.mxu0 %v2961
  %v3087 = vpop.f32.mrf.mxu0
  %v3088 = vadd.f32 0.0, %v3087
  %v3089 = vpop.f32.mrf.mxu0
  %v3090 = vadd.f32 0.0, %v3089
  %3091 = vmatmul.bf16.gmra.mxu0 %v2972
  %v3092 = vpop.f32.mrf.mxu0
  %v3093 = vadd.f32 0.0, %v3092
  %v3094 = vpop.f32.mrf.mxu0
  %v3095 = vadd.f32 0.0, %v3094
  %3096 = vdwg.mxu0
  %3097 = vmatpush.bf16.msra.mxu0 0
  %3098 = vmatpush.bf16.msra.mxu0 0
  %3099 = vmatpush.bf16.msra.mxu0 0
  %3100 = vmatpush.bf16.msra.mxu0 0
  %3101 = vmatpush.bf16.msra.mxu0 0
  %3102 = vmatpush.bf16.msra.mxu0 0
  %3103 = vmatpush.bf16.msra.mxu0 0
  %3104 = vmatpush.bf16.msra.mxu0 %v3056
  %3105 = vmatmul.bf16.gmra.mxu0 %v3037
  %v3106 = vpop.f32.mrf.mxu0
  %v3107 = vadd.f32 %v3068, %v3106
  %v3108 = vpop.f32.mrf.mxu0
  %v3109 = vadd.f32 %v3070, %v3108
  %3110 = vmatmul.bf16.gmra.mxu0 %v3040
  %v3111 = vpop.f32.mrf.mxu0
  %v3112 = vadd.f32 %v3073, %v3111
  %v3113 = vpop.f32.mrf.mxu0
  %v3114 = vadd.f32 %v3075, %v3113
  %3115 = vmatmul.bf16.gmra.mxu0 %v3043
  %v3116 = vpop.f32.mrf.mxu0
  %v3117 = vadd.f32 %v3078, %v3116
  %v3118 = vpop.f32.mrf.mxu0
  %v3119 = vadd.f32 %v3080, %v3118
  %3120 = vmatmul.bf16.gmra.mxu0 %v3046
  %v3121 = vpop.f32.mrf.mxu0
  %v3122 = vadd.f32 %v3083, %v3121
  %v3123 = vpop.f32.mrf.mxu0
  %v3124 = vadd.f32 %v3085, %v3123
  %3125 = vmatmul.bf16.gmra.mxu0 %v3049
  %v3126 = vpop.f32.mrf.mxu0
  %v3127 = vadd.f32 %v3088, %v3126
  %v3128 = vpop.f32.mrf.mxu0
  %v3129 = vadd.f32 %v3090, %v3128
  %3130 = vmatmul.bf16.gmra.mxu0 %v3052
  %v3131 = vpop.f32.mrf.mxu0
  %v3132 = vadd.f32 %v3093, %v3131
  %v3133 = vpop.f32.mrf.mxu0
  %v3134 = vadd.f32 %v3095, %v3133
  %3135 = vdwg.mxu0
  %v3154 = vunpack.c.l.b16 %v2845
  %v3155 = vunpack.c.l.b16 %v2846
  %v3156 = vunpack.c.l.b16 %v2847
  %v3157 = vunpack.c.l.b16 %v2848
  %v3158 = vunpack.c.l.b16 %v2849
  %v3159 = vunpack.c.l.b16 %v2850
  %v3160 = vunpack.c.l.b16 %v2851
  %v3161 = vunpack.c.l.b16 %v2852
  %v3162 = vunpack.c.l.b16 %v2853
  %v3163 = vunpack.c.l.b16 %v2854
  %v3164 = vunpack.c.l.b16 %v2855
  %v3165 = vunpack.c.l.b16 %v2856
  %v3166 = vunpack.c.l.b16 %v2857
  %v3167 = vunpack.c.l.b16 %v2858
  %v3168 = vunpack.c.l.b16 %v2859
  %v3169 = vunpack.c.l.b16 %v2860
  %v3170 = vunpack.c.l.b16 %v2861
  %v3171 = vunpack.c.l.b16 %v2862
  %v3172 = vpack.c.b16 %v3155, %v3154
  %v3173 = vpack.c.b16 %v3157, %v3156
  %v3174 = vpack.c.b16 %v3159, %v3158
  %v3175 = vpack.c.b16 %v3161, %v3160
  %v3176 = vpack.c.b16 %v3163, %v3162
  %v3177 = vpack.c.b16 %v3165, %v3164
  %v3178 = vpack.c.b16 %v3167, %v3166
  %v3179 = vpack.c.b16 %v3169, %v3168
  %v3180 = vpack.c.b16 %v3171, %v3170
  %v3189 = vsel %vm3035, %v2834, 0
  %v3191 = vsel %vm3035, %v2836, 0
  %v3193 = vsel %vm3035, %v2838, 0
  %v3195 = vsel %vm3035, %v2840, 0
  %v3197 = vsel %vm3035, %v2842, 0
  %v3199 = vsel %vm3035, %v2844, 0
  %v3202 = vsel %vm3054, %v3180, 0
  %3204 = vmatpush.bf16.msra.mxu0 %v3179
  %3205 = vmatpush.bf16.msra.mxu0 %v3178
  %3206 = vmatpush.bf16.msra.mxu0 %v3177
  %3207 = vmatpush.bf16.msra.mxu0 %v3176
  %3208 = vmatpush.bf16.msra.mxu0 %v3175
  %3209 = vmatpush.bf16.msra.mxu0 %v3174
  %3210 = vmatpush.bf16.msra.mxu0 %v3173
  %3211 = vmatpush.bf16.msra.mxu0 %v3172
  %3212 = vmatmul.bf16.gmra.mxu0 %v2833
  %v3213 = vpop.f32.mrf.mxu0
  %v3214 = vadd.f32 %v3107, %v3213
  %v3215 = vpop.f32.mrf.mxu0
  %v3216 = vadd.f32 %v3109, %v3215
  %3217 = vmatmul.bf16.gmra.mxu0 %v2835
  %v3218 = vpop.f32.mrf.mxu0
  %v3219 = vadd.f32 %v3112, %v3218
  %v3220 = vpop.f32.mrf.mxu0
  %v3221 = vadd.f32 %v3114, %v3220
  %3222 = vmatmul.bf16.gmra.mxu0 %v2837
  %v3223 = vpop.f32.mrf.mxu0
  %v3224 = vadd.f32 %v3117, %v3223
  %v3225 = vpop.f32.mrf.mxu0
  %v3226 = vadd.f32 %v3119, %v3225
  %3227 = vmatmul.bf16.gmra.mxu0 %v2839
  %v3228 = vpop.f32.mrf.mxu0
  %v3229 = vadd.f32 %v3122, %v3228
  %v3230 = vpop.f32.mrf.mxu0
  %v3231 = vadd.f32 %v3124, %v3230
  %3232 = vmatmul.bf16.gmra.mxu0 %v2841
  %v3233 = vpop.f32.mrf.mxu0
  %v3234 = vadd.f32 %v3127, %v3233
  %v3235 = vpop.f32.mrf.mxu0
  %v3236 = vadd.f32 %v3129, %v3235
  %3237 = vmatmul.bf16.gmra.mxu0 %v2843
  %v3238 = vpop.f32.mrf.mxu0
  %v3239 = vadd.f32 %v3132, %v3238
  %v3240 = vpop.f32.mrf.mxu0
  %v3241 = vadd.f32 %v3134, %v3240
  %3242 = vdwg.mxu0
  %3243 = vmatpush.bf16.msra.mxu0 0
  %3244 = vmatpush.bf16.msra.mxu0 0
  %3245 = vmatpush.bf16.msra.mxu0 0
  %3246 = vmatpush.bf16.msra.mxu0 0
  %3247 = vmatpush.bf16.msra.mxu0 0
  %3248 = vmatpush.bf16.msra.mxu0 0
  %3249 = vmatpush.bf16.msra.mxu0 0
  %3250 = vmatpush.bf16.msra.mxu0 %v3202
  %3251 = vmatmul.bf16.gmra.mxu0 %v3189
  %v3252 = vpop.f32.mrf.mxu0
  %v3253 = vadd.f32 %v3214, %v3252
  %v3254 = vpop.f32.mrf.mxu0
  %v3255 = vadd.f32 %v3216, %v3254
  %3256 = vmatmul.bf16.gmra.mxu0 %v3191
  %v3257 = vpop.f32.mrf.mxu0
  %v3258 = vadd.f32 %v3219, %v3257
  %v3259 = vpop.f32.mrf.mxu0
  %v3260 = vadd.f32 %v3221, %v3259
  %3261 = vmatmul.bf16.gmra.mxu0 %v3193
  %v3262 = vpop.f32.mrf.mxu0
  %v3263 = vadd.f32 %v3224, %v3262
  %v3264 = vpop.f32.mrf.mxu0
  %v3265 = vadd.f32 %v3226, %v3264
  %3266 = vmatmul.bf16.gmra.mxu0 %v3195
  %v3267 = vpop.f32.mrf.mxu0
  %v3268 = vadd.f32 %v3229, %v3267
  %v3269 = vpop.f32.mrf.mxu0
  %v3270 = vadd.f32 %v3231, %v3269
  %3271 = vmatmul.bf16.gmra.mxu0 %v3197
  %v3272 = vpop.f32.mrf.mxu0
  %v3273 = vadd.f32 %v3234, %v3272
  %v3274 = vpop.f32.mrf.mxu0
  %v3275 = vadd.f32 %v3236, %v3274
  %3276 = vmatmul.bf16.gmra.mxu0 %v3199
  %v3277 = vpop.f32.mrf.mxu0
  %v3278 = vadd.f32 %v3239, %v3277
  %v3279 = vpop.f32.mrf.mxu0
  %v3280 = vadd.f32 %v3241, %v3279
  %3281 = vdwg.mxu0
  %s3282 = scalar_lea.vmem %s4, 144
  %v3283 = vld [vmem:[%s3282] sm:$0xf]
  %v3284 = vld [vmem:[%s3282 + $0x4] sm:$0xf]
  %v3285 = vld [vmem:[%s3282 + $0x8] sm:$0xf]
  %v3286 = vld [vmem:[%s3282 + $0xc] sm:$0xf]
  %v3287 = vld [vmem:[%s3282 + $0x10] sm:$0xf]
  %v3288 = vld [vmem:[%s3282 + $0x14] sm:$0xf]
  %v3289 = vld [vmem:[%s3282 + $0x18] sm:$0xf]
  %v3290 = vld [vmem:[%s3282 + $0x1c] sm:$0xf]
  %v3291 = vld [vmem:[%s3282 + $0x20] sm:$0xf]
  %v3292 = vld [vmem:[%s3282 + $0x24] sm:$0xf]
  %v3293 = vld [vmem:[%s3282 + $0x28] sm:$0xf]
  %v3294 = vld [vmem:[%s3282 + $0x2c] sm:$0xf]
  %v3295 = vld [vmem:[%s3282 + $0x30] sm:$0xf]
  %v3296 = vld [vmem:[%s3282 + $0x34] sm:$0xf]
  %v3297 = vld [vmem:[%s3282 + $0x38] sm:$0xf]
  %v3298 = vld [vmem:[%s3282 + $0x3c] sm:$0xf]
  %v3299 = vld [vmem:[%s3282 + $0x40] sm:$0xf]
  %v3300 = vld [vmem:[%s3282 + $0x44] sm:$0x1]
  %v3313 = vrot.slane %v2833, 1
  %v3314 = vrot.slane %v2835, 1
  %v3315 = vsel %vm760, %v3313, %v3314
  %v3316 = vrot.slane %v2834, 1
  %v3317 = vrot.slane %v2836, 1
  %v3318 = vsel %vm760, %v3316, %v3317
  %v3319 = vrot.slane %v2837, 1
  %v3320 = vsel %vm760, %v3314, %v3319
  %v3321 = vrot.slane %v2838, 1
  %v3322 = vsel %vm760, %v3317, %v3321
  %v3323 = vrot.slane %v2839, 1
  %v3324 = vsel %vm760, %v3319, %v3323
  %v3325 = vrot.slane %v2840, 1
  %v3326 = vsel %vm760, %v3321, %v3325
  %v3327 = vrot.slane %v2841, 1
  %v3328 = vsel %vm760, %v3323, %v3327
  %v3329 = vrot.slane %v2842, 1
  %v3330 = vsel %vm760, %v3325, %v3329
  %v3331 = vrot.slane %v2843, 1
  %v3332 = vsel %vm760, %v3327, %v3331
  %v3333 = vrot.slane %v2844, 1
  %v3334 = vsel %vm760, %v3329, %v3333
  %v3359 = vunpack.c.l.b16 %v3283
  %v3360 = vunpack.c.l.b16 %v3284
  %v3361 = vunpack.c.l.b16 %v3285
  %v3362 = vunpack.c.l.b16 %v3286
  %v3363 = vunpack.c.l.b16 %v3287
  %v3364 = vunpack.c.l.b16 %v3288
  %v3365 = vunpack.c.l.b16 %v3289
  %v3366 = vunpack.c.l.b16 %v3290
  %v3367 = vunpack.c.l.b16 %v3291
  %v3368 = vunpack.c.l.b16 %v3292
  %v3369 = vunpack.c.l.b16 %v3293
  %v3370 = vunpack.c.l.b16 %v3294
  %v3371 = vunpack.c.l.b16 %v3295
  %v3372 = vunpack.c.l.b16 %v3296
  %v3373 = vunpack.c.l.b16 %v3297
  %v3374 = vunpack.c.l.b16 %v3298
  %v3375 = vunpack.c.l.b16 %v3299
  %v3376 = vunpack.c.l.b16 %v3300
  %v3377 = vpack.c.b16 %v3360, %v3359
  %v3378 = vpack.c.b16 %v3362, %v3361
  %v3379 = vpack.c.b16 %v3364, %v3363
  %v3380 = vpack.c.b16 %v3366, %v3365
  %v3381 = vpack.c.b16 %v3368, %v3367
  %v3382 = vpack.c.b16 %v3370, %v3369
  %v3383 = vpack.c.b16 %v3372, %v3371
  %v3384 = vpack.c.b16 %v3374, %v3373
  %v3385 = vpack.c.b16 %v3376, %v3375
  %v3395 = vsel %vm3035, %v3318, 0
  %v3398 = vsel %vm3035, %v3322, 0
  %v3401 = vsel %vm3035, %v3326, 0
  %v3404 = vsel %vm3035, %v3330, 0
  %v3407 = vsel %vm3035, %v3334, 0
  %v3410 = vsel %vm3035, %v3333, 0
  %v3413 = vsel %vm3054, %v3385, 0
  %3415 = vmatpush.bf16.msra.mxu0 %v3384
  %3416 = vmatpush.bf16.msra.mxu0 %v3383
  %3417 = vmatpush.bf16.msra.mxu0 %v3382
  %3418 = vmatpush.bf16.msra.mxu0 %v3381
  %3419 = vmatpush.bf16.msra.mxu0 %v3380
  %3420 = vmatpush.bf16.msra.mxu0 %v3379
  %3421 = vmatpush.bf16.msra.mxu0 %v3378
  %3422 = vmatpush.bf16.msra.mxu0 %v3377
  %3423 = vmatmul.bf16.gmra.mxu0 %v3315
  %v3424 = vpop.f32.mrf.mxu0
  %v3425 = vadd.f32 0.0, %v3424
  %v3426 = vpop.f32.mrf.mxu0
  %v3427 = vadd.f32 0.0, %v3426
  %3428 = vmatmul.bf16.gmra.mxu0 %v3320
  %v3429 = vpop.f32.mrf.mxu0
  %v3430 = vadd.f32 0.0, %v3429
  %v3431 = vpop.f32.mrf.mxu0
  %v3432 = vadd.f32 0.0, %v3431
  %3433 = vmatmul.bf16.gmra.mxu0 %v3324
  %v3434 = vpop.f32.mrf.mxu0
  %v3435 = vadd.f32 0.0, %v3434
  %v3436 = vpop.f32.mrf.mxu0
  %v3437 = vadd.f32 0.0, %v3436
  %3438 = vmatmul.bf16.gmra.mxu0 %v3328
  %v3439 = vpop.f32.mrf.mxu0
  %v3440 = vadd.f32 0.0, %v3439
  %v3441 = vpop.f32.mrf.mxu0
  %v3442 = vadd.f32 0.0, %v3441
  %3443 = vmatmul.bf16.gmra.mxu0 %v3332
  %v3444 = vpop.f32.mrf.mxu0
  %v3445 = vadd.f32 0.0, %v3444
  %v3446 = vpop.f32.mrf.mxu0
  %v3447 = vadd.f32 0.0, %v3446
  %3448 = vmatmul.bf16.gmra.mxu0 %v3331
  %v3449 = vpop.f32.mrf.mxu0
  %v3450 = vadd.f32 0.0, %v3449
  %v3451 = vpop.f32.mrf.mxu0
  %v3452 = vadd.f32 0.0, %v3451
  %3453 = vdwg.mxu0
  %3454 = vmatpush.bf16.msra.mxu0 0
  %3455 = vmatpush.bf16.msra.mxu0 0
  %3456 = vmatpush.bf16.msra.mxu0 0
  %3457 = vmatpush.bf16.msra.mxu0 0
  %3458 = vmatpush.bf16.msra.mxu0 0
  %3459 = vmatpush.bf16.msra.mxu0 0
  %3460 = vmatpush.bf16.msra.mxu0 0
  %3461 = vmatpush.bf16.msra.mxu0 %v3413
  %3462 = vmatmul.bf16.gmra.mxu0 %v3395
  %v3463 = vpop.f32.mrf.mxu0
  %v3464 = vadd.f32 %v3425, %v3463
  %v3465 = vpop.f32.mrf.mxu0
  %v3466 = vadd.f32 %v3427, %v3465
  %3467 = vmatmul.bf16.gmra.mxu0 %v3398
  %v3468 = vpop.f32.mrf.mxu0
  %v3469 = vadd.f32 %v3430, %v3468
  %v3470 = vpop.f32.mrf.mxu0
  %v3471 = vadd.f32 %v3432, %v3470
  %3472 = vmatmul.bf16.gmra.mxu0 %v3401
  %v3473 = vpop.f32.mrf.mxu0
  %v3474 = vadd.f32 %v3435, %v3473
  %v3475 = vpop.f32.mrf.mxu0
  %v3476 = vadd.f32 %v3437, %v3475
  %3477 = vmatmul.bf16.gmra.mxu0 %v3404
  %v3478 = vpop.f32.mrf.mxu0
  %v3479 = vadd.f32 %v3440, %v3478
  %v3480 = vpop.f32.mrf.mxu0
  %v3481 = vadd.f32 %v3442, %v3480
  %3482 = vmatmul.bf16.gmra.mxu0 %v3407
  %v3483 = vpop.f32.mrf.mxu0
  %v3484 = vadd.f32 %v3445, %v3483
  %v3485 = vpop.f32.mrf.mxu0
  %v3486 = vadd.f32 %v3447, %v3485
  %3487 = vmatmul.bf16.gmra.mxu0 %v3410
  %v3488 = vpop.f32.mrf.mxu0
  %v3489 = vadd.f32 %v3450, %v3488
  %v3490 = vpop.f32.mrf.mxu0
  %v3491 = vadd.f32 %v3452, %v3490
  %3492 = vdwg.mxu0
  %v3493 = vadd.f32 %v3253, %v3464
  %v3494 = vadd.f32 %v3255, %v3466
  %v3495 = vadd.f32 %v3258, %v3469
  %v3496 = vadd.f32 %v3260, %v3471
  %v3497 = vadd.f32 %v3263, %v3474
  %v3498 = vadd.f32 %v3265, %v3476
  %v3499 = vadd.f32 %v3268, %v3479
  %v3500 = vadd.f32 %v3270, %v3481
  %v3501 = vadd.f32 %v3273, %v3484
  %v3502 = vadd.f32 %v3275, %v3486
  %v3503 = vadd.f32 %v3278, %v3489
  %v3504 = vadd.f32 %v3280, %v3491
  %s3505 = scalar_lea.vmem %s4, 216
  %v3506 = vld [vmem:[%s3505] sm:$0xf]
  %v3507 = vld [vmem:[%s3505 + $0x4] sm:$0xf]
  %v3508 = vld [vmem:[%s3505 + $0x8] sm:$0xf]
  %v3509 = vld [vmem:[%s3505 + $0xc] sm:$0xf]
  %v3510 = vld [vmem:[%s3505 + $0x10] sm:$0xf]
  %v3511 = vld [vmem:[%s3505 + $0x14] sm:$0xf]
  %v3512 = vld [vmem:[%s3505 + $0x18] sm:$0xf]
  %v3513 = vld [vmem:[%s3505 + $0x1c] sm:$0xf]
  %v3514 = vld [vmem:[%s3505 + $0x20] sm:$0xf]
  %v3515 = vld [vmem:[%s3505 + $0x24] sm:$0xf]
  %v3516 = vld [vmem:[%s3505 + $0x28] sm:$0xf]
  %v3517 = vld [vmem:[%s3505 + $0x2c] sm:$0xf]
  %v3518 = vld [vmem:[%s3505 + $0x30] sm:$0xf]
  %v3519 = vld [vmem:[%s3505 + $0x34] sm:$0xf]
  %v3520 = vld [vmem:[%s3505 + $0x38] sm:$0xf]
  %v3521 = vld [vmem:[%s3505 + $0x3c] sm:$0xf]
  %v3522 = vld [vmem:[%s3505 + $0x40] sm:$0xf]
  %v3523 = vld [vmem:[%s3505 + $0x44] sm:$0x1]
  %v3524 = vrot.slane %v2883, 1
  %v3525 = vrot.slane %v2885, 2
  %v3526 = vor.u32 %v3524, %v3525
  %v3527 = vrot.slane %v2906, 1
  %v3528 = vrot.slane %v2890, 2
  %v3529 = vor.u32 %v3527, %v3528
  %v3530 = vsel %vm1117, %v3526, %v3529
  %v3531 = vrot.slane %v2895, 1
  %v3532 = vrot.slane %v2897, 2
  %v3533 = vor.u32 %v3531, %v3532
  %v3534 = vrot.slane %v2914, 1
  %v3535 = vrot.slane %v2902, 2
  %v3536 = vor.u32 %v3534, %v3535
  %v3537 = vsel %vm1117, %v3533, %v3536
  %v3538 = vrot.slane %v2922, 1
  %v3539 = vrot.slane %v2910, 2
  %v3540 = vor.u32 %v3538, %v3539
  %v3541 = vsel %vm1117, %v3529, %v3540
  %v3542 = vrot.slane %v2930, 1
  %v3543 = vrot.slane %v2918, 2
  %v3544 = vor.u32 %v3542, %v3543
  %v3545 = vsel %vm1117, %v3536, %v3544
  %v3546 = vrot.slane %v2938, 1
  %v3547 = vrot.slane %v2926, 2
  %v3548 = vor.u32 %v3546, %v3547
  %v3549 = vsel %vm1117, %v3540, %v3548
  %v3550 = vrot.slane %v2946, 1
  %v3551 = vrot.slane %v2934, 2
  %v3552 = vor.u32 %v3550, %v3551
  %v3553 = vsel %vm1117, %v3544, %v3552
  %v3554 = vrot.slane %v2954, 1
  %v3555 = vrot.slane %v2942, 2
  %v3556 = vor.u32 %v3554, %v3555
  %v3557 = vsel %vm1117, %v3548, %v3556
  %v3558 = vrot.slane %v2962, 1
  %v3559 = vrot.slane %v2950, 2
  %v3560 = vor.u32 %v3558, %v3559
  %v3561 = vsel %vm1117, %v3552, %v3560
  %v3562 = vrot.slane %v2970, 1
  %v3563 = vrot.slane %v2958, 2
  %v3564 = vor.u32 %v3562, %v3563
  %v3565 = vsel %vm1117, %v3556, %v3564
  %v3566 = vrot.slane %v2973, 1
  %v3567 = vrot.slane %v2966, 2
  %v3568 = vor.u32 %v3566, %v3567
  %v3569 = vsel %vm1117, %v3560, %v3568
  %v3594 = vunpack.c.l.b16 %v3506
  %v3595 = vunpack.c.l.b16 %v3507
  %v3596 = vunpack.c.l.b16 %v3508
  %v3597 = vunpack.c.l.b16 %v3509
  %v3598 = vunpack.c.l.b16 %v3510
  %v3599 = vunpack.c.l.b16 %v3511
  %v3600 = vunpack.c.l.b16 %v3512
  %v3601 = vunpack.c.l.b16 %v3513
  %v3602 = vunpack.c.l.b16 %v3514
  %v3603 = vunpack.c.l.b16 %v3515
  %v3604 = vunpack.c.l.b16 %v3516
  %v3605 = vunpack.c.l.b16 %v3517
  %v3606 = vunpack.c.l.b16 %v3518
  %v3607 = vunpack.c.l.b16 %v3519
  %v3608 = vunpack.c.l.b16 %v3520
  %v3609 = vunpack.c.l.b16 %v3521
  %v3610 = vunpack.c.l.b16 %v3522
  %v3611 = vunpack.c.l.b16 %v3523
  %v3612 = vpack.c.b16 %v3595, %v3594
  %v3613 = vpack.c.b16 %v3597, %v3596
  %v3614 = vpack.c.b16 %v3599, %v3598
  %v3615 = vpack.c.b16 %v3601, %v3600
  %v3616 = vpack.c.b16 %v3603, %v3602
  %v3617 = vpack.c.b16 %v3605, %v3604
  %v3618 = vpack.c.b16 %v3607, %v3606
  %v3619 = vpack.c.b16 %v3609, %v3608
  %v3620 = vpack.c.b16 %v3611, %v3610
  %v3630 = vsel %vm3035, %v3537, 0
  %v3633 = vsel %vm3035, %v3545, 0
  %v3636 = vsel %vm3035, %v3553, 0
  %v3639 = vsel %vm3035, %v3561, 0
  %v3642 = vsel %vm3035, %v3569, 0
  %v3645 = vsel %vm3035, %v3568, 0
  %v3648 = vsel %vm3054, %v3620, 0
  %3650 = vmatpush.bf16.msra.mxu0 %v3619
  %3651 = vmatpush.bf16.msra.mxu0 %v3618
  %3652 = vmatpush.bf16.msra.mxu0 %v3617
  %3653 = vmatpush.bf16.msra.mxu0 %v3616
  %3654 = vmatpush.bf16.msra.mxu0 %v3615
  %3655 = vmatpush.bf16.msra.mxu0 %v3614
  %3656 = vmatpush.bf16.msra.mxu0 %v3613
  %3657 = vmatpush.bf16.msra.mxu0 %v3612
  %3658 = vmatmul.bf16.gmra.mxu0 %v3530
  %v3659 = vpop.f32.mrf.mxu0
  %v3660 = vadd.f32 0.0, %v3659
  %v3661 = vpop.f32.mrf.mxu0
  %v3662 = vadd.f32 0.0, %v3661
  %3663 = vmatmul.bf16.gmra.mxu0 %v3541
  %v3664 = vpop.f32.mrf.mxu0
  %v3665 = vadd.f32 0.0, %v3664
  %v3666 = vpop.f32.mrf.mxu0
  %v3667 = vadd.f32 0.0, %v3666
  %3668 = vmatmul.bf16.gmra.mxu0 %v3549
  %v3669 = vpop.f32.mrf.mxu0
  %v3670 = vadd.f32 0.0, %v3669
  %v3671 = vpop.f32.mrf.mxu0
  %v3672 = vadd.f32 0.0, %v3671
  %3673 = vmatmul.bf16.gmra.mxu0 %v3557
  %v3674 = vpop.f32.mrf.mxu0
  %v3675 = vadd.f32 0.0, %v3674
  %v3676 = vpop.f32.mrf.mxu0
  %v3677 = vadd.f32 0.0, %v3676
  %3678 = vmatmul.bf16.gmra.mxu0 %v3565
  %v3679 = vpop.f32.mrf.mxu0
  %v3680 = vadd.f32 0.0, %v3679
  %v3681 = vpop.f32.mrf.mxu0
  %v3682 = vadd.f32 0.0, %v3681
  %3683 = vmatmul.bf16.gmra.mxu0 %v3564
  %v3684 = vpop.f32.mrf.mxu0
  %v3685 = vadd.f32 0.0, %v3684
  %v3686 = vpop.f32.mrf.mxu0
  %v3687 = vadd.f32 0.0, %v3686
  %3688 = vdwg.mxu0
  %3689 = vmatpush.bf16.msra.mxu0 0
  %3690 = vmatpush.bf16.msra.mxu0 0
  %3691 = vmatpush.bf16.msra.mxu0 0
  %3692 = vmatpush.bf16.msra.mxu0 0
  %3693 = vmatpush.bf16.msra.mxu0 0
  %3694 = vmatpush.bf16.msra.mxu0 0
  %3695 = vmatpush.bf16.msra.mxu0 0
  %3696 = vmatpush.bf16.msra.mxu0 %v3648
  %3697 = vmatmul.bf16.gmra.mxu0 %v3630
  %v3698 = vpop.f32.mrf.mxu0
  %v3699 = vadd.f32 %v3660, %v3698
  %v3700 = vpop.f32.mrf.mxu0
  %v3701 = vadd.f32 %v3662, %v3700
  %3702 = vmatmul.bf16.gmra.mxu0 %v3633
  %v3703 = vpop.f32.mrf.mxu0
  %v3704 = vadd.f32 %v3665, %v3703
  %v3705 = vpop.f32.mrf.mxu0
  %v3706 = vadd.f32 %v3667, %v3705
  %3707 = vmatmul.bf16.gmra.mxu0 %v3636
  %v3708 = vpop.f32.mrf.mxu0
  %v3709 = vadd.f32 %v3670, %v3708
  %v3710 = vpop.f32.mrf.mxu0
  %v3711 = vadd.f32 %v3672, %v3710
  %3712 = vmatmul.bf16.gmra.mxu0 %v3639
  %v3713 = vpop.f32.mrf.mxu0
  %v3714 = vadd.f32 %v3675, %v3713
  %v3715 = vpop.f32.mrf.mxu0
  %v3716 = vadd.f32 %v3677, %v3715
  %3717 = vmatmul.bf16.gmra.mxu0 %v3642
  %v3718 = vpop.f32.mrf.mxu0
  %v3719 = vadd.f32 %v3680, %v3718
  %v3720 = vpop.f32.mrf.mxu0
  %v3721 = vadd.f32 %v3682, %v3720
  %3722 = vmatmul.bf16.gmra.mxu0 %v3645
  %v3723 = vpop.f32.mrf.mxu0
  %v3724 = vadd.f32 %v3685, %v3723
  %v3725 = vpop.f32.mrf.mxu0
  %v3726 = vadd.f32 %v3687, %v3725
  %3727 = vdwg.mxu0
  %v3728 = vadd.f32 %v3493, %v3699
  %v3729 = vadd.f32 %v3494, %v3701
  %v3730 = vadd.f32 %v3495, %v3704
  %v3731 = vadd.f32 %v3496, %v3706
  %v3732 = vadd.f32 %v3497, %v3709
  %v3733 = vadd.f32 %v3498, %v3711
  %v3734 = vadd.f32 %v3499, %v3714
  %v3735 = vadd.f32 %v3500, %v3716
  %v3736 = vadd.f32 %v3501, %v3719
  %v3737 = vadd.f32 %v3502, %v3721
  %v3738 = vadd.f32 %v3503, %v3724
  %v3739 = vadd.f32 %v3504, %v3726
  %s3740 = scalar_lea.vmem %s4, 288
  %v3741 = vld [vmem:[%s3740] sm:$0xf]
  %v3742 = vld [vmem:[%s3740 + $0x4] sm:$0xf]
  %v3743 = vld [vmem:[%s3740 + $0x8] sm:$0xf]
  %v3744 = vld [vmem:[%s3740 + $0xc] sm:$0xf]
  %v3745 = vld [vmem:[%s3740 + $0x10] sm:$0xf]
  %v3746 = vld [vmem:[%s3740 + $0x14] sm:$0xf]
  %v3747 = vld [vmem:[%s3740 + $0x18] sm:$0xf]
  %v3748 = vld [vmem:[%s3740 + $0x1c] sm:$0xf]
  %v3749 = vld [vmem:[%s3740 + $0x20] sm:$0xf]
  %v3750 = vld [vmem:[%s3740 + $0x24] sm:$0xf]
  %v3751 = vld [vmem:[%s3740 + $0x28] sm:$0xf]
  %v3752 = vld [vmem:[%s3740 + $0x2c] sm:$0xf]
  %v3753 = vld [vmem:[%s3740 + $0x30] sm:$0xf]
  %v3754 = vld [vmem:[%s3740 + $0x34] sm:$0xf]
  %v3755 = vld [vmem:[%s3740 + $0x38] sm:$0xf]
  %v3756 = vld [vmem:[%s3740 + $0x3c] sm:$0xf]
  %v3757 = vld [vmem:[%s3740 + $0x40] sm:$0xf]
  %v3758 = vld [vmem:[%s3740 + $0x44] sm:$0x1]
  %v3759 = vrot.slane %v2833, 2
  %v3760 = vrot.slane %v2835, 2
  %v3761 = vsel %vm1502, %v3759, %v3760
  %v3762 = vrot.slane %v2834, 2
  %v3763 = vrot.slane %v2836, 2
  %v3764 = vsel %vm1502, %v3762, %v3763
  %v3765 = vrot.slane %v2837, 2
  %v3766 = vsel %vm1502, %v3760, %v3765
  %v3767 = vrot.slane %v2838, 2
  %v3768 = vsel %vm1502, %v3763, %v3767
  %v3769 = vrot.slane %v2839, 2
  %v3770 = vsel %vm1502, %v3765, %v3769
  %v3771 = vrot.slane %v2840, 2
  %v3772 = vsel %vm1502, %v3767, %v3771
  %v3773 = vrot.slane %v2841, 2
  %v3774 = vsel %vm1502, %v3769, %v3773
  %v3775 = vrot.slane %v2842, 2
  %v3776 = vsel %vm1502, %v3771, %v3775
  %v3777 = vrot.slane %v2843, 2
  %v3778 = vsel %vm1502, %v3773, %v3777
  %v3779 = vrot.slane %v2844, 2
  %v3780 = vsel %vm1502, %v3775, %v3779
  %v3805 = vunpack.c.l.b16 %v3741
  %v3806 = vunpack.c.l.b16 %v3742
  %v3807 = vunpack.c.l.b16 %v3743
  %v3808 = vunpack.c.l.b16 %v3744
  %v3809 = vunpack.c.l.b16 %v3745
  %v3810 = vunpack.c.l.b16 %v3746
  %v3811 = vunpack.c.l.b16 %v3747
  %v3812 = vunpack.c.l.b16 %v3748
  %v3813 = vunpack.c.l.b16 %v3749
  %v3814 = vunpack.c.l.b16 %v3750
  %v3815 = vunpack.c.l.b16 %v3751
  %v3816 = vunpack.c.l.b16 %v3752
  %v3817 = vunpack.c.l.b16 %v3753
  %v3818 = vunpack.c.l.b16 %v3754
  %v3819 = vunpack.c.l.b16 %v3755
  %v3820 = vunpack.c.l.b16 %v3756
  %v3821 = vunpack.c.l.b16 %v3757
  %v3822 = vunpack.c.l.b16 %v3758
  %v3823 = vpack.c.b16 %v3806, %v3805
  %v3824 = vpack.c.b16 %v3808, %v3807
  %v3825 = vpack.c.b16 %v3810, %v3809
  %v3826 = vpack.c.b16 %v3812, %v3811
  %v3827 = vpack.c.b16 %v3814, %v3813
  %v3828 = vpack.c.b16 %v3816, %v3815
  %v3829 = vpack.c.b16 %v3818, %v3817
  %v3830 = vpack.c.b16 %v3820, %v3819
  %v3831 = vpack.c.b16 %v3822, %v3821
  %v3841 = vsel %vm3035, %v3764, 0
  %v3844 = vsel %vm3035, %v3768, 0
  %v3847 = vsel %vm3035, %v3772, 0
  %v3850 = vsel %vm3035, %v3776, 0
  %v3853 = vsel %vm3035, %v3780, 0
  %v3856 = vsel %vm3035, %v3779, 0
  %v3859 = vsel %vm3054, %v3831, 0
  %3861 = vmatpush.bf16.msra.mxu0 %v3830
  %3862 = vmatpush.bf16.msra.mxu0 %v3829
  %3863 = vmatpush.bf16.msra.mxu0 %v3828
  %3864 = vmatpush.bf16.msra.mxu0 %v3827
  %3865 = vmatpush.bf16.msra.mxu0 %v3826
  %3866 = vmatpush.bf16.msra.mxu0 %v3825
  %3867 = vmatpush.bf16.msra.mxu0 %v3824
  %3868 = vmatpush.bf16.msra.mxu0 %v3823
  %3869 = vmatmul.bf16.gmra.mxu0 %v3761
  %v3870 = vpop.f32.mrf.mxu0
  %v3871 = vadd.f32 0.0, %v3870
  %v3872 = vpop.f32.mrf.mxu0
  %v3873 = vadd.f32 0.0, %v3872
  %3874 = vmatmul.bf16.gmra.mxu0 %v3766
  %v3875 = vpop.f32.mrf.mxu0
  %v3876 = vadd.f32 0.0, %v3875
  %v3877 = vpop.f32.mrf.mxu0
  %v3878 = vadd.f32 0.0, %v3877
  %3879 = vmatmul.bf16.gmra.mxu0 %v3770
  %v3880 = vpop.f32.mrf.mxu0
  %v3881 = vadd.f32 0.0, %v3880
  %v3882 = vpop.f32.mrf.mxu0
  %v3883 = vadd.f32 0.0, %v3882
  %3884 = vmatmul.bf16.gmra.mxu0 %v3774
  %v3885 = vpop.f32.mrf.mxu0
  %v3886 = vadd.f32 0.0, %v3885
  %v3887 = vpop.f32.mrf.mxu0
  %v3888 = vadd.f32 0.0, %v3887
  %3889 = vmatmul.bf16.gmra.mxu0 %v3778
  %v3890 = vpop.f32.mrf.mxu0
  %v3891 = vadd.f32 0.0, %v3890
  %v3892 = vpop.f32.mrf.mxu0
  %v3893 = vadd.f32 0.0, %v3892
  %3894 = vmatmul.bf16.gmra.mxu0 %v3777
  %v3895 = vpop.f32.mrf.mxu0
  %v3896 = vadd.f32 0.0, %v3895
  %v3897 = vpop.f32.mrf.mxu0
  %v3898 = vadd.f32 0.0, %v3897
  %3899 = vdwg.mxu0
  %3900 = vmatpush.bf16.msra.mxu0 0
  %3901 = vmatpush.bf16.msra.mxu0 0
  %3902 = vmatpush.bf16.msra.mxu0 0
  %3903 = vmatpush.bf16.msra.mxu0 0
  %3904 = vmatpush.bf16.msra.mxu0 0
  %3905 = vmatpush.bf16.msra.mxu0 0
  %3906 = vmatpush.bf16.msra.mxu0 0
  %3907 = vmatpush.bf16.msra.mxu0 %v3859
  %3908 = vmatmul.bf16.gmra.mxu0 %v3841
  %v3909 = vpop.f32.mrf.mxu0
  %v3910 = vadd.f32 %v3871, %v3909
  %v3911 = vpop.f32.mrf.mxu0
  %v3912 = vadd.f32 %v3873, %v3911
  %3913 = vmatmul.bf16.gmra.mxu0 %v3844
  %v3914 = vpop.f32.mrf.mxu0
  %v3915 = vadd.f32 %v3876, %v3914
  %v3916 = vpop.f32.mrf.mxu0
  %v3917 = vadd.f32 %v3878, %v3916
  %3918 = vmatmul.bf16.gmra.mxu0 %v3847
  %v3919 = vpop.f32.mrf.mxu0
  %v3920 = vadd.f32 %v3881, %v3919
  %v3921 = vpop.f32.mrf.mxu0
  %v3922 = vadd.f32 %v3883, %v3921
  %3923 = vmatmul.bf16.gmra.mxu0 %v3850
  %v3924 = vpop.f32.mrf.mxu0
  %v3925 = vadd.f32 %v3886, %v3924
  %v3926 = vpop.f32.mrf.mxu0
  %v3927 = vadd.f32 %v3888, %v3926
  %3928 = vmatmul.bf16.gmra.mxu0 %v3853
  %v3929 = vpop.f32.mrf.mxu0
  %v3930 = vadd.f32 %v3891, %v3929
  %v3931 = vpop.f32.mrf.mxu0
  %v3932 = vadd.f32 %v3893, %v3931
  %3933 = vmatmul.bf16.gmra.mxu0 %v3856
  %v3934 = vpop.f32.mrf.mxu0
  %v3935 = vadd.f32 %v3896, %v3934
  %v3936 = vpop.f32.mrf.mxu0
  %v3937 = vadd.f32 %v3898, %v3936
  %3938 = vdwg.mxu0
  %v3939 = vadd.f32 %v3728, %v3910
  %v3940 = vadd.f32 %v3729, %v3912
  %v3941 = vadd.f32 %v3730, %v3915
  %v3942 = vadd.f32 %v3731, %v3917
  %v3943 = vadd.f32 %v3732, %v3920
  %v3944 = vadd.f32 %v3733, %v3922
  %v3945 = vadd.f32 %v3734, %v3925
  %v3946 = vadd.f32 %v3735, %v3927
  %v3947 = vadd.f32 %v3736, %v3930
  %v3948 = vadd.f32 %v3737, %v3932
  %v3949 = vadd.f32 %v3738, %v3935
  %v3950 = vadd.f32 %v3739, %v3937
  %v3951 = vld [vmem:[%s5] sm:$0x1]
  %v3953 = vperm.slane %v3951, 0
  %v3955 = vadd.f32 %v3939, %v3953
  %v3956 = vadd.f32 %v3940, %v3953
  %v3957 = vadd.f32 %v3941, %v3953
  %v3958 = vadd.f32 %v3942, %v3953
  %v3959 = vadd.f32 %v3943, %v3953
  %v3960 = vadd.f32 %v3944, %v3953
  %v3961 = vadd.f32 %v3945, %v3953
  %v3962 = vadd.f32 %v3946, %v3953
  %v3963 = vadd.f32 %v3947, %v3953
  %v3964 = vadd.f32 %v3948, %v3953
  %v3965 = vadd.f32 %v3949, %v3953
  %v3966 = vadd.f32 %v3950, %v3953
  %v3967 = vmax.f32 %v3955, 0.0
  %v3968 = vmax.f32 %v3956, 0.0
  %v3969 = vmax.f32 %v3957, 0.0
  %v3970 = vmax.f32 %v3958, 0.0
  %v3971 = vmax.f32 %v3959, 0.0
  %v3972 = vmax.f32 %v3960, 0.0
  %v3973 = vmax.f32 %v3961, 0.0
  %v3974 = vmax.f32 %v3962, 0.0
  %v3975 = vmax.f32 %v3963, 0.0
  %v3976 = vmax.f32 %v3964, 0.0
  %v3977 = vmax.f32 %v3965, 0.0
  %v3978 = vmax.f32 %v3966, 0.0
  %3991 = vrot.lane.b32.xlu0 %v3967, 112
  %v3992 = vpop.permute.xlu0 %3991
  %3993 = vrot.lane.b32.xlu0 %v3968, 112
  %v3994 = vpop.permute.xlu0 %3993
  %3995 = vrot.lane.b32.xlu0 %v3969, 112
  %v3996 = vpop.permute.xlu0 %3995
  %3997 = vrot.lane.b32.xlu0 %v3970, 112
  %v3998 = vpop.permute.xlu0 %3997
  %3999 = vrot.lane.b32.xlu0 %v3971, 112
  %v4000 = vpop.permute.xlu0 %3999
  %4001 = vrot.lane.b32.xlu0 %v3972, 112
  %v4002 = vpop.permute.xlu0 %4001
  %4003 = vrot.lane.b32.xlu0 %v3973, 112
  %v4004 = vpop.permute.xlu0 %4003
  %4005 = vrot.lane.b32.xlu0 %v3974, 112
  %v4006 = vpop.permute.xlu0 %4005
  %4007 = vrot.lane.b32.xlu0 %v3975, 112
  %v4008 = vpop.permute.xlu0 %4007
  %4009 = vrot.lane.b32.xlu0 %v3976, 112
  %v4010 = vpop.permute.xlu0 %4009
  %4011 = vrot.lane.b32.xlu0 %v3977, 112
  %v4012 = vpop.permute.xlu0 %4011
  %4013 = vrot.lane.b32.xlu0 %v3978, 112
  %v4014 = vpop.permute.xlu0 %4013
  %v4027 = vmax.f32 %v3967, %v3992
  %v4028 = vmax.f32 %v3968, %v3994
  %v4029 = vmax.f32 %v3969, %v3996
  %v4030 = vmax.f32 %v3970, %v3998
  %v4031 = vmax.f32 %v3971, %v4000
  %v4032 = vmax.f32 %v3972, %v4002
  %v4033 = vmax.f32 %v3973, %v4004
  %v4034 = vmax.f32 %v3974, %v4006
  %v4035 = vmax.f32 %v3975, %v4008
  %v4036 = vmax.f32 %v3976, %v4010
  %v4037 = vmax.f32 %v3977, %v4012
  %v4038 = vmax.f32 %v3978, %v4014
  %v4051 = vrot.slane %v4027, 1
  %v4052 = vrot.slane %v4028, 1
  %v4053 = vsel %vm2330, %v4051, %v4052
  %v4054 = vrot.slane %v4029, 1
  %v4055 = vsel %vm2330, %v4052, %v4054
  %v4056 = vrot.slane %v4030, 1
  %v4057 = vsel %vm2330, %v4054, %v4056
  %v4058 = vrot.slane %v4031, 1
  %v4059 = vsel %vm2330, %v4056, %v4058
  %v4060 = vrot.slane %v4032, 1
  %v4061 = vsel %vm2330, %v4058, %v4060
  %v4062 = vrot.slane %v4033, 1
  %v4063 = vsel %vm2330, %v4060, %v4062
  %v4064 = vrot.slane %v4034, 1
  %v4065 = vsel %vm2330, %v4062, %v4064
  %v4066 = vrot.slane %v4035, 1
  %v4067 = vsel %vm2330, %v4064, %v4066
  %v4068 = vrot.slane %v4036, 1
  %v4069 = vsel %vm2330, %v4066, %v4068
  %v4070 = vrot.slane %v4037, 1
  %v4071 = vsel %vm2330, %v4068, %v4070
  %v4072 = vrot.slane %v4038, 1
  %v4073 = vsel %vm2330, %v4070, %v4072
  %v4086 = vmax.f32 %v4027, %v4053
  %v4087 = vmax.f32 %v4028, %v4055
  %v4088 = vmax.f32 %v4029, %v4057
  %v4089 = vmax.f32 %v4030, %v4059
  %v4090 = vmax.f32 %v4031, %v4061
  %v4091 = vmax.f32 %v4032, %v4063
  %v4092 = vmax.f32 %v4033, %v4065
  %v4093 = vmax.f32 %v4034, %v4067
  %v4094 = vmax.f32 %v4035, %v4069
  %v4095 = vmax.f32 %v4036, %v4071
  %v4096 = vmax.f32 %v4037, %v4073
  %v4097 = vmax.f32 %v4038, %v4072
  %v4098 = vld [vmem:[%s6] sm:$0xff]
  %v4100 = vsel %vm2577, %v4098, 0
  %v4103 = vsel %vm2614, %v4097, 0
  %4105 = vmatpush.msra.mxu0 0.0
  %4106 = vmatpush.msra.mxu0 0.0
  %4107 = vmatpush.msra.mxu0 0.0
  %4108 = vmatpush.msra.mxu0 0.0
  %4109 = vmatpush.msra.mxu0 %v4103
  %4110 = vmatpush.msra.mxu0 %v4096
  %4111 = vmatpush.msra.mxu0 %v4095
  %4112 = vmatpush.msra.mxu0 %v4094
  %4113 = vmatpush.msra.mxu0 %v4093
  %4114 = vmatpush.msra.mxu0 %v4092
  %4115 = vmatpush.msra.mxu0 %v4091
  %4116 = vmatpush.msra.mxu0 %v4090
  %4117 = vmatpush.msra.mxu0 %v4089
  %4118 = vmatpush.msra.mxu0 %v4088
  %4119 = vmatpush.msra.mxu0 %v4087
  %4120 = vmatpush.msra.mxu0 %v4086
  %4121 = vmatmul.f32.gmra.mxu0 %v4100
  %v4122 = vpop.f32.mrf.mxu0
  %v4123 = vadd.f32 0.0, %v4122
  %4124 = vdwg.mxu0
  %v4125 = vpack.c.bf16 %v4123, %v4123
  %v4126 = vld [vmem:[%s7] sm:$0xf]
  %v4127 = vld [vmem:[%s7 + $0x4] sm:$0xf]
  %v4128 = vld [vmem:[%s7 + $0x8] sm:$0xf]
  %v4129 = vld [vmem:[%s7 + $0xc] sm:$0xf]
  %v4130 = vld [vmem:[%s7 + $0x10] sm:$0xf]
  %v4131 = vld [vmem:[%s7 + $0x14] sm:$0xf]
  %v4132 = vld [vmem:[%s7 + $0x18] sm:$0xf]
  %v4133 = vld [vmem:[%s7 + $0x1c] sm:$0xf]
  %v4134 = vld [vmem:[%s7 + $0x20] sm:$0xf]
  %v4135 = vld [vmem:[%s7 + $0x24] sm:$0xf]
  %v4136 = vld [vmem:[%s7 + $0x28] sm:$0xf]
  %v4137 = vld [vmem:[%s7 + $0x2c] sm:$0xf]
  %v4138 = vld [vmem:[%s7 + $0x30] sm:$0xf]
  %v4139 = vld [vmem:[%s7 + $0x34] sm:$0xf]
  %s4140 = scalar_lea.vmem %s6, 8
  %v4141 = vld [vmem:[%s4140] sm:$0xff]
  %v4143 = vsel %vm2577, %v4141, 0
  %4145 = vmatpush.msra.mxu0 0.0
  %4146 = vmatpush.msra.mxu0 0.0
  %4147 = vmatpush.msra.mxu0 0.0
  %4148 = vmatpush.msra.mxu0 0.0
  %4149 = vmatpush.msra.mxu0 %v4103
  %4150 = vmatpush.msra.mxu0 %v4096
  %4151 = vmatpush.msra.mxu0 %v4095
  %4152 = vmatpush.msra.mxu0 %v4094
  %4153 = vmatpush.msra.mxu0 %v4093
  %4154 = vmatpush.msra.mxu0 %v4092
  %4155 = vmatpush.msra.mxu0 %v4091
  %4156 = vmatpush.msra.mxu0 %v4090
  %4157 = vmatpush.msra.mxu0 %v4089
  %4158 = vmatpush.msra.mxu0 %v4088
  %4159 = vmatpush.msra.mxu0 %v4087
  %4160 = vmatpush.msra.mxu0 %v4086
  %4161 = vmatmul.f32.gmra.mxu0 %v4143
  %v4162 = vpop.f32.mrf.mxu0
  %v4163 = vadd.f32 0.0, %v4162
  %4164 = vdwg.mxu0
  %v4165 = vpack.c.bf16 %v4163, %v4163
  %s4166 = scalar_lea.vmem %s7, 56
  %v4167 = vld [vmem:[%s4166] sm:$0xf]
  %v4168 = vld [vmem:[%s4166 + $0x4] sm:$0xf]
  %v4169 = vld [vmem:[%s4166 + $0x8] sm:$0xf]
  %v4170 = vld [vmem:[%s4166 + $0xc] sm:$0xf]
  %v4171 = vld [vmem:[%s4166 + $0x10] sm:$0xf]
  %v4172 = vld [vmem:[%s4166 + $0x14] sm:$0xf]
  %v4173 = vld [vmem:[%s4166 + $0x18] sm:$0xf]
  %v4174 = vld [vmem:[%s4166 + $0x1c] sm:$0xf]
  %v4175 = vld [vmem:[%s4166 + $0x20] sm:$0xf]
  %v4176 = vld [vmem:[%s4166 + $0x24] sm:$0xf]
  %v4177 = vld [vmem:[%s4166 + $0x28] sm:$0xf]
  %v4178 = vld [vmem:[%s4166 + $0x2c] sm:$0xf]
  %v4179 = vld [vmem:[%s4166 + $0x30] sm:$0xf]
  %v4180 = vld [vmem:[%s4166 + $0x34] sm:$0xf]
  %v4195 = vunpack.c.l.b16 %v4167
  %v4196 = vunpack.c.l.b16 %v4168
  %v4197 = vunpack.c.l.b16 %v4169
  %v4198 = vunpack.c.l.b16 %v4170
  %v4199 = vunpack.c.l.b16 %v4171
  %v4200 = vunpack.c.l.b16 %v4172
  %v4201 = vunpack.c.l.b16 %v4173
  %v4202 = vunpack.c.l.b16 %v4174
  %v4203 = vunpack.c.l.b16 %v4175
  %v4204 = vunpack.c.l.b16 %v4176
  %v4205 = vunpack.c.l.b16 %v4177
  %v4206 = vunpack.c.l.b16 %v4178
  %v4207 = vunpack.c.l.b16 %v4179
  %v4208 = vunpack.c.l.b16 %v4180
  %v4209 = vpack.c.b16 %v4196, %v4195
  %v4210 = vpack.c.b16 %v4198, %v4197
  %v4211 = vpack.c.b16 %v4200, %v4199
  %v4212 = vpack.c.b16 %v4202, %v4201
  %v4213 = vpack.c.b16 %v4204, %v4203
  %v4214 = vpack.c.b16 %v4206, %v4205
  %v4215 = vpack.c.b16 %v4208, %v4207
  %vm4223 = vcmask 916480
  %v4225 = vsel %vm4223, %v4165, 0
  %4227 = vmatpush.bf16.msra.mxu0 0
  %4228 = vmatpush.bf16.msra.mxu0 %v4215
  %4229 = vmatpush.bf16.msra.mxu0 %v4214
  %4230 = vmatpush.bf16.msra.mxu0 %v4213
  %4231 = vmatpush.bf16.msra.mxu0 %v4212
  %4232 = vmatpush.bf16.msra.mxu0 %v4211
  %4233 = vmatpush.bf16.msra.mxu0 %v4210
  %4234 = vmatpush.bf16.msra.mxu0 %v4209
  %4235 = vmatmul.bf16.gmra.mxu0 %v4225
  %v4236 = vpop.f32.mrf.mxu0
  %v4237 = vadd.f32 0.0, %v4236
  %v4238 = vpop.f32.mrf.mxu0
  %4239 = vdwg.mxu0
  %v4254 = vunpack.c.l.b16 %v4126
  %v4255 = vunpack.c.l.b16 %v4127
  %v4256 = vunpack.c.l.b16 %v4128
  %v4257 = vunpack.c.l.b16 %v4129
  %v4258 = vunpack.c.l.b16 %v4130
  %v4259 = vunpack.c.l.b16 %v4131
  %v4260 = vunpack.c.l.b16 %v4132
  %v4261 = vunpack.c.l.b16 %v4133
  %v4262 = vunpack.c.l.b16 %v4134
  %v4263 = vunpack.c.l.b16 %v4135
  %v4264 = vunpack.c.l.b16 %v4136
  %v4265 = vunpack.c.l.b16 %v4137
  %v4266 = vunpack.c.l.b16 %v4138
  %v4267 = vunpack.c.l.b16 %v4139
  %v4268 = vpack.c.b16 %v4255, %v4254
  %v4269 = vpack.c.b16 %v4257, %v4256
  %v4270 = vpack.c.b16 %v4259, %v4258
  %v4271 = vpack.c.b16 %v4261, %v4260
  %v4272 = vpack.c.b16 %v4263, %v4262
  %v4273 = vpack.c.b16 %v4265, %v4264
  %v4274 = vpack.c.b16 %v4267, %v4266
  %v4283 = vsel %vm4223, %v4125, 0
  %4285 = vmatpush.bf16.msra.mxu0 0
  %4286 = vmatpush.bf16.msra.mxu0 %v4274
  %4287 = vmatpush.bf16.msra.mxu0 %v4273
  %4288 = vmatpush.bf16.msra.mxu0 %v4272
  %4289 = vmatpush.bf16.msra.mxu0 %v4271
  %4290 = vmatpush.bf16.msra.mxu0 %v4270
  %4291 = vmatpush.bf16.msra.mxu0 %v4269
  %4292 = vmatpush.bf16.msra.mxu0 %v4268
  %4293 = vmatmul.bf16.gmra.mxu0 %v4283
  %v4294 = vpop.f32.mrf.mxu0
  %v4295 = vadd.f32 %v4237, %v4294
  %v4296 = vpop.f32.mrf.mxu0
  %4297 = vdwg.mxu0
  %s4298 = scalar_lea.vmem %s6, 16
  %v4299 = vld [vmem:[%s4298] sm:$0xff]
  %v4301 = vsel %vm2577, %v4299, 0
  %4303 = vmatpush.msra.mxu0 0.0
  %4304 = vmatpush.msra.mxu0 0.0
  %4305 = vmatpush.msra.mxu0 0.0
  %4306 = vmatpush.msra.mxu0 0.0
  %4307 = vmatpush.msra.mxu0 %v4103
  %4308 = vmatpush.msra.mxu0 %v4096
  %4309 = vmatpush.msra.mxu0 %v4095
  %4310 = vmatpush.msra.mxu0 %v4094
  %4311 = vmatpush.msra.mxu0 %v4093
  %4312 = vmatpush.msra.mxu0 %v4092
  %4313 = vmatpush.msra.mxu0 %v4091
  %4314 = vmatpush.msra.mxu0 %v4090
  %4315 = vmatpush.msra.mxu0 %v4089
  %4316 = vmatpush.msra.mxu0 %v4088
  %4317 = vmatpush.msra.mxu0 %v4087
  %4318 = vmatpush.msra.mxu0 %v4086
  %4319 = vmatmul.f32.gmra.mxu0 %v4301
  %v4320 = vpop.f32.mrf.mxu0
  %v4321 = vadd.f32 0.0, %v4320
  %4322 = vdwg.mxu0
  %v4323 = vpack.c.bf16 %v4321, %v4321
  %s4324 = scalar_lea.vmem %s7, 112
  %v4325 = vld [vmem:[%s4324] sm:$0xf]
  %v4326 = vld [vmem:[%s4324 + $0x4] sm:$0xf]
  %v4327 = vld [vmem:[%s4324 + $0x8] sm:$0xf]
  %v4328 = vld [vmem:[%s4324 + $0xc] sm:$0xf]
  %v4329 = vld [vmem:[%s4324 + $0x10] sm:$0xf]
  %v4330 = vld [vmem:[%s4324 + $0x14] sm:$0xf]
  %v4331 = vld [vmem:[%s4324 + $0x18] sm:$0xf]
  %v4332 = vld [vmem:[%s4324 + $0x1c] sm:$0xf]
  %v4333 = vld [vmem:[%s4324 + $0x20] sm:$0xf]
  %v4334 = vld [vmem:[%s4324 + $0x24] sm:$0xf]
  %v4335 = vld [vmem:[%s4324 + $0x28] sm:$0xf]
  %v4336 = vld [vmem:[%s4324 + $0x2c] sm:$0xf]
  %v4337 = vld [vmem:[%s4324 + $0x30] sm:$0xf]
  %v4338 = vld [vmem:[%s4324 + $0x34] sm:$0xf]
  %v4353 = vunpack.c.l.b16 %v4325
  %v4354 = vunpack.c.l.b16 %v4326
  %v4355 = vunpack.c.l.b16 %v4327
  %v4356 = vunpack.c.l.b16 %v4328
  %v4357 = vunpack.c.l.b16 %v4329
  %v4358 = vunpack.c.l.b16 %v4330
  %v4359 = vunpack.c.l.b16 %v4331
  %v4360 = vunpack.c.l.b16 %v4332
  %v4361 = vunpack.c.l.b16 %v4333
  %v4362 = vunpack.c.l.b16 %v4334
  %v4363 = vunpack.c.l.b16 %v4335
  %v4364 = vunpack.c.l.b16 %v4336
  %v4365 = vunpack.c.l.b16 %v4337
  %v4366 = vunpack.c.l.b16 %v4338
  %v4367 = vpack.c.b16 %v4354, %v4353
  %v4368 = vpack.c.b16 %v4356, %v4355
  %v4369 = vpack.c.b16 %v4358, %v4357
  %v4370 = vpack.c.b16 %v4360, %v4359
  %v4371 = vpack.c.b16 %v4362, %v4361
  %v4372 = vpack.c.b16 %v4364, %v4363
  %v4373 = vpack.c.b16 %v4366, %v4365
  %v4382 = vsel %vm4223, %v4323, 0
  %4384 = vmatpush.bf16.msra.mxu0 0
  %4385 = vmatpush.bf16.msra.mxu0 %v4373
  %4386 = vmatpush.bf16.msra.mxu0 %v4372
  %4387 = vmatpush.bf16.msra.mxu0 %v4371
  %4388 = vmatpush.bf16.msra.mxu0 %v4370
  %4389 = vmatpush.bf16.msra.mxu0 %v4369
  %4390 = vmatpush.bf16.msra.mxu0 %v4368
  %4391 = vmatpush.bf16.msra.mxu0 %v4367
  %4392 = vmatmul.bf16.gmra.mxu0 %v4382
  %v4393 = vpop.f32.mrf.mxu0
  %v4394 = vadd.f32 0.0, %v4393
  %v4395 = vpop.f32.mrf.mxu0
  %4396 = vdwg.mxu0
  %v4397 = vadd.f32 %v4295, %v4394
  %s4398 = scalar_lea.vmem %s6, 24
  %v4399 = vld [vmem:[%s4398] sm:$0xff]
  %v4401 = vsel %vm2577, %v4399, 0
  %4403 = vmatpush.msra.mxu0 0.0
  %4404 = vmatpush.msra.mxu0 0.0
  %4405 = vmatpush.msra.mxu0 0.0
  %4406 = vmatpush.msra.mxu0 0.0
  %4407 = vmatpush.msra.mxu0 %v4103
  %4408 = vmatpush.msra.mxu0 %v4096
  %4409 = vmatpush.msra.mxu0 %v4095
  %4410 = vmatpush.msra.mxu0 %v4094
  %4411 = vmatpush.msra.mxu0 %v4093
  %4412 = vmatpush.msra.mxu0 %v4092
  %4413 = vmatpush.msra.mxu0 %v4091
  %4414 = vmatpush.msra.mxu0 %v4090
  %4415 = vmatpush.msra.mxu0 %v4089
  %4416 = vmatpush.msra.mxu0 %v4088
  %4417 = vmatpush.msra.mxu0 %v4087
  %4418 = vmatpush.msra.mxu0 %v4086
  %4419 = vmatmul.f32.gmra.mxu0 %v4401
  %v4420 = vpop.f32.mrf.mxu0
  %v4421 = vadd.f32 0.0, %v4420
  %4422 = vdwg.mxu0
  %v4423 = vpack.c.bf16 %v4421, %v4421
  %s4424 = scalar_lea.vmem %s7, 168
  %v4425 = vld [vmem:[%s4424] sm:$0xf]
  %v4426 = vld [vmem:[%s4424 + $0x4] sm:$0xf]
  %v4427 = vld [vmem:[%s4424 + $0x8] sm:$0xf]
  %v4428 = vld [vmem:[%s4424 + $0xc] sm:$0xf]
  %v4429 = vld [vmem:[%s4424 + $0x10] sm:$0xf]
  %v4430 = vld [vmem:[%s4424 + $0x14] sm:$0xf]
  %v4431 = vld [vmem:[%s4424 + $0x18] sm:$0xf]
  %v4432 = vld [vmem:[%s4424 + $0x1c] sm:$0xf]
  %v4433 = vld [vmem:[%s4424 + $0x20] sm:$0xf]
  %v4434 = vld [vmem:[%s4424 + $0x24] sm:$0xf]
  %v4435 = vld [vmem:[%s4424 + $0x28] sm:$0xf]
  %v4436 = vld [vmem:[%s4424 + $0x2c] sm:$0xf]
  %v4437 = vld [vmem:[%s4424 + $0x30] sm:$0xf]
  %v4438 = vld [vmem:[%s4424 + $0x34] sm:$0xf]
  %v4453 = vunpack.c.l.b16 %v4425
  %v4454 = vunpack.c.l.b16 %v4426
  %v4455 = vunpack.c.l.b16 %v4427
  %v4456 = vunpack.c.l.b16 %v4428
  %v4457 = vunpack.c.l.b16 %v4429
  %v4458 = vunpack.c.l.b16 %v4430
  %v4459 = vunpack.c.l.b16 %v4431
  %v4460 = vunpack.c.l.b16 %v4432
  %v4461 = vunpack.c.l.b16 %v4433
  %v4462 = vunpack.c.l.b16 %v4434
  %v4463 = vunpack.c.l.b16 %v4435
  %v4464 = vunpack.c.l.b16 %v4436
  %v4465 = vunpack.c.l.b16 %v4437
  %v4466 = vunpack.c.l.b16 %v4438
  %v4467 = vpack.c.b16 %v4454, %v4453
  %v4468 = vpack.c.b16 %v4456, %v4455
  %v4469 = vpack.c.b16 %v4458, %v4457
  %v4470 = vpack.c.b16 %v4460, %v4459
  %v4471 = vpack.c.b16 %v4462, %v4461
  %v4472 = vpack.c.b16 %v4464, %v4463
  %v4473 = vpack.c.b16 %v4466, %v4465
  %v4482 = vsel %vm4223, %v4423, 0
  %4484 = vmatpush.bf16.msra.mxu0 0
  %4485 = vmatpush.bf16.msra.mxu0 %v4473
  %4486 = vmatpush.bf16.msra.mxu0 %v4472
  %4487 = vmatpush.bf16.msra.mxu0 %v4471
  %4488 = vmatpush.bf16.msra.mxu0 %v4470
  %4489 = vmatpush.bf16.msra.mxu0 %v4469
  %4490 = vmatpush.bf16.msra.mxu0 %v4468
  %4491 = vmatpush.bf16.msra.mxu0 %v4467
  %4492 = vmatmul.bf16.gmra.mxu0 %v4482
  %v4493 = vpop.f32.mrf.mxu0
  %v4494 = vadd.f32 0.0, %v4493
  %v4495 = vpop.f32.mrf.mxu0
  %4496 = vdwg.mxu0
  %v4497 = vadd.f32 %v4397, %v4494
  %v4498 = vld [vmem:[%s8] sm:$0x1]
  %v4500 = vperm.slane %v4498, 0
  %v4502 = vadd.f32 %v4497, %v4500
  %v4503 = vmax.f32 %v4502, 0.0
  %v4504 = vpack.c.bf16 %v4503, %v4503
  %v4505 = vld [vmem:[%s9] sm:$0xf]
  %v4506 = vld [vmem:[%s9 + $0x4] sm:$0xf]
  %v4507 = vld [vmem:[%s9 + $0x8] sm:$0xf]
  %v4508 = vld [vmem:[%s9 + $0xc] sm:$0xf]
  %v4509 = vld [vmem:[%s9 + $0x10] sm:$0xf]
  %v4510 = vld [vmem:[%s9 + $0x14] sm:$0xf]
  %v4511 = vld [vmem:[%s9 + $0x18] sm:$0xf]
  %v4512 = vld [vmem:[%s9 + $0x1c] sm:$0xf]
  %v4513 = vld [vmem:[%s9 + $0x20] sm:$0xf]
  %v4514 = vld [vmem:[%s9 + $0x24] sm:$0xf]
  %v4515 = vld [vmem:[%s9 + $0x28] sm:$0xf]
  %v4516 = vld [vmem:[%s9 + $0x2c] sm:$0xf]
  %v4517 = vld [vmem:[%s9 + $0x30] sm:$0xf]
  %v4518 = vld [vmem:[%s9 + $0x34] sm:$0xf]
  %v4519 = vld [vmem:[%s9 + $0x38] sm:$0xf]
  %v4520 = vld [vmem:[%s10] sm:$0x1]
  %v4522 = vperm.slane %v4520, 0
  %v4539 = vunpack.c.l.b16 %v4505
  %v4540 = vunpack.c.l.b16 %v4506
  %v4541 = vunpack.c.l.b16 %v4507
  %v4542 = vunpack.c.l.b16 %v4508
  %v4543 = vunpack.c.l.b16 %v4509
  %v4544 = vunpack.c.l.b16 %v4510
  %v4545 = vunpack.c.l.b16 %v4511
  %v4546 = vunpack.c.l.b16 %v4512
  %v4547 = vunpack.c.l.b16 %v4513
  %v4548 = vunpack.c.l.b16 %v4514
  %v4549 = vunpack.c.l.b16 %v4515
  %v4550 = vunpack.c.l.b16 %v4516
  %v4551 = vunpack.c.l.b16 %v4517
  %v4552 = vunpack.c.l.b16 %v4518
  %v4553 = vunpack.c.l.b16 %v4519
  %v4554 = vpack.c.b16 %v4540, %v4539
  %v4555 = vpack.c.b16 %v4542, %v4541
  %v4556 = vpack.c.b16 %v4544, %v4543
  %v4557 = vpack.c.b16 %v4546, %v4545
  %v4558 = vpack.c.b16 %v4548, %v4547
  %v4559 = vpack.c.b16 %v4550, %v4549
  %v4560 = vpack.c.b16 %v4552, %v4551
  %v4561 = vpack.c.b16 %v4553, %v4553
  %vm4569 = vcmask 982016
  %v4571 = vsel %vm4569, %v4504, 0
  %vm4573 = vcmask 1043456
  %v4575 = vsel %vm4573, %v4561, 0
  %4577 = vmatpush.bf16.msra.mxu0 %v4575
  %4578 = vmatpush.bf16.msra.mxu0 %v4560
  %4579 = vmatpush.bf16.msra.mxu0 %v4559
  %4580 = vmatpush.bf16.msra.mxu0 %v4558
  %4581 = vmatpush.bf16.msra.mxu0 %v4557
  %4582 = vmatpush.bf16.msra.mxu0 %v4556
  %4583 = vmatpush.bf16.msra.mxu0 %v4555
  %4584 = vmatpush.bf16.msra.mxu0 %v4554
  %4585 = vmatmul.bf16.gmra.mxu0 %v4571
  %v4586 = vpop.f32.mrf.mxu0
  %v4587 = vadd.f32 %v4522, %v4586
  %v4588 = vpop.f32.mrf.mxu0
  %4589 = vdwg.mxu0
  %v4590 = vmax.f32 %v4587, 0.0
  %v4591 = vld [vmem:[%s11] sm:$0x1]
  %v4593 = vperm.slane %v4591, 0
  %v4595 = vmul.f32 %v4590, %v4593
  %v4596 = vsel %vm279, %v4595, 0.0
  %4597 = vadd.xlane.f32.xlu0 %v4596
  %v4598 = vpop.xlane.xlu0 %4597
  %v4599 = vld [vmem:[#allocation2] sm:$0x1]
  %v4601 = vperm.slane %v4599, 0
  %v4603 = vadd.f32 %v4598, %v4601
  %v4604 = vsub.f32 0.0, %v4603
  %v4605 = vmul.f32 %v4604, 1.442695
  %v4606 = vpow.pop %v4605
  %v4607 = vadd.f32 %v4606, 1.0
  %v4608 = vrcp.pop %v4607
  %v4609 = vmul.f32 %v4607, %v4608
  %v4610 = vsub.f32 1.0, %v4609
  %v4611 = vmul.f32 %v4608, %v4610
  %v4612 = vadd.f32 %v4608, %v4611
  %vm4613 = vweird.f32 %v4607
  %vm4614 = vweird.f32 %v4608
  %vm4615 = vmor %vm4613, %vm4614
  %v4616 = vsel %vm4615, %v4608, %v4612
  %v4617 = vand.u32 2147483647, %v4607
  %vm4618 = vcmp.eq.f32.partialorder %v4617, 8.507059e+37
  %v4619 = vand.u32 %v4607, 2147483648
  %v4620 = vor.u32 1.1754944e-38, %v4619
  %v4621 = vsel %vm4618, %v4620, %v4616
  %v4622 = vmul.f32 1.0, %v4621
  %vm4623 = vcmask 7168
  %4624 = vst.msk [vmem:[%s13] sm:$0xff] %vm4623, %v4622
  // Predicated region
  $region54: #{cnn_forward.1} parent=0 // pred_check
    _
  $region55: #{cnn_forward.1} parent=0 // pred_check_branch
    %4626 = sbr.rel (0) target = $region57
  $region56: #{cnn_forward.1} parent=0 // pred_region
    _
  $region57: #{cnn_forward.1} parent=0 // pred_fallthru
    _
  // Predicated region
  $region58: #{cnn_forward.1} parent=0 // pred_check
    _
  $region59: #{cnn_forward.1} parent=0 // pred_check_branch
    %4628 = sbr.rel (0) target = $region61
  $region60: #{cnn_forward.1} parent=0 // pred_region
    _
  $region61: #{cnn_forward.1} parent=0 // pred_fallthru
    _

</llo_original>
